<compile_context>
chip_gen: v6e
topology: v6e:2x2x1
jax: 0.10.0
libtpu: 0.0.40
codegen_flags: <defaults>
</compile_context>

<pallas_src>
import jax
import jax.numpy as jnp
from jax.experimental import pallas as pl
from jax.experimental.pallas import tpu as pltpu


def _cdiv(a, b):
    return -(-a // b)


def _fuse_bn(gamma, beta, mean, var, eps=1e-5):
    scale = gamma / jnp.sqrt(var + eps)
    return scale.astype(jnp.float32), (beta - mean * scale).astype(jnp.float32)


def _vmem_limit_bytes():
    cap = None
    try:
        info = pltpu.get_tpu_info()
        for name in ("vmem_capacity_bytes", "vmem_size_bytes", "vmem_bytes"):
            v = getattr(info, name, None)
            if v:
                cap = int(v)
                break
    except Exception:
        cap = None
    if not cap:
        cap = 64 * 1024 * 1024  # conservative default (v7x-sized)
    return max(32 * 1024 * 1024, min(int(cap * 0.75), 96 * 1024 * 1024))


def _pick_row_tile(Ho, Wo, Cin, Cout, s, out_bytes, vmem_budget):
    """Largest row tile (multiple of 8, or full Ho) whose VMEM footprint fits."""
    WS = Wo + 2 // s
    cands = sorted(set(list(range(8, Ho, 8)) + [Ho]))
    best = cands[0]
    for th in cands:
        if th * Wo > 8192:
            break
        hs = _cdiv(Ho, th) * th + 2 + 2 // s
        need = (2 * (s * s) * hs * WS * Cin * 2            # input slab, 2 bufs, bf16
                + (th + 2) * (Wo + 2) * Cout * 2           # conv1 halo scratch (bf16)
                + 3 * (th + 2) * Wo * max(Cout, 128) * 4   # live f32 accumulators
                + 2 * th * Wo * max(Cout, 128) * out_bytes  # output tile, 2 bufs
                + 18 * max(Cin, Cout) * Cout * 2           # weights
                + (2 << 20))                               # slack
        if need <= int(0.7 * vmem_budget):
            best = th
    return best


def _make_kernel(*, stride, TH, NHB, Ho, Wo, Cin, Cout, downsample, flat_out):
    s = stride
    # scratch row holding conv1 output row `Ho` (first out-of-image row) for
    # the last (possibly partial) tile -- a compile-time constant.
    last_row = Ho - (NHB - 1) * TH + 1

    def kernel(x_ref, w1_ref, b1_ref, w2_ref, b2_ref, *rest):
        if downsample:
            wd_ref, bd_ref, out_ref, h1_ref = rest
        else:
            out_ref, h1_ref = rest

        hb = pl.program_id(1)
        h0 = hb * TH                      # first output row of this tile

        # ---- conv1 (3x3, stride s): 9 accumulating matmuls, K = Cin --------
        # Taps are unit-stride slices of the parity-split padded input; TH+2
        # rows are produced so conv2 gets its +/-1 row halo by recompute.
        acc1 = jnp.zeros(((TH + 2) * Wo, Cout), jnp.float32)
        for kh in range(3):
            for kw in range(3):
                p = (kh % s) * s + (kw % s)
                tap = x_ref[p, 0, pl.ds(h0 + kh // s, TH + 2),
                            pl.ds(kw // s, Wo), :]
                acc1 = acc1 + jnp.dot(tap.reshape((TH + 2) * Wo, Cin),
                                      w1_ref[kh * 3 + kw],
                                      preferred_element_type=jnp.float32)
        h1 = jnp.maximum(acc1 + b1_ref[...], 0.0).astype(jnp.bfloat16)  # +BN1 bias, ReLU
        h1_ref[pl.ds(0, TH + 2), pl.ds(1, Wo), :] = h1.reshape(TH + 2, Wo, Cout)

        # ---- halo bookkeeping: boundary tiles only (pl.when-gated) ----------
        @pl.when(hb == 0)
        def _():
            # W-halo columns: zeroed once per image, never rewritten afterwards
            zc = jnp.zeros((TH + 2, 1, Cout), jnp.bfloat16)
            h1_ref[pl.ds(0, TH + 2), pl.ds(0, 1), :] = zc
            h1_ref[pl.ds(0, TH + 2), pl.ds(Wo + 1, 1), :] = zc
            # conv1 row above the image
            h1_ref[pl.ds(0, 1), pl.ds(0, Wo + 2), :] = jnp.zeros(
                (1, Wo + 2, Cout), jnp.bfloat16)

        @pl.when(hb == NHB - 1)
        def _():
            # first conv1 row at/below the bottom of the image
            h1_ref[pl.ds(last_row, 1), pl.ds(0, Wo + 2), :] = jnp.zeros(
                (1, Wo + 2, Cout), jnp.bfloat16)

        # ---- conv2 (3x3, stride 1): 9 accumulating matmuls, K = Cout --------
        acc2 = jnp.zeros((TH * Wo, Cout), jnp.float32)
        for kh in range(3):
            for kw in range(3):
                tap = h1_ref[pl.ds(kh, TH), pl.ds(kw, Wo), :]
                acc2 = acc2 + jnp.dot(tap.reshape(TH * Wo, Cout),
                                      w2_ref[kh * 3 + kw],
                                      preferred_element_type=jnp.float32)
        body = acc2 + b2_ref[...]                                       # +BN2 bias

        # ---- residual: conv1 centre tap rows == x[r*s, c*s] (no extra HBM) --
        pc = (1 % s) * s + (1 % s)
        res = x_ref[pc, 0, pl.ds(h0 + 1 // s + 1, TH),
                    pl.ds(1 // s, Wo), :].reshape(TH * Wo, Cin)
        if downsample:
            res = jnp.dot(res, wd_ref[...],
                          preferred_element_type=jnp.float32) + bd_ref[...]
        else:
            res = res.astype(jnp.float32)          # identity skip: plain add

        out = jnp.maximum(body + res, 0.0)
        if flat_out:   # lane-dense store: trailing dim Wo*Cout (multiple of 128)
            out_ref[...] = out.reshape(1, TH, Wo * Cout).astype(out_ref.dtype)
        else:
            out_ref[...] = out.reshape(1, TH, Wo, Cout).astype(out_ref.dtype)

    return kernel


def residual_block_forward(x, params, *, stride, downsample, row_block=None,
                           out_dtype=jnp.float32, data_format="NCHW"):
    """ResidualBlock forward.  data_format applies to both input and output;
    "NCHW" matches the PyTorch module, "NHWC" skips both layout transposes."""
    s = int(stride)
    if data_format == "NCHW":
        N, Cin, H, W = x.shape
        x_nhwc = jnp.transpose(x, (0, 2, 3, 1))
    elif data_format == "NHWC":
        N, H, W, Cin = x.shape
        x_nhwc = x
    else:
        raise ValueError(data_format)

    Cout = params['w1'].shape[0]
    Ho = (H + 2 - 3) // s + 1
    Wo = (W + 2 - 3) // s + 1
    if not downsample:
        assert s == 1 and Cin == Cout, "identity skip needs stride=1, Cin==Cout"

    vmem_limit = _vmem_limit_bytes()
    out_bytes = jnp.dtype(out_dtype).itemsize
    TH = int(row_block) if row_block is not None else _pick_row_tile(
        Ho, Wo, Cin, Cout, s, out_bytes, vmem_limit)
    TH = max(1, min(TH, Ho))
    NHB = _cdiv(Ho, TH)                    # cdiv grid; last tile may be partial

    # ---- pad once + parity split (space-to-depth; pure permutation, no dup) -
    HS = NHB * TH + 2 + 2 // s
    WS = Wo + 2 // s
    HP, WP = s * HS, s * WS
    pad_top, pad_left = 1 + s, 1
    xP = jnp.pad(x_nhwc, ((0, 0), (pad_top, HP - H - pad_top),
                          (pad_left, WP - W - pad_left), (0, 0)))
    xS = (xP.reshape(N, HS, s, WS, s, Cin)
             .transpose(2, 4, 0, 1, 3, 5)
             .reshape(s * s, N, HS, WS, Cin)).astype(jnp.bfloat16)

    # ---- fold BN scale into the conv weights; only the bias stays in-kernel -
    s1, b1 = _fuse_bn(*params['bn1'])
    s2, b2 = _fuse_bn(*params['bn2'])
    w1m = (jnp.transpose(params['w1'], (2, 3, 1, 0)) * s1).reshape(
        9, Cin, Cout).astype(jnp.bfloat16)
    w2m = (jnp.transpose(params['w2'], (2, 3, 1, 0)) * s2).reshape(
        9, Cout, Cout).astype(jnp.bfloat16)
    b1 = b1.reshape(1, Cout)
    b2 = b2.reshape(1, Cout)

    vec = pl.BlockSpec((1, Cout), lambda n, hb: (0, 0))
    args = [xS, w1m, b1, w2m, b2]
    in_specs = [
        pl.BlockSpec((s * s, 1, HS, WS, Cin), lambda n, hb: (0, n, 0, 0, 0)),
        pl.BlockSpec((9, Cin, Cout), lambda n, hb: (0, 0, 0)),
        vec,
        pl.BlockSpec((9, Cout, Cout), lambda n, hb: (0, 0, 0)),
        vec,
    ]
    if downsample:
        sd, bd = _fuse_bn(*params['bnd'])
        wdm = (params['wd'][:, :, 0, 0].T * sd).astype(jnp.bfloat16)   # (Cin, Cout)
        args += [wdm, bd.reshape(1, Cout)]
        in_specs += [pl.BlockSpec((Cin, Cout), lambda n, hb: (0, 0)), vec]

    cparams = pltpu.CompilerParams(
        dimension_semantics=("parallel", "arbitrary"),   # batch megacore-sharded,
        vmem_limit_bytes=vmem_limit)                     # row tiles sequential
    scratch = [pltpu.VMEM((TH + 2, Wo + 2, Cout), jnp.bfloat16)]

    def run(flat_out):
        kern = _make_kernel(stride=s, TH=TH, NHB=NHB, Ho=Ho, Wo=Wo, Cin=Cin,
                            Cout=Cout, downsample=downsample, flat_out=flat_out)
        if flat_out:
            out_shape = jax.ShapeDtypeStruct((N, Ho, Wo * Cout), out_dtype)
            out_spec = pl.BlockSpec((1, TH, Wo * Cout), lambda n, hb: (n, hb, 0))
        else:
            out_shape = jax.ShapeDtypeStruct((N, Ho, Wo, Cout), out_dtype)
            out_spec = pl.BlockSpec((1, TH, Wo, Cout), lambda n, hb: (n, hb, 0, 0))
        out = pl.pallas_call(
            kern, out_shape=out_shape, grid=(N, NHB),
            in_specs=in_specs, out_specs=out_spec,
            scratch_shapes=scratch, compiler_params=cparams)(*args)
        return out.reshape(N, Ho, Wo, Cout)    # free: NHWC is contiguous

    lane_dense = (Wo * Cout) % 128 == 0 and (TH % 8 == 0 or TH == Ho)
    if lane_dense:
        try:
            out_nhwc = run(True)
        except Exception:   # Mosaic couldn't lower the lane-merge relayout
            out_nhwc = run(False)
    else:
        out_nhwc = run(False)

    if data_format == "NCHW":
        return jnp.transpose(out_nhwc, (0, 3, 1, 2))
    return out_nhwc


# ------------------------------ pure-JAX reference ---------------------------
def _ref_forward(x_nchw, params, *, stride, downsample, eps=1e-5):
    # mirrors the kernel's rounding points: bf16 operands (with BN scale folded
    # into the weights), f32 accumulation, f32 bias/ReLU/skip-add.
    bf = lambda a: a.astype(jnp.bfloat16)

    def conv(x, w, s, pad):
        return jax.lax.conv_general_dilated(
            bf(x), bf(w), (s, s), [(pad, pad), (pad, pad)],
            dimension_numbers=("NCHW", "OIHW", "NCHW"),
            preferred_element_type=jnp.float32)

    def fold(w, bn):
        g, b, m, v = bn
        sc = g / jnp.sqrt(v + eps)
        return w * sc[:, None, None, None], b - m * sc

    w1, b1 = fold(params['w1'], params['bn1'])
    w2, b2 = fold(params['w2'], params['bn2'])
    h = jax.nn.relu(conv(x_nchw, w1, stride, 1) + b1[None, :, None, None])
    h = conv(h, w2, 1, 1) + b2[None, :, None, None]
    if downsample:
        wd, bd = fold(params['wd'], params['bnd'])
        r = conv(x_nchw, wd, stride, 0) + bd[None, :, None, None]
    else:
        r = bf(x_nchw).astype(jnp.float32)
    return jax.nn.relu(h + r)


if __name__ == "__main__":
    key = jax.random.PRNGKey(0)
    ks = jax.random.split(key, 16)

    def bn_params(k, c):
        k0, k1, k2, k3 = jax.random.split(k, 4)
        return (jax.random.uniform(k0, (c,), jnp.float32, 0.5, 1.5),
                0.1 * jax.random.normal(k1, (c,), jnp.float32),
                0.1 * jax.random.normal(k2, (c,), jnp.float32),
                jax.random.uniform(k3, (c,), jnp.float32, 0.5, 1.5))

    # -- config A: stride-2 downsample block, NCHW/f32 I/O (module parity),
    #    two row tiles per image (halo recompute + scratch reuse across tiles).
    N, Cin, H, W, Cout = 2, 4, 16, 16, 8
    params = {
        'w1':  0.2 * jax.random.normal(ks[0], (Cout, Cin, 3, 3), jnp.float32),
        'bn1': bn_params(ks[1], Cout),
        'w2':  0.2 * jax.random.normal(ks[2], (Cout, Cout, 3, 3), jnp.float32),
        'bn2': bn_params(ks[3], Cout),
        'wd':  0.2 * jax.random.normal(ks[4], (Cout, Cin, 1, 1), jnp.float32),
        'bnd': bn_params(ks[5], Cout),
    }
    x = jax.random.normal(ks[6], (N, Cin, H, W), jnp.float32)
    out = residual_block_forward(x, params, stride=2, downsample=True, row_block=4)
    out = jax.block_until_ready(out)
    ref = _ref_forward(x, params, stride=2, downsample=True)
    assert out.shape == ref.shape, (out.shape, ref.shape)
    err = float(jnp.max(jnp.abs(out - ref) / (1.0 + jnp.abs(ref))))
    assert err < 5e-3, err

    # -- config B: stride-1 identity block, NHWC/bf16 I/O, lane-dense output
    #    (Wo*Cout = 128), non-divisible row tiling (clipped partial last tile).
    C, Hb, Wb = 8, 24, 16
    params_b = {
        'w1':  0.2 * jax.random.normal(ks[7], (C, C, 3, 3), jnp.float32),
        'bn1': bn_params(ks[8], C),
        'w2':  0.2 * jax.random.normal(ks[9], (C, C, 3, 3), jnp.float32),
        'bn2': bn_params(ks[10], C),
    }
    xb = jax.random.normal(ks[11], (2, C, Hb, Wb), jnp.float32)
    xb_nhwc = jnp.transpose(xb, (0, 2, 3, 1))
    outb = residual_block_forward(xb_nhwc, params_b, stride=1, downsample=False,
                                  row_block=16, out_dtype=jnp.bfloat16,
                                  data_format="NHWC")
    outb = jax.block_until_ready(outb)
    refb = jnp.transpose(_ref_forward(xb, params_b, stride=1, downsample=False),
                         (0, 2, 3, 1))
    assert outb.shape == refb.shape, (outb.shape, refb.shape)
    errb = float(jnp.max(jnp.abs(outb.astype(jnp.float32) - refb)
                         / (1.0 + jnp.abs(refb))))
    assert errb < 8e-3, errb

    print("KERNEL_OK")
</pallas_src>

<mosaic_0001>
module attributes {stable_mosaic.version = 11 : i64} {
  func.func @kernel(%arg0: i32, %arg1: i32, %arg2: memref<4x1x11x9x4xbf16, #tpu.memory_space<vmem>>, %arg3: memref<9x4x8xbf16, #tpu.memory_space<vmem>>, %arg4: memref<1x8xf32, #tpu.memory_space<vmem>>, %arg5: memref<9x8x8xbf16, #tpu.memory_space<vmem>>, %arg6: memref<1x8xf32, #tpu.memory_space<vmem>>, %arg7: memref<4x8xbf16, #tpu.memory_space<vmem>>, %arg8: memref<1x8xf32, #tpu.memory_space<vmem>>, %arg9: memref<1x4x8x8xf32, #tpu.memory_space<vmem>>, %arg10: memref<6x10x8xbf16, #tpu.memory_space<vmem>>) attributes {dimension_semantics = [#tpu.dimension_semantics<parallel>, #tpu.dimension_semantics<arbitrary>], iteration_bounds = array<i64: 2, 2>, scalar_prefetch = 0 : i64, scratch_operands = 1 : i64, tpu.core_type = #tpu.core_type<tc>, window_params = [{transform_indices = @transform_0, window_bounds = array<i64: 4, 1, 11, 9, 4>}, {pipeline_mode = #tpu.pipeline_mode<synchronous>, transform_indices = @transform_1, window_bounds = array<i64: 9, 4, 8>}, {pipeline_mode = #tpu.pipeline_mode<synchronous>, transform_indices = @transform_2, window_bounds = array<i64: 1, 8>}, {pipeline_mode = #tpu.pipeline_mode<synchronous>, transform_indices = @transform_3, window_bounds = array<i64: 9, 8, 8>}, {pipeline_mode = #tpu.pipeline_mode<synchronous>, transform_indices = @transform_4, window_bounds = array<i64: 1, 8>}, {pipeline_mode = #tpu.pipeline_mode<synchronous>, transform_indices = @transform_5, window_bounds = array<i64: 4, 8>}, {pipeline_mode = #tpu.pipeline_mode<synchronous>, transform_indices = @transform_6, window_bounds = array<i64: 1, 8>}, {transform_indices = @transform_7, window_bounds = array<i64: 1, 4, 8, 8>}]} {
    %c4_i32 = arith.constant 4 : i32
    %0 = arith.muli %arg1, %c4_i32 : i32
    %cst = arith.constant 0.000000e+00 : f32
    %1 = vector.broadcast %cst : f32 to vector<48x8xf32>
    %c0_i32 = arith.constant 0 : i32
    %2 = arith.addi %0, %c0_i32 : i32
    %c0 = arith.constant 0 : index
    %c0_0 = arith.constant 0 : index
    %3 = arith.index_cast %2 : i32 to index
    %c0_1 = arith.constant 0 : index
    %c0_2 = arith.constant 0 : index
    %4 = vector.load %arg2[%c0, %c0_0, %3, %c0_1, %c0_2] : memref<4x1x11x9x4xbf16, #tpu.memory_space<vmem>>, vector<1x1x6x8x4xbf16>
    %5 = vector.shape_cast %4 : vector<1x1x6x8x4xbf16> to vector<6x8x4xbf16>
    %6 = vector.shape_cast %5 : vector<6x8x4xbf16> to vector<48x4xbf16>
    %c0_3 = arith.constant 0 : index
    %c0_4 = arith.constant 0 : index
    %c0_5 = arith.constant 0 : index
    %7 = vector.load %arg3[%c0_3, %c0_4, %c0_5] : memref<9x4x8xbf16, #tpu.memory_space<vmem>>, vector<1x4x8xbf16>
    %8 = vector.shape_cast %7 : vector<1x4x8xbf16> to vector<4x8xbf16>
    %cst_6 = arith.constant dense<0.000000e+00> : vector<48x8xf32>
    %9 = tpu.matmul %6, %8, %cst_6 {dimension_numbers = #tpu.dot_dimension_numbers<[1], [0], [0], [1], [0, 0, 1, 1], [], []>} : vector<48x4xbf16>, vector<4x8xbf16>, vector<48x8xf32> -> vector<48x8xf32>
    %10 = arith.addf %1, %9 : vector<48x8xf32>
    %c0_i32_7 = arith.constant 0 : i32
    %11 = arith.addi %0, %c0_i32_7 : i32
    %c1 = arith.constant 1 : index
    %c0_8 = arith.constant 0 : index
    %12 = arith.index_cast %11 : i32 to index
    %c0_9 = arith.constant 0 : index
    %c0_10 = arith.constant 0 : index
    %13 = vector.load %arg2[%c1, %c0_8, %12, %c0_9, %c0_10] : memref<4x1x11x9x4xbf16, #tpu.memory_space<vmem>>, vector<1x1x6x8x4xbf16>
    %14 = vector.shape_cast %13 : vector<1x1x6x8x4xbf16> to vector<6x8x4xbf16>
    %15 = vector.shape_cast %14 : vector<6x8x4xbf16> to vector<48x4xbf16>
    %c1_11 = arith.constant 1 : index
    %c0_12 = arith.constant 0 : index
    %c0_13 = arith.constant 0 : index
    %16 = vector.load %arg3[%c1_11, %c0_12, %c0_13] : memref<9x4x8xbf16, #tpu.memory_space<vmem>>, vector<1x4x8xbf16>
    %17 = vector.shape_cast %16 : vector<1x4x8xbf16> to vector<4x8xbf16>
    %cst_14 = arith.constant dense<0.000000e+00> : vector<48x8xf32>
    %18 = tpu.matmul %15, %17, %cst_14 {dimension_numbers = #tpu.dot_dimension_numbers<[1], [0], [0], [1], [0, 0, 1, 1], [], []>} : vector<48x4xbf16>, vector<4x8xbf16>, vector<48x8xf32> -> vector<48x8xf32>
    %19 = arith.addf %10, %18 : vector<48x8xf32>
    %c0_i32_15 = arith.constant 0 : i32
    %20 = arith.addi %0, %c0_i32_15 : i32
    %c0_16 = arith.constant 0 : index
    %c0_17 = arith.constant 0 : index
    %21 = arith.index_cast %20 : i32 to index
    %c1_18 = arith.constant 1 : index
    %c0_19 = arith.constant 0 : index
    %22 = vector.load %arg2[%c0_16, %c0_17, %21, %c1_18, %c0_19] : memref<4x1x11x9x4xbf16, #tpu.memory_space<vmem>>, vector<1x1x6x8x4xbf16>
    %23 = vector.shape_cast %22 : vector<1x1x6x8x4xbf16> to vector<6x8x4xbf16>
    %24 = vector.shape_cast %23 : vector<6x8x4xbf16> to vector<48x4xbf16>
    %c2 = arith.constant 2 : index
    %c0_20 = arith.constant 0 : index
    %c0_21 = arith.constant 0 : index
    %25 = vector.load %arg3[%c2, %c0_20, %c0_21] : memref<9x4x8xbf16, #tpu.memory_space<vmem>>, vector<1x4x8xbf16>
    %26 = vector.shape_cast %25 : vector<1x4x8xbf16> to vector<4x8xbf16>
    %cst_22 = arith.constant dense<0.000000e+00> : vector<48x8xf32>
    %27 = tpu.matmul %24, %26, %cst_22 {dimension_numbers = #tpu.dot_dimension_numbers<[1], [0], [0], [1], [0, 0, 1, 1], [], []>} : vector<48x4xbf16>, vector<4x8xbf16>, vector<48x8xf32> -> vector<48x8xf32>
    %28 = arith.addf %19, %27 : vector<48x8xf32>
    %c0_i32_23 = arith.constant 0 : i32
    %29 = arith.addi %0, %c0_i32_23 : i32
    %c2_24 = arith.constant 2 : index
    %c0_25 = arith.constant 0 : index
    %30 = arith.index_cast %29 : i32 to index
    %c0_26 = arith.constant 0 : index
    %c0_27 = arith.constant 0 : index
    %31 = vector.load %arg2[%c2_24, %c0_25, %30, %c0_26, %c0_27] : memref<4x1x11x9x4xbf16, #tpu.memory_space<vmem>>, vector<1x1x6x8x4xbf16>
    %32 = vector.shape_cast %31 : vector<1x1x6x8x4xbf16> to vector<6x8x4xbf16>
    %33 = vector.shape_cast %32 : vector<6x8x4xbf16> to vector<48x4xbf16>
    %c3 = arith.constant 3 : index
    %c0_28 = arith.constant 0 : index
    %c0_29 = arith.constant 0 : index
    %34 = vector.load %arg3[%c3, %c0_28, %c0_29] : memref<9x4x8xbf16, #tpu.memory_space<vmem>>, vector<1x4x8xbf16>
    %35 = vector.shape_cast %34 : vector<1x4x8xbf16> to vector<4x8xbf16>
    %cst_30 = arith.constant dense<0.000000e+00> : vector<48x8xf32>
    %36 = tpu.matmul %33, %35, %cst_30 {dimension_numbers = #tpu.dot_dimension_numbers<[1], [0], [0], [1], [0, 0, 1, 1], [], []>} : vector<48x4xbf16>, vector<4x8xbf16>, vector<48x8xf32> -> vector<48x8xf32>
    %37 = arith.addf %28, %36 : vector<48x8xf32>
    %c0_i32_31 = arith.constant 0 : i32
    %38 = arith.addi %0, %c0_i32_31 : i32
    %c3_32 = arith.constant 3 : index
    %c0_33 = arith.constant 0 : index
    %39 = arith.index_cast %38 : i32 to index
    %c0_34 = arith.constant 0 : index
    %c0_35 = arith.constant 0 : index
    %40 = vector.load %arg2[%c3_32, %c0_33, %39, %c0_34, %c0_35] : memref<4x1x11x9x4xbf16, #tpu.memory_space<vmem>>, vector<1x1x6x8x4xbf16>
    %41 = vector.shape_cast %40 : vector<1x1x6x8x4xbf16> to vector<6x8x4xbf16>
    %42 = vector.shape_cast %41 : vector<6x8x4xbf16> to vector<48x4xbf16>
    %c4 = arith.constant 4 : index
    %c0_36 = arith.constant 0 : index
    %c0_37 = arith.constant 0 : index
    %43 = vector.load %arg3[%c4, %c0_36, %c0_37] : memref<9x4x8xbf16, #tpu.memory_space<vmem>>, vector<1x4x8xbf16>
    %44 = vector.shape_cast %43 : vector<1x4x8xbf16> to vector<4x8xbf16>
    %cst_38 = arith.constant dense<0.000000e+00> : vector<48x8xf32>
    %45 = tpu.matmul %42, %44, %cst_38 {dimension_numbers = #tpu.dot_dimension_numbers<[1], [0], [0], [1], [0, 0, 1, 1], [], []>} : vector<48x4xbf16>, vector<4x8xbf16>, vector<48x8xf32> -> vector<48x8xf32>
    %46 = arith.addf %37, %45 : vector<48x8xf32>
    %c0_i32_39 = arith.constant 0 : i32
    %47 = arith.addi %0, %c0_i32_39 : i32
    %c2_40 = arith.constant 2 : index
    %c0_41 = arith.constant 0 : index
    %48 = arith.index_cast %47 : i32 to index
    %c1_42 = arith.constant 1 : index
    %c0_43 = arith.constant 0 : index
    %49 = vector.load %arg2[%c2_40, %c0_41, %48, %c1_42, %c0_43] : memref<4x1x11x9x4xbf16, #tpu.memory_space<vmem>>, vector<1x1x6x8x4xbf16>
    %50 = vector.shape_cast %49 : vector<1x1x6x8x4xbf16> to vector<6x8x4xbf16>
    %51 = vector.shape_cast %50 : vector<6x8x4xbf16> to vector<48x4xbf16>
    %c5 = arith.constant 5 : index
    %c0_44 = arith.constant 0 : index
    %c0_45 = arith.constant 0 : index
    %52 = vector.load %arg3[%c5, %c0_44, %c0_45] : memref<9x4x8xbf16, #tpu.memory_space<vmem>>, vector<1x4x8xbf16>
    %53 = vector.shape_cast %52 : vector<1x4x8xbf16> to vector<4x8xbf16>
    %cst_46 = arith.constant dense<0.000000e+00> : vector<48x8xf32>
    %54 = tpu.matmul %51, %53, %cst_46 {dimension_numbers = #tpu.dot_dimension_numbers<[1], [0], [0], [1], [0, 0, 1, 1], [], []>} : vector<48x4xbf16>, vector<4x8xbf16>, vector<48x8xf32> -> vector<48x8xf32>
    %55 = arith.addf %46, %54 : vector<48x8xf32>
    %c1_i32 = arith.constant 1 : i32
    %56 = arith.addi %0, %c1_i32 : i32
    %c0_47 = arith.constant 0 : index
    %c0_48 = arith.constant 0 : index
    %57 = arith.index_cast %56 : i32 to index
    %c0_49 = arith.constant 0 : index
    %c0_50 = arith.constant 0 : index
    %58 = vector.load %arg2[%c0_47, %c0_48, %57, %c0_49, %c0_50] : memref<4x1x11x9x4xbf16, #tpu.memory_space<vmem>>, vector<1x1x6x8x4xbf16>
    %59 = vector.shape_cast %58 : vector<1x1x6x8x4xbf16> to vector<6x8x4xbf16>
    %60 = vector.shape_cast %59 : vector<6x8x4xbf16> to vector<48x4xbf16>
    %c6 = arith.constant 6 : index
    %c0_51 = arith.constant 0 : index
    %c0_52 = arith.constant 0 : index
    %61 = vector.load %arg3[%c6, %c0_51, %c0_52] : memref<9x4x8xbf16, #tpu.memory_space<vmem>>, vector<1x4x8xbf16>
    %62 = vector.shape_cast %61 : vector<1x4x8xbf16> to vector<4x8xbf16>
    %cst_53 = arith.constant dense<0.000000e+00> : vector<48x8xf32>
    %63 = tpu.matmul %60, %62, %cst_53 {dimension_numbers = #tpu.dot_dimension_numbers<[1], [0], [0], [1], [0, 0, 1, 1], [], []>} : vector<48x4xbf16>, vector<4x8xbf16>, vector<48x8xf32> -> vector<48x8xf32>
    %64 = arith.addf %55, %63 : vector<48x8xf32>
    %c1_i32_54 = arith.constant 1 : i32
    %65 = arith.addi %0, %c1_i32_54 : i32
    %c1_55 = arith.constant 1 : index
    %c0_56 = arith.constant 0 : index
    %66 = arith.index_cast %65 : i32 to index
    %c0_57 = arith.constant 0 : index
    %c0_58 = arith.constant 0 : index
    %67 = vector.load %arg2[%c1_55, %c0_56, %66, %c0_57, %c0_58] : memref<4x1x11x9x4xbf16, #tpu.memory_space<vmem>>, vector<1x1x6x8x4xbf16>
    %68 = vector.shape_cast %67 : vector<1x1x6x8x4xbf16> to vector<6x8x4xbf16>
    %69 = vector.shape_cast %68 : vector<6x8x4xbf16> to vector<48x4xbf16>
    %c7 = arith.constant 7 : index
    %c0_59 = arith.constant 0 : index
    %c0_60 = arith.constant 0 : index
    %70 = vector.load %arg3[%c7, %c0_59, %c0_60] : memref<9x4x8xbf16, #tpu.memory_space<vmem>>, vector<1x4x8xbf16>
    %71 = vector.shape_cast %70 : vector<1x4x8xbf16> to vector<4x8xbf16>
    %cst_61 = arith.constant dense<0.000000e+00> : vector<48x8xf32>
    %72 = tpu.matmul %69, %71, %cst_61 {dimension_numbers = #tpu.dot_dimension_numbers<[1], [0], [0], [1], [0, 0, 1, 1], [], []>} : vector<48x4xbf16>, vector<4x8xbf16>, vector<48x8xf32> -> vector<48x8xf32>
    %73 = arith.addf %64, %72 : vector<48x8xf32>
    %c1_i32_62 = arith.constant 1 : i32
    %74 = arith.addi %0, %c1_i32_62 : i32
    %c0_63 = arith.constant 0 : index
    %c0_64 = arith.constant 0 : index
    %75 = arith.index_cast %74 : i32 to index
    %c1_65 = arith.constant 1 : index
    %c0_66 = arith.constant 0 : index
    %76 = vector.load %arg2[%c0_63, %c0_64, %75, %c1_65, %c0_66] : memref<4x1x11x9x4xbf16, #tpu.memory_space<vmem>>, vector<1x1x6x8x4xbf16>
    %77 = vector.shape_cast %76 : vector<1x1x6x8x4xbf16> to vector<6x8x4xbf16>
    %78 = vector.shape_cast %77 : vector<6x8x4xbf16> to vector<48x4xbf16>
    %c8 = arith.constant 8 : index
    %c0_67 = arith.constant 0 : index
    %c0_68 = arith.constant 0 : index
    %79 = vector.load %arg3[%c8, %c0_67, %c0_68] : memref<9x4x8xbf16, #tpu.memory_space<vmem>>, vector<1x4x8xbf16>
    %80 = vector.shape_cast %79 : vector<1x4x8xbf16> to vector<4x8xbf16>
    %cst_69 = arith.constant dense<0.000000e+00> : vector<48x8xf32>
    %81 = tpu.matmul %78, %80, %cst_69 {dimension_numbers = #tpu.dot_dimension_numbers<[1], [0], [0], [1], [0, 0, 1, 1], [], []>} : vector<48x4xbf16>, vector<4x8xbf16>, vector<48x8xf32> -> vector<48x8xf32>
    %82 = arith.addf %73, %81 : vector<48x8xf32>
    %c0_70 = arith.constant 0 : index
    %c0_71 = arith.constant 0 : index
    %83 = vector.load %arg4[%c0_70, %c0_71] : memref<1x8xf32, #tpu.memory_space<vmem>>, vector<1x8xf32>
    %84 = vector.broadcast %83 : vector<1x8xf32> to vector<48x8xf32>
    %85 = arith.addf %82, %84 : vector<48x8xf32>
    %cst_72 = arith.constant 0.000000e+00 : f32
    %86 = vector.broadcast %cst_72 : f32 to vector<48x8xf32>
    %87 = arith.maximumf %85, %86 : vector<48x8xf32>
    %88 = arith.truncf %87 : vector<48x8xf32> to vector<48x8xbf16>
    %89 = vector.shape_cast %88 : vector<48x8xbf16> to vector<6x8x8xbf16>
    %c0_73 = arith.constant 0 : index
    %c1_74 = arith.constant 1 : index
    %c0_75 = arith.constant 0 : index
    %90 = vector.load %arg10[%c0_73, %c1_74, %c0_75] : memref<6x10x8xbf16, #tpu.memory_space<vmem>>, vector<6x8x8xbf16>
    tpu.vector_store %arg10[%c0_73, %c1_74, %c0_75], %89 {strides = array<i32>} : memref<6x10x8xbf16, #tpu.memory_space<vmem>>, vector<6x8x8xbf16>,
    %c0_i32_76 = arith.constant 0 : i32
    %91 = arith.cmpi eq, %arg1, %c0_i32_76 : i32
    %92 = arith.extui %91 : i1 to i32
    %c0_i32_77 = arith.constant 0 : i32
    %93 = arith.cmpi ne, %92, %c0_i32_77 : i32
    scf.if %93 {
      %cst_162 = arith.constant 0.000000e+00 : bf16
      %171 = vector.broadcast %cst_162 : bf16 to vector<6x1x8xbf16>
      %c0_163 = arith.constant 0 : index
      %c0_164 = arith.constant 0 : index
      %c0_165 = arith.constant 0 : index
      %172 = vector.load %arg10[%c0_163, %c0_164, %c0_165] : memref<6x10x8xbf16, #tpu.memory_space<vmem>>, vector<6x1x8xbf16>
      tpu.vector_store %arg10[%c0_163, %c0_164, %c0_165], %171 {strides = array<i32>} : memref<6x10x8xbf16, #tpu.memory_space<vmem>>, vector<6x1x8xbf16>,
      %c0_166 = arith.constant 0 : index
      %c9 = arith.constant 9 : index
      %c0_167 = arith.constant 0 : index
      %173 = vector.load %arg10[%c0_166, %c9, %c0_167] : memref<6x10x8xbf16, #tpu.memory_space<vmem>>, vector<6x1x8xbf16>
      tpu.vector_store %arg10[%c0_166, %c9, %c0_167], %171 {strides = array<i32>} : memref<6x10x8xbf16, #tpu.memory_space<vmem>>, vector<6x1x8xbf16>,
      %cst_168 = arith.constant 0.000000e+00 : bf16
      %174 = vector.broadcast %cst_168 : bf16 to vector<1x10x8xbf16>
      %c0_169 = arith.constant 0 : index
      %c0_170 = arith.constant 0 : index
      %c0_171 = arith.constant 0 : index
      %175 = vector.load %arg10[%c0_169, %c0_170, %c0_171] : memref<6x10x8xbf16, #tpu.memory_space<vmem>>, vector<1x10x8xbf16>
      tpu.vector_store %arg10[%c0_169, %c0_170, %c0_171], %174 {strides = array<i32>} : memref<6x10x8xbf16, #tpu.memory_space<vmem>>, vector<1x10x8xbf16>,
    } else {
    }
    %c1_i32_78 = arith.constant 1 : i32
    %94 = arith.cmpi eq, %arg1, %c1_i32_78 : i32
    %95 = arith.extui %94 : i1 to i32
    %c0_i32_79 = arith.constant 0 : i32
    %96 = arith.cmpi ne, %95, %c0_i32_79 : i32
    scf.if %96 {
      %cst_162 = arith.constant 0.000000e+00 : bf16
      %171 = vector.broadcast %cst_162 : bf16 to vector<1x10x8xbf16>
      %c5_163 = arith.constant 5 : index
      %c0_164 = arith.constant 0 : index
      %c0_165 = arith.constant 0 : index
      %172 = vector.load %arg10[%c5_163, %c0_164, %c0_165] : memref<6x10x8xbf16, #tpu.memory_space<vmem>>, vector<1x10x8xbf16>
      tpu.vector_store %arg10[%c5_163, %c0_164, %c0_165], %171 {strides = array<i32>} : memref<6x10x8xbf16, #tpu.memory_space<vmem>>, vector<1x10x8xbf16>,
    } else {
    }
    %cst_80 = arith.constant 0.000000e+00 : f32
    %97 = vector.broadcast %cst_80 : f32 to vector<32x8xf32>
    %c0_81 = arith.constant 0 : index
    %c0_82 = arith.constant 0 : index
    %c0_83 = arith.constant 0 : index
    %98 = vector.load %arg10[%c0_81, %c0_82, %c0_83] : memref<6x10x8xbf16, #tpu.memory_space<vmem>>, vector<4x8x8xbf16>
    %99 = vector.shape_cast %98 : vector<4x8x8xbf16> to vector<32x8xbf16>
    %c0_84 = arith.constant 0 : index
    %c0_85 = arith.constant 0 : index
    %c0_86 = arith.constant 0 : index
    %100 = vector.load %arg5[%c0_84, %c0_85, %c0_86] : memref<9x8x8xbf16, #tpu.memory_space<vmem>>, vector<1x8x8xbf16>
    %101 = vector.shape_cast %100 : vector<1x8x8xbf16> to vector<8x8xbf16>
    %cst_87 = arith.constant dense<0.000000e+00> : vector<32x8xf32>
    %102 = tpu.matmul %99, %101, %cst_87 {dimension_numbers = #tpu.dot_dimension_numbers<[1], [0], [0], [1], [0, 0, 1, 1], [], []>} : vector<32x8xbf16>, vector<8x8xbf16>, vector<32x8xf32> -> vector<32x8xf32>
    %103 = arith.addf %97, %102 : vector<32x8xf32>
    %c0_88 = arith.constant 0 : index
    %c1_89 = arith.constant 1 : index
    %c0_90 = arith.constant 0 : index
    %104 = vector.load %arg10[%c0_88, %c1_89, %c0_90] : memref<6x10x8xbf16, #tpu.memory_space<vmem>>, vector<4x8x8xbf16>
    %105 = vector.shape_cast %104 : vector<4x8x8xbf16> to vector<32x8xbf16>
    %c1_91 = arith.constant 1 : index
    %c0_92 = arith.constant 0 : index
    %c0_93 = arith.constant 0 : index
    %106 = vector.load %arg5[%c1_91, %c0_92, %c0_93] : memref<9x8x8xbf16, #tpu.memory_space<vmem>>, vector<1x8x8xbf16>
    %107 = vector.shape_cast %106 : vector<1x8x8xbf16> to vector<8x8xbf16>
    %cst_94 = arith.constant dense<0.000000e+00> : vector<32x8xf32>
    %108 = tpu.matmul %105, %107, %cst_94 {dimension_numbers = #tpu.dot_dimension_numbers<[1], [0], [0], [1], [0, 0, 1, 1], [], []>} : vector<32x8xbf16>, vector<8x8xbf16>, vector<32x8xf32> -> vector<32x8xf32>
    %109 = arith.addf %103, %108 : vector<32x8xf32>
    %c0_95 = arith.constant 0 : index
    %c2_96 = arith.constant 2 : index
    %c0_97 = arith.constant 0 : index
    %110 = vector.load %arg10[%c0_95, %c2_96, %c0_97] : memref<6x10x8xbf16, #tpu.memory_space<vmem>>, vector<4x8x8xbf16>
    %111 = vector.shape_cast %110 : vector<4x8x8xbf16> to vector<32x8xbf16>
    %c2_98 = arith.constant 2 : index
    %c0_99 = arith.constant 0 : index
    %c0_100 = arith.constant 0 : index
    %112 = vector.load %arg5[%c2_98, %c0_99, %c0_100] : memref<9x8x8xbf16, #tpu.memory_space<vmem>>, vector<1x8x8xbf16>
    %113 = vector.shape_cast %112 : vector<1x8x8xbf16> to vector<8x8xbf16>
    %cst_101 = arith.constant dense<0.000000e+00> : vector<32x8xf32>
    %114 = tpu.matmul %111, %113, %cst_101 {dimension_numbers = #tpu.dot_dimension_numbers<[1], [0], [0], [1], [0, 0, 1, 1], [], []>} : vector<32x8xbf16>, vector<8x8xbf16>, vector<32x8xf32> -> vector<32x8xf32>
    %115 = arith.addf %109, %114 : vector<32x8xf32>
    %c1_102 = arith.constant 1 : index
    %c0_103 = arith.constant 0 : index
    %c0_104 = arith.constant 0 : index
    %116 = vector.load %arg10[%c1_102, %c0_103, %c0_104] : memref<6x10x8xbf16, #tpu.memory_space<vmem>>, vector<4x8x8xbf16>
    %117 = vector.shape_cast %116 : vector<4x8x8xbf16> to vector<32x8xbf16>
    %c3_105 = arith.constant 3 : index
    %c0_106 = arith.constant 0 : index
    %c0_107 = arith.constant 0 : index
    %118 = vector.load %arg5[%c3_105, %c0_106, %c0_107] : memref<9x8x8xbf16, #tpu.memory_space<vmem>>, vector<1x8x8xbf16>
    %119 = vector.shape_cast %118 : vector<1x8x8xbf16> to vector<8x8xbf16>
    %cst_108 = arith.constant dense<0.000000e+00> : vector<32x8xf32>
    %120 = tpu.matmul %117, %119, %cst_108 {dimension_numbers = #tpu.dot_dimension_numbers<[1], [0], [0], [1], [0, 0, 1, 1], [], []>} : vector<32x8xbf16>, vector<8x8xbf16>, vector<32x8xf32> -> vector<32x8xf32>
    %121 = arith.addf %115, %120 : vector<32x8xf32>
    %c1_109 = arith.constant 1 : index
    %c1_110 = arith.constant 1 : index
    %c0_111 = arith.constant 0 : index
    %122 = vector.load %arg10[%c1_109, %c1_110, %c0_111] : memref<6x10x8xbf16, #tpu.memory_space<vmem>>, vector<4x8x8xbf16>
    %123 = vector.shape_cast %122 : vector<4x8x8xbf16> to vector<32x8xbf16>
    %c4_112 = arith.constant 4 : index
    %c0_113 = arith.constant 0 : index
    %c0_114 = arith.constant 0 : index
    %124 = vector.load %arg5[%c4_112, %c0_113, %c0_114] : memref<9x8x8xbf16, #tpu.memory_space<vmem>>, vector<1x8x8xbf16>
    %125 = vector.shape_cast %124 : vector<1x8x8xbf16> to vector<8x8xbf16>
    %cst_115 = arith.constant dense<0.000000e+00> : vector<32x8xf32>
    %126 = tpu.matmul %123, %125, %cst_115 {dimension_numbers = #tpu.dot_dimension_numbers<[1], [0], [0], [1], [0, 0, 1, 1], [], []>} : vector<32x8xbf16>, vector<8x8xbf16>, vector<32x8xf32> -> vector<32x8xf32>
    %127 = arith.addf %121, %126 : vector<32x8xf32>
    %c1_116 = arith.constant 1 : index
    %c2_117 = arith.constant 2 : index
    %c0_118 = arith.constant 0 : index
    %128 = vector.load %arg10[%c1_116, %c2_117, %c0_118] : memref<6x10x8xbf16, #tpu.memory_space<vmem>>, vector<4x8x8xbf16>
    %129 = vector.shape_cast %128 : vector<4x8x8xbf16> to vector<32x8xbf16>
    %c5_119 = arith.constant 5 : index
    %c0_120 = arith.constant 0 : index
    %c0_121 = arith.constant 0 : index
    %130 = vector.load %arg5[%c5_119, %c0_120, %c0_121] : memref<9x8x8xbf16, #tpu.memory_space<vmem>>, vector<1x8x8xbf16>
    %131 = vector.shape_cast %130 : vector<1x8x8xbf16> to vector<8x8xbf16>
    %cst_122 = arith.constant dense<0.000000e+00> : vector<32x8xf32>
    %132 = tpu.matmul %129, %131, %cst_122 {dimension_numbers = #tpu.dot_dimension_numbers<[1], [0], [0], [1], [0, 0, 1, 1], [], []>} : vector<32x8xbf16>, vector<8x8xbf16>, vector<32x8xf32> -> vector<32x8xf32>
    %133 = arith.addf %127, %132 : vector<32x8xf32>
    %c2_123 = arith.constant 2 : index
    %c0_124 = arith.constant 0 : index
    %c0_125 = arith.constant 0 : index
    %134 = vector.load %arg10[%c2_123, %c0_124, %c0_125] : memref<6x10x8xbf16, #tpu.memory_space<vmem>>, vector<4x8x8xbf16>
    %135 = vector.shape_cast %134 : vector<4x8x8xbf16> to vector<32x8xbf16>
    %c6_126 = arith.constant 6 : index
    %c0_127 = arith.constant 0 : index
    %c0_128 = arith.constant 0 : index
    %136 = vector.load %arg5[%c6_126, %c0_127, %c0_128] : memref<9x8x8xbf16, #tpu.memory_space<vmem>>, vector<1x8x8xbf16>
    %137 = vector.shape_cast %136 : vector<1x8x8xbf16> to vector<8x8xbf16>
    %cst_129 = arith.constant dense<0.000000e+00> : vector<32x8xf32>
    %138 = tpu.matmul %135, %137, %cst_129 {dimension_numbers = #tpu.dot_dimension_numbers<[1], [0], [0], [1], [0, 0, 1, 1], [], []>} : vector<32x8xbf16>, vector<8x8xbf16>, vector<32x8xf32> -> vector<32x8xf32>
    %139 = arith.addf %133, %138 : vector<32x8xf32>
    %c2_130 = arith.constant 2 : index
    %c1_131 = arith.constant 1 : index
    %c0_132 = arith.constant 0 : index
    %140 = vector.load %arg10[%c2_130, %c1_131, %c0_132] : memref<6x10x8xbf16, #tpu.memory_space<vmem>>, vector<4x8x8xbf16>
    %141 = vector.shape_cast %140 : vector<4x8x8xbf16> to vector<32x8xbf16>
    %c7_133 = arith.constant 7 : index
    %c0_134 = arith.constant 0 : index
    %c0_135 = arith.constant 0 : index
    %142 = vector.load %arg5[%c7_133, %c0_134, %c0_135] : memref<9x8x8xbf16, #tpu.memory_space<vmem>>, vector<1x8x8xbf16>
    %143 = vector.shape_cast %142 : vector<1x8x8xbf16> to vector<8x8xbf16>
    %cst_136 = arith.constant dense<0.000000e+00> : vector<32x8xf32>
    %144 = tpu.matmul %141, %143, %cst_136 {dimension_numbers = #tpu.dot_dimension_numbers<[1], [0], [0], [1], [0, 0, 1, 1], [], []>} : vector<32x8xbf16>, vector<8x8xbf16>, vector<32x8xf32> -> vector<32x8xf32>
    %145 = arith.addf %139, %144 : vector<32x8xf32>
    %c2_137 = arith.constant 2 : index
    %c2_138 = arith.constant 2 : index
    %c0_139 = arith.constant 0 : index
    %146 = vector.load %arg10[%c2_137, %c2_138, %c0_139] : memref<6x10x8xbf16, #tpu.memory_space<vmem>>, vector<4x8x8xbf16>
    %147 = vector.shape_cast %146 : vector<4x8x8xbf16> to vector<32x8xbf16>
    %c8_140 = arith.constant 8 : index
    %c0_141 = arith.constant 0 : index
    %c0_142 = arith.constant 0 : index
    %148 = vector.load %arg5[%c8_140, %c0_141, %c0_142] : memref<9x8x8xbf16, #tpu.memory_space<vmem>>, vector<1x8x8xbf16>
    %149 = vector.shape_cast %148 : vector<1x8x8xbf16> to vector<8x8xbf16>
    %cst_143 = arith.constant dense<0.000000e+00> : vector<32x8xf32>
    %150 = tpu.matmul %147, %149, %cst_143 {dimension_numbers = #tpu.dot_dimension_numbers<[1], [0], [0], [1], [0, 0, 1, 1], [], []>} : vector<32x8xbf16>, vector<8x8xbf16>, vector<32x8xf32> -> vector<32x8xf32>
    %151 = arith.addf %145, %150 : vector<32x8xf32>
    %c0_144 = arith.constant 0 : index
    %c0_145 = arith.constant 0 : index
    %152 = vector.load %arg6[%c0_144, %c0_145] : memref<1x8xf32, #tpu.memory_space<vmem>>, vector<1x8xf32>
    %153 = vector.broadcast %152 : vector<1x8xf32> to vector<32x8xf32>
    %154 = arith.addf %151, %153 : vector<32x8xf32>
    %c0_i32_146 = arith.constant 0 : i32
    %155 = arith.addi %0, %c0_i32_146 : i32
    %c1_i32_147 = arith.constant 1 : i32
    %156 = arith.addi %155, %c1_i32_147 : i32
    %c3_148 = arith.constant 3 : index
    %c0_149 = arith.constant 0 : index
    %157 = arith.index_cast %156 : i32 to index
    %c0_150 = arith.constant 0 : index
    %c0_151 = arith.constant 0 : index
    %158 = vector.load %arg2[%c3_148, %c0_149, %157, %c0_150, %c0_151] : memref<4x1x11x9x4xbf16, #tpu.memory_space<vmem>>, vector<1x1x4x8x4xbf16>
    %159 = vector.shape_cast %158 : vector<1x1x4x8x4xbf16> to vector<4x8x4xbf16>
    %160 = vector.shape_cast %159 : vector<4x8x4xbf16> to vector<32x4xbf16>
    %c0_152 = arith.constant 0 : index
    %c0_153 = arith.constant 0 : index
    %161 = vector.load %arg7[%c0_152, %c0_153] : memref<4x8xbf16, #tpu.memory_space<vmem>>, vector<4x8xbf16>
    %cst_154 = arith.constant dense<0.000000e+00> : vector<32x8xf32>
    %162 = tpu.matmul %160, %161, %cst_154 {dimension_numbers = #tpu.dot_dimension_numbers<[1], [0], [0], [1], [0, 0, 1, 1], [], []>} : vector<32x4xbf16>, vector<4x8xbf16>, vector<32x8xf32> -> vector<32x8xf32>
    %c0_155 = arith.constant 0 : index
    %c0_156 = arith.constant 0 : index
    %163 = vector.load %arg8[%c0_155, %c0_156] : memref<1x8xf32, #tpu.memory_space<vmem>>, vector<1x8xf32>
    %164 = vector.broadcast %163 : vector<1x8xf32> to vector<32x8xf32>
    %165 = arith.addf %162, %164 : vector<32x8xf32>
    %166 = arith.addf %154, %165 : vector<32x8xf32>
    %cst_157 = arith.constant 0.000000e+00 : f32
    %167 = vector.broadcast %cst_157 : f32 to vector<32x8xf32>
    %168 = arith.maximumf %166, %167 : vector<32x8xf32>
    %169 = vector.shape_cast %168 : vector<32x8xf32> to vector<1x4x8x8xf32>
    %c0_158 = arith.constant 0 : index
    %c0_159 = arith.constant 0 : index
    %c0_160 = arith.constant 0 : index
    %c0_161 = arith.constant 0 : index
    %170 = vector.load %arg9[%c0_158, %c0_159, %c0_160, %c0_161] : memref<1x4x8x8xf32, #tpu.memory_space<vmem>>, vector<1x4x8x8xf32>
    tpu.vector_store %arg9[%c0_158, %c0_159, %c0_160, %c0_161], %169 {strides = array<i32>} : memref<1x4x8x8xf32, #tpu.memory_space<vmem>>, vector<1x4x8x8xf32>,
    return
  }
  func.func @transform_0(%arg0: i32, %arg1: i32) -> (i32, i32, i32, i32, i32) {
    %c0_i32 = arith.constant 0 : i32
    %c0_i32_0 = arith.constant 0 : i32
    %c0_i32_1 = arith.constant 0 : i32
    %c0_i32_2 = arith.constant 0 : i32
    %c0_i32_3 = arith.constant 0 : i32
    return %c0_i32, %arg0, %c0_i32_0, %c0_i32_1, %c0_i32_2 : i32, i32, i32, i32, i32
  }
  func.func @transform_1(%arg0: i32, %arg1: i32) -> (i32, i32, i32) {
    %c0_i32 = arith.constant 0 : i32
    %c0_i32_0 = arith.constant 0 : i32
    %c0_i32_1 = arith.constant 0 : i32
    %c0_i32_2 = arith.constant 0 : i32
    return %c0_i32, %c0_i32_0, %c0_i32_1 : i32, i32, i32
  }
  func.func @transform_2(%arg0: i32, %arg1: i32) -> (i32, i32) {
    %c0_i32 = arith.constant 0 : i32
    %c0_i32_0 = arith.constant 0 : i32
    %c0_i32_1 = arith.constant 0 : i32
    return %c0_i32, %c0_i32_0 : i32, i32
  }
  func.func @transform_3(%arg0: i32, %arg1: i32) -> (i32, i32, i32) {
    %c0_i32 = arith.constant 0 : i32
    %c0_i32_0 = arith.constant 0 : i32
    %c0_i32_1 = arith.constant 0 : i32
    %c0_i32_2 = arith.constant 0 : i32
    return %c0_i32, %c0_i32_0, %c0_i32_1 : i32, i32, i32
  }
  func.func @transform_4(%arg0: i32, %arg1: i32) -> (i32, i32) {
    %c0_i32 = arith.constant 0 : i32
    %c0_i32_0 = arith.constant 0 : i32
    %c0_i32_1 = arith.constant 0 : i32
    return %c0_i32, %c0_i32_0 : i32, i32
  }
  func.func @transform_5(%arg0: i32, %arg1: i32) -> (i32, i32) {
    %c0_i32 = arith.constant 0 : i32
    %c0_i32_0 = arith.constant 0 : i32
    %c0_i32_1 = arith.constant 0 : i32
    return %c0_i32, %c0_i32_0 : i32, i32
  }
  func.func @transform_6(%arg0: i32, %arg1: i32) -> (i32, i32) {
    %c0_i32 = arith.constant 0 : i32
    %c0_i32_0 = arith.constant 0 : i32
    %c0_i32_1 = arith.constant 0 : i32
    return %c0_i32, %c0_i32_0 : i32, i32
  }
  func.func @transform_7(%arg0: i32, %arg1: i32) -> (i32, i32, i32, i32) {
    %c0_i32 = arith.constant 0 : i32
    %c0_i32_0 = arith.constant 0 : i32
    %c0_i32_1 = arith.constant 0 : i32
    return %arg0, %arg1, %c0_i32, %c0_i32_0 : i32, i32, i32, i32
  }
}

</mosaic_0001>

<llo_original>
// kernel: tpu_custom_call.1
$region0: #{tpu_custom_call.1}
  #allocation0 [shape = 'u32[]', space=smem, size = 0x4, offset = 0x4, fixed_abs, tag = 'smem constant byte address 0x4 - core index']
  #allocation1 [shape = 'u32[144,128]{1,0:T(1,128)}', space=vmem, size = 0x12000, scoped, tag = 'internal scratch']
  #allocation2 [shape = 'bf16[6,10,8]{2,1,0:T(8,128)(2,1)}', space=vmem, size = 0x6000, scoped, tag = 'scratch operand']
  %s0 = inlined_call_operand.vmem [shape: bf16[4,2,11,9,4], index: 0, kind: input, shape index: {}]
  %s1 = inlined_call_operand.vmem [shape: bf16[9,4,8], index: 1, kind: input, shape index: {}]
  %s2 = inlined_call_operand.vmem [shape: f32[1,8], index: 2, kind: input, shape index: {}]
  %s3 = inlined_call_operand.vmem [shape: bf16[9,8,8], index: 3, kind: input, shape index: {}]
  %s4 = inlined_call_operand.vmem [shape: f32[1,8], index: 4, kind: input, shape index: {}]
  %s5 = inlined_call_operand.vmem [shape: bf16[4,8], index: 5, kind: input, shape index: {}]
  %s6 = inlined_call_operand.vmem [shape: f32[1,8], index: 6, kind: input, shape index: {}]
  %s7 = inlined_call_operand.hbm [shape: f32[2,8,8,8], index: 7, kind: output, shape index: {}]
  %s8 = sld [smem:[#allocation0]]
  $region110: #{tpu_custom_call.1} parent=0
    _
  %s10 = ssub.s32 1, %s8
  %s11 = scalar_select 0, %s10, %s8
  $region1: #{tpu_custom_call.1} parent=0
    #allocation3 [shape = 'u8[360448]{0}', space=vmem, size = 0x58000, scoped, tag = 'input window, operand 0']
    #allocation4 [shape = 'u8[32768]{0}', space=vmem, size = 0x8000, scoped, tag = 'output window, operand 0']
    #allocation5 [shape = 's32[2]{0}', space=sflag, size = 0x8, scoped, tag = 'scoped memory for tpu_custom_call.1']
    %12 = vsyncpa [#allocation5], 0
    %s13 = scalar_lea.sflag [#allocation5], 1
    %14 = vsyncpa %s13, 0
    loop: start=0, step=1, limit=6
    $region2: #{tpu_custom_call.1} parent=1 // loop_pre_header
      _
    $region3: #{tpu_custom_call.1} parent=1 // loop_header
      %s16 = sphi 0, %s20
      %p17 = scmp.ge.s32.totalorder %s16, 6
      %s23 = sphi 0, %s35
      %s24 = sphi 0, %s31
      %s25 = sphi 0, %s23
      %s26 = sphi 0, %s24
      %s27 = sphi 0, %s25
      %s28 = sphi 0, %s26
      %s38 = sphi 0, %s40
      %s41 = sphi 0, %s38
      %s42 = sphi 0, %s41
      %s58 = sphi 0, %s42
      %s62 = sphi 0, %s62
      %s64 = sphi 0, %s62
      %s65 = sphi 0, %s64
      %s79 = sphi 0, %s65
      %s83 = sphi 0, %s83
      %s85 = sphi 0, %s83
      %s86 = sphi 0, %s85
      %s100 = sphi 0, %s86
      %s104 = sphi 0, %s104
      %s106 = sphi 0, %s104
      %s107 = sphi 0, %s106
      %s121 = sphi 0, %s107
      %s125 = sphi 0, %s125
      %s127 = sphi 0, %s125
      %s128 = sphi 0, %s127
      %s142 = sphi 0, %s128
      %s146 = sphi 0, %s146
      %s148 = sphi 0, %s146
      %s149 = sphi 0, %s148
      %s163 = sphi 0, %s149
      %s167 = sphi 0, %s167
      %s169 = sphi 0, %s167
      %s170 = sphi 0, %s169
      %s184 = sphi 0, %s170
      %s192 = sphi 0, %s194
      %s195 = sphi 0, %s192
      %s196 = sphi 0, %s195
      %s212 = sphi 0, %s196
    $region4: #{tpu_custom_call.1} parent=1 // loop_header_branch
      %19 = sbr.rel (%p17) target = $region8
    $region5: #{tpu_custom_call.1} parent=1 // loop_body
      %s21 = ssub.s32 %s16, 1
      %s22 = ssub.s32 %s16, 2
      %s29 = sadd.s32 1, %s24
      %p30 = scmp.ge.s32.totalorder %s29, 2
      %s31 = scalar_select %p30, 0, %s29
      %s32 = sadd.s32 1, %s23
      %s33 = scalar_select %p30, %s32, %s23
      %p34 = scmp.ge.s32.totalorder %s33, 2
      %s35 = scalar_select %p34, 0, %s33
      %s36 = ssub.s32 %s23, %s35
      %p37 = scmp.eq.s32.totalorder %s36, 0
      %s39 = sadd.s32 %s38, 1
      %s40 = scalar_select %p37, %s38, %s39
      %p43 = pneg %p37
      %p44 = scmp.eq.s32.totalorder %s16, 3
      %p45 = por %p43, %p44
      %p46 = scmp.ne.s32.totalorder %s38, %s41
      %p47 = scmp.eq.s32.totalorder %s16, 0
      %p48 = por %p46, %p47
      %p49 = scmp.ne.s32.totalorder %s38, %s41
      %p50 = scmp.eq.s32.totalorder %s21, 3
      %p51 = por %p49, %p50
      %p52 = scmp.ne.s32.totalorder %s41, %s42
      %p53 = scmp.eq.s32.totalorder %s21, 0
      %p54 = por %p52, %p53
      %p55 = scmp.ne.s32.totalorder %s41, %s42
      %p56 = scmp.eq.s32.totalorder %s22, 3
      %p57 = por %p55, %p56
      %p59 = scmp.ne.s32.totalorder %s42, %s58
      %p60 = scmp.eq.s32.totalorder %s22, 0
      %p61 = por %p59, %p60
      %s63 = sadd.s32 %s62, 1
      %p66 = scmp.eq.s32.totalorder %s16, 3
      %p67 = scmp.ne.s32.totalorder %s62, %s64
      %p68 = scmp.eq.s32.totalorder %s16, 0
      %p69 = por %p67, %p68
      %p70 = scmp.ne.s32.totalorder %s62, %s64
      %p71 = scmp.eq.s32.totalorder %s21, 3
      %p72 = por %p70, %p71
      %p73 = scmp.ne.s32.totalorder %s64, %s65
      %p74 = scmp.eq.s32.totalorder %s21, 0
      %p75 = por %p73, %p74
      %p76 = scmp.ne.s32.totalorder %s64, %s65
      %p77 = scmp.eq.s32.totalorder %s22, 3
      %p78 = por %p76, %p77
      %p80 = scmp.ne.s32.totalorder %s65, %s79
      %p81 = scmp.eq.s32.totalorder %s22, 0
      %p82 = por %p80, %p81
      %s84 = sadd.s32 %s83, 1
      %p87 = scmp.eq.s32.totalorder %s16, 3
      %p88 = scmp.ne.s32.totalorder %s83, %s85
      %p89 = scmp.eq.s32.totalorder %s16, 0
      %p90 = por %p88, %p89
      %p91 = scmp.ne.s32.totalorder %s83, %s85
      %p92 = scmp.eq.s32.totalorder %s21, 3
      %p93 = por %p91, %p92
      %p94 = scmp.ne.s32.totalorder %s85, %s86
      %p95 = scmp.eq.s32.totalorder %s21, 0
      %p96 = por %p94, %p95
      %p97 = scmp.ne.s32.totalorder %s85, %s86
      %p98 = scmp.eq.s32.totalorder %s22, 3
      %p99 = por %p97, %p98
      %p101 = scmp.ne.s32.totalorder %s86, %s100
      %p102 = scmp.eq.s32.totalorder %s22, 0
      %p103 = por %p101, %p102
      %s105 = sadd.s32 %s104, 1
      %p108 = scmp.eq.s32.totalorder %s16, 3
      %p109 = scmp.ne.s32.totalorder %s104, %s106
      %p110 = scmp.eq.s32.totalorder %s16, 0
      %p111 = por %p109, %p110
      %p112 = scmp.ne.s32.totalorder %s104, %s106
      %p113 = scmp.eq.s32.totalorder %s21, 3
      %p114 = por %p112, %p113
      %p115 = scmp.ne.s32.totalorder %s106, %s107
      %p116 = scmp.eq.s32.totalorder %s21, 0
      %p117 = por %p115, %p116
      %p118 = scmp.ne.s32.totalorder %s106, %s107
      %p119 = scmp.eq.s32.totalorder %s22, 3
      %p120 = por %p118, %p119
      %p122 = scmp.ne.s32.totalorder %s107, %s121
      %p123 = scmp.eq.s32.totalorder %s22, 0
      %p124 = por %p122, %p123
      %s126 = sadd.s32 %s125, 1
      %p129 = scmp.eq.s32.totalorder %s16, 3
      %p130 = scmp.ne.s32.totalorder %s125, %s127
      %p131 = scmp.eq.s32.totalorder %s16, 0
      %p132 = por %p130, %p131
      %p133 = scmp.ne.s32.totalorder %s125, %s127
      %p134 = scmp.eq.s32.totalorder %s21, 3
      %p135 = por %p133, %p134
      %p136 = scmp.ne.s32.totalorder %s127, %s128
      %p137 = scmp.eq.s32.totalorder %s21, 0
      %p138 = por %p136, %p137
      %p139 = scmp.ne.s32.totalorder %s127, %s128
      %p140 = scmp.eq.s32.totalorder %s22, 3
      %p141 = por %p139, %p140
      %p143 = scmp.ne.s32.totalorder %s128, %s142
      %p144 = scmp.eq.s32.totalorder %s22, 0
      %p145 = por %p143, %p144
      %s147 = sadd.s32 %s146, 1
      %p150 = scmp.eq.s32.totalorder %s16, 3
      %p151 = scmp.ne.s32.totalorder %s146, %s148
      %p152 = scmp.eq.s32.totalorder %s16, 0
      %p153 = por %p151, %p152
      %p154 = scmp.ne.s32.totalorder %s146, %s148
      %p155 = scmp.eq.s32.totalorder %s21, 3
      %p156 = por %p154, %p155
      %p157 = scmp.ne.s32.totalorder %s148, %s149
      %p158 = scmp.eq.s32.totalorder %s21, 0
      %p159 = por %p157, %p158
      %p160 = scmp.ne.s32.totalorder %s148, %s149
      %p161 = scmp.eq.s32.totalorder %s22, 3
      %p162 = por %p160, %p161
      %p164 = scmp.ne.s32.totalorder %s149, %s163
      %p165 = scmp.eq.s32.totalorder %s22, 0
      %p166 = por %p164, %p165
      %s168 = sadd.s32 %s167, 1
      %p171 = scmp.eq.s32.totalorder %s16, 3
      %p172 = scmp.ne.s32.totalorder %s167, %s169
      %p173 = scmp.eq.s32.totalorder %s16, 0
      %p174 = por %p172, %p173
      %p175 = scmp.ne.s32.totalorder %s167, %s169
      %p176 = scmp.eq.s32.totalorder %s21, 3
      %p177 = por %p175, %p176
      %p178 = scmp.ne.s32.totalorder %s169, %s170
      %p179 = scmp.eq.s32.totalorder %s21, 0
      %p180 = por %p178, %p179
      %p181 = scmp.ne.s32.totalorder %s169, %s170
      %p182 = scmp.eq.s32.totalorder %s22, 3
      %p183 = por %p181, %p182
      %p185 = scmp.ne.s32.totalorder %s170, %s184
      %p186 = scmp.eq.s32.totalorder %s22, 0
      %p187 = por %p185, %p186
      %s188 = ssub.s32 %s23, %s35
      %s189 = ssub.s32 %s24, %s31
      %s190 = sor.u32 %s188, %s189
      %p191 = scmp.eq.s32.totalorder %s190, 0
      %s193 = sadd.s32 %s192, 1
      %s194 = scalar_select %p191, %s192, %s193
      %p197 = pneg %p191
      %p198 = scmp.eq.s32.totalorder %s16, 3
      %p199 = por %p197, %p198
      %p200 = scmp.ne.s32.totalorder %s192, %s195
      %p201 = scmp.eq.s32.totalorder %s16, 0
      %p202 = por %p200, %p201
      %p203 = scmp.ne.s32.totalorder %s192, %s195
      %p204 = scmp.eq.s32.totalorder %s21, 3
      %p205 = por %p203, %p204
      %p206 = scmp.ne.s32.totalorder %s195, %s196
      %p207 = scmp.eq.s32.totalorder %s21, 0
      %p208 = por %p206, %p207
      %p209 = scmp.ne.s32.totalorder %s195, %s196
      %p210 = scmp.eq.s32.totalorder %s22, 3
      %p211 = por %p209, %p210
      %p213 = scmp.ne.s32.totalorder %s196, %s212
      %p214 = scmp.eq.s32.totalorder %s22, 0
      %p215 = por %p213, %p214
      %p216 = scmp.le.s32.totalorder 1, %s16
      %p217 = scmp.lt.s32.totalorder %s16, 5
      %p218 = pnand %p216, %p217
      %p219 = pneg %p218
      // Predicated region
      $region9: #{tpu_custom_call.1} parent=5 // pred_check
        _
      $region10: #{tpu_custom_call.1} parent=5 // pred_check_branch
        %221 = sbr.rel (%p218) target = $region12
      $region11: #{tpu_custom_call.1} parent=5 // pred_region
        %s222 = ssub.s32 %s16, 1
        // Predicated region
        $region13: #{tpu_custom_call.1} parent=11 // pred_check
          %p223 = pneg %p75
        $region14: #{tpu_custom_call.1} parent=11 // pred_check_branch
          %225 = sbr.rel (%p223) target = $region16
        $region15: #{tpu_custom_call.1} parent=11 // pred_region
          _
        $region16: #{tpu_custom_call.1} parent=11 // pred_fallthru
          _
        // Predicated region
        $region17: #{tpu_custom_call.1} parent=11 // pred_check
          %p226 = pneg %p96
        $region18: #{tpu_custom_call.1} parent=11 // pred_check_branch
          %228 = sbr.rel (%p226) target = $region20
        $region19: #{tpu_custom_call.1} parent=11 // pred_region
          _
        $region20: #{tpu_custom_call.1} parent=11 // pred_fallthru
          _
        // Predicated region
        $region21: #{tpu_custom_call.1} parent=11 // pred_check
          %p229 = pneg %p117
        $region22: #{tpu_custom_call.1} parent=11 // pred_check_branch
          %231 = sbr.rel (%p229) target = $region24
        $region23: #{tpu_custom_call.1} parent=11 // pred_region
          _
        $region24: #{tpu_custom_call.1} parent=11 // pred_fallthru
          _
        // Predicated region
        $region25: #{tpu_custom_call.1} parent=11 // pred_check
          %p232 = pneg %p138
        $region26: #{tpu_custom_call.1} parent=11 // pred_check_branch
          %234 = sbr.rel (%p232) target = $region28
        $region27: #{tpu_custom_call.1} parent=11 // pred_region
          _
        $region28: #{tpu_custom_call.1} parent=11 // pred_fallthru
          _
        // Predicated region
        $region29: #{tpu_custom_call.1} parent=11 // pred_check
          %p235 = pneg %p159
        $region30: #{tpu_custom_call.1} parent=11 // pred_check_branch
          %237 = sbr.rel (%p235) target = $region32
        $region31: #{tpu_custom_call.1} parent=11 // pred_region
          _
        $region32: #{tpu_custom_call.1} parent=11 // pred_fallthru
          _
        // Predicated region
        $region33: #{tpu_custom_call.1} parent=11 // pred_check
          %p238 = pneg %p180
        $region34: #{tpu_custom_call.1} parent=11 // pred_check_branch
          %240 = sbr.rel (%p238) target = $region36
        $region35: #{tpu_custom_call.1} parent=11 // pred_region
          _
        $region36: #{tpu_custom_call.1} parent=11 // pred_fallthru
          _
      $region12: #{tpu_custom_call.1} parent=5 // pred_fallthru
        _
      %p241 = scmp.lt.s32.totalorder %s16, 4
      // Predicated region
      $region37: #{tpu_custom_call.1} parent=5 // pred_check
        %p242 = pneg %p241
      $region38: #{tpu_custom_call.1} parent=5 // pred_check_branch
        %244 = sbr.rel (%p242) target = $region40
      $region39: #{tpu_custom_call.1} parent=5 // pred_region
        // Predicated region
        $region41: #{tpu_custom_call.1} parent=39 // pred_check
          %p245 = pneg %p48
        $region42: #{tpu_custom_call.1} parent=39 // pred_check_branch
          %247 = sbr.rel (%p245) target = $region44
        $region43: #{tpu_custom_call.1} parent=39 // pred_region
          %s248 = sand.u32 %s38, 1
          %s249 = sand.u32 %s38, 1
          %s250 = smul.addr %s249, 352
          %s251 = scalar_lea.vmem [#allocation3], %s250
          %s252 = smul.addr %s23, 22
          %s253 = smul.addr %s252, 4
          %s254 = scalar_lea.vmem %s0, %s253
          // Predicated region
          $region45: #{tpu_custom_call.1} parent=43 // pred_check
            _
          $region46: #{tpu_custom_call.1} parent=43 // pred_check_branch
            %256 = sbr.rel (0) target = $region48
          $region47: #{tpu_custom_call.1} parent=43 // pred_region
            // Predicated region
            $region49: #{tpu_custom_call.1} parent=47 // pred_check
              _
            $region50: #{tpu_custom_call.1} parent=47 // pred_check_branch
              %258 = sbr.rel target = $region52
            $region51: #{tpu_custom_call.1} parent=47 // pred_region
              // Predicated region
              $region64: #{tpu_custom_call.1} parent=51 // pred_check
                _
              $region65: #{tpu_custom_call.1} parent=51 // pred_check_branch
                %448 = sbr.rel (0) target = $region67
              $region66: #{tpu_custom_call.1} parent=51 // pred_region
                loop: start=0, step=1, limit=1
                $region68: #{tpu_custom_call.1} parent=66 // loop_pre_header
                  _
                $region69: #{tpu_custom_call.1} parent=66 // loop_header
                  %s450 = sphi 0, %s454
                  %p451 = scmp.ge.s32.totalorder %s450, 1
                  %s455 = sphi %s254, %s254
                  %s456 = sphi %s251, %s251
                $region70: #{tpu_custom_call.1} parent=66 // loop_header_branch
                  %453 = sbr.rel (%p451) target = $region74
                $region71: #{tpu_custom_call.1} parent=66 // loop_body
                  _
                $region72: #{tpu_custom_call.1} parent=66 // loop_footer
                  %s454 = sadd.s32 1, %s450
                $region73: #{tpu_custom_call.1} parent=66 // loop_footer_branch
                  %449 = sbr.rel target = $region69
                $region74: #{tpu_custom_call.1} parent=66 // loop_exit
                  _
                %s458 = ssub.s32 16, 1
                loop: start=0, step=1, limit=1
                $region75: #{tpu_custom_call.1} parent=66 // loop_pre_header
                  _
                $region76: #{tpu_custom_call.1} parent=66 // loop_header
                  %s460 = sphi 0, %s464
                  %p461 = scmp.ge.s32.totalorder %s460, 1
                  %s465 = sphi %s254, %s254
                  %s466 = sphi %s251, %s251
                $region77: #{tpu_custom_call.1} parent=66 // loop_header_branch
                  %463 = sbr.rel (%p461) target = $region81
                $region78: #{tpu_custom_call.1} parent=66 // loop_body
                  %v467 = vld [vmem:[%s465] sm:%s458]
                  %468 = vst [vmem:[%s466] sm:%s458] %v467
                  %v469 = vld [vmem:[%s465 + $0x4] sm:%s458]
                  %470 = vst [vmem:[%s466 + $0x4] sm:%s458] %v469
                  %v471 = vld [vmem:[%s465 + $0x8] sm:%s458]
                  %472 = vst [vmem:[%s466 + $0x8] sm:%s458] %v471
                  %v473 = vld [vmem:[%s465 + $0xc] sm:%s458]
                  %474 = vst [vmem:[%s466 + $0xc] sm:%s458] %v473
                  %v475 = vld [vmem:[%s465 + $0x10] sm:%s458]
                  %476 = vst [vmem:[%s466 + $0x10] sm:%s458] %v475
                  %v477 = vld [vmem:[%s465 + $0x14] sm:%s458]
                  %478 = vst [vmem:[%s466 + $0x14] sm:%s458] %v477
                  %v479 = vld [vmem:[%s465 + $0x18] sm:%s458]
                  %480 = vst [vmem:[%s466 + $0x18] sm:%s458] %v479
                  %v481 = vld [vmem:[%s465 + $0x1c] sm:%s458]
                  %482 = vst [vmem:[%s466 + $0x1c] sm:%s458] %v481
                  %v483 = vld [vmem:[%s465 + $0x20] sm:%s458]
                  %484 = vst [vmem:[%s466 + $0x20] sm:%s458] %v483
                  %v485 = vld [vmem:[%s465 + $0x24] sm:%s458]
                  %486 = vst [vmem:[%s466 + $0x24] sm:%s458] %v485
                  %v487 = vld [vmem:[%s465 + $0x28] sm:%s458]
                  %488 = vst [vmem:[%s466 + $0x28] sm:%s458] %v487
                  %v489 = vld [vmem:[%s465 + $0x2c] sm:%s458]
                  %490 = vst [vmem:[%s466 + $0x2c] sm:%s458] %v489
                  %v491 = vld [vmem:[%s465 + $0x30] sm:%s458]
                  %492 = vst [vmem:[%s466 + $0x30] sm:%s458] %v491
                  %v493 = vld [vmem:[%s465 + $0x34] sm:%s458]
                  %494 = vst [vmem:[%s466 + $0x34] sm:%s458] %v493
                  %v495 = vld [vmem:[%s465 + $0x38] sm:%s458]
                  %496 = vst [vmem:[%s466 + $0x38] sm:%s458] %v495
                  %v497 = vld [vmem:[%s465 + $0x3c] sm:%s458]
                  %498 = vst [vmem:[%s466 + $0x3c] sm:%s458] %v497
                  %v499 = vld [vmem:[%s465 + $0x40] sm:%s458]
                  %500 = vst [vmem:[%s466 + $0x40] sm:%s458] %v499
                  %v501 = vld [vmem:[%s465 + $0x44] sm:%s458]
                  %502 = vst [vmem:[%s466 + $0x44] sm:%s458] %v501
                  %v503 = vld [vmem:[%s465 + $0x48] sm:%s458]
                  %504 = vst [vmem:[%s466 + $0x48] sm:%s458] %v503
                  %v505 = vld [vmem:[%s465 + $0x4c] sm:%s458]
                  %506 = vst [vmem:[%s466 + $0x4c] sm:%s458] %v505
                  %v507 = vld [vmem:[%s465 + $0x50] sm:%s458]
                  %508 = vst [vmem:[%s466 + $0x50] sm:%s458] %v507
                  %v509 = vld [vmem:[%s465 + $0x54] sm:%s458]
                  %510 = vst [vmem:[%s466 + $0x54] sm:%s458] %v509
                  %v511 = vld [vmem:[%s465 + $0xb0] sm:%s458]
                  %512 = vst [vmem:[%s466 + $0x58] sm:%s458] %v511
                  %v513 = vld [vmem:[%s465 + $0xb4] sm:%s458]
                  %514 = vst [vmem:[%s466 + $0x5c] sm:%s458] %v513
                  %v515 = vld [vmem:[%s465 + $0xb8] sm:%s458]
                  %516 = vst [vmem:[%s466 + $0x60] sm:%s458] %v515
                  %v517 = vld [vmem:[%s465 + $0xbc] sm:%s458]
                  %518 = vst [vmem:[%s466 + $0x64] sm:%s458] %v517
                  %v519 = vld [vmem:[%s465 + $0xc0] sm:%s458]
                  %520 = vst [vmem:[%s466 + $0x68] sm:%s458] %v519
                  %v521 = vld [vmem:[%s465 + $0xc4] sm:%s458]
                  %522 = vst [vmem:[%s466 + $0x6c] sm:%s458] %v521
                  %v523 = vld [vmem:[%s465 + $0xc8] sm:%s458]
                  %524 = vst [vmem:[%s466 + $0x70] sm:%s458] %v523
                  %v525 = vld [vmem:[%s465 + $0xcc] sm:%s458]
                  %526 = vst [vmem:[%s466 + $0x74] sm:%s458] %v525
                  %v527 = vld [vmem:[%s465 + $0xd0] sm:%s458]
                  %528 = vst [vmem:[%s466 + $0x78] sm:%s458] %v527
                  %v529 = vld [vmem:[%s465 + $0xd4] sm:%s458]
                  %530 = vst [vmem:[%s466 + $0x7c] sm:%s458] %v529
                  %v531 = vld [vmem:[%s465 + $0xd8] sm:%s458]
                  %532 = vst [vmem:[%s466 + $0x80] sm:%s458] %v531
                  %v533 = vld [vmem:[%s465 + $0xdc] sm:%s458]
                  %534 = vst [vmem:[%s466 + $0x84] sm:%s458] %v533
                  %v535 = vld [vmem:[%s465 + $0xe0] sm:%s458]
                  %536 = vst [vmem:[%s466 + $0x88] sm:%s458] %v535
                  %v537 = vld [vmem:[%s465 + $0xe4] sm:%s458]
                  %538 = vst [vmem:[%s466 + $0x8c] sm:%s458] %v537
                  %v539 = vld [vmem:[%s465 + $0xe8] sm:%s458]
                  %540 = vst [vmem:[%s466 + $0x90] sm:%s458] %v539
                  %v541 = vld [vmem:[%s465 + $0xec] sm:%s458]
                  %542 = vst [vmem:[%s466 + $0x94] sm:%s458] %v541
                  %v543 = vld [vmem:[%s465 + $0xf0] sm:%s458]
                  %544 = vst [vmem:[%s466 + $0x98] sm:%s458] %v543
                  %v545 = vld [vmem:[%s465 + $0xf4] sm:%s458]
                  %546 = vst [vmem:[%s466 + $0x9c] sm:%s458] %v545
                  %v547 = vld [vmem:[%s465 + $0xf8] sm:%s458]
                  %548 = vst [vmem:[%s466 + $0xa0] sm:%s458] %v547
                  %v549 = vld [vmem:[%s465 + $0xfc] sm:%s458]
                  %550 = vst [vmem:[%s466 + $0xa4] sm:%s458] %v549
                  %v551 = vld [vmem:[%s465 + $0x100] sm:%s458]
                  %552 = vst [vmem:[%s466 + $0xa8] sm:%s458] %v551
                  %v553 = vld [vmem:[%s465 + $0x104] sm:%s458]
                  %554 = vst [vmem:[%s466 + $0xac] sm:%s458] %v553
                  %v555 = vld [vmem:[%s465 + $0x160] sm:%s458]
                  %556 = vst [vmem:[%s466 + $0xb0] sm:%s458] %v555
                  %v557 = vld [vmem:[%s465 + $0x164] sm:%s458]
                  %558 = vst [vmem:[%s466 + $0xb4] sm:%s458] %v557
                  %v559 = vld [vmem:[%s465 + $0x168] sm:%s458]
                  %560 = vst [vmem:[%s466 + $0xb8] sm:%s458] %v559
                  %v561 = vld [vmem:[%s465 + $0x16c] sm:%s458]
                  %562 = vst [vmem:[%s466 + $0xbc] sm:%s458] %v561
                  %v563 = vld [vmem:[%s465 + $0x170] sm:%s458]
                  %564 = vst [vmem:[%s466 + $0xc0] sm:%s458] %v563
                  %v565 = vld [vmem:[%s465 + $0x174] sm:%s458]
                  %566 = vst [vmem:[%s466 + $0xc4] sm:%s458] %v565
                  %v567 = vld [vmem:[%s465 + $0x178] sm:%s458]
                  %568 = vst [vmem:[%s466 + $0xc8] sm:%s458] %v567
                  %v569 = vld [vmem:[%s465 + $0x17c] sm:%s458]
                  %570 = vst [vmem:[%s466 + $0xcc] sm:%s458] %v569
                  %v571 = vld [vmem:[%s465 + $0x180] sm:%s458]
                  %572 = vst [vmem:[%s466 + $0xd0] sm:%s458] %v571
                  %v573 = vld [vmem:[%s465 + $0x184] sm:%s458]
                  %574 = vst [vmem:[%s466 + $0xd4] sm:%s458] %v573
                  %v575 = vld [vmem:[%s465 + $0x188] sm:%s458]
                  %576 = vst [vmem:[%s466 + $0xd8] sm:%s458] %v575
                  %v577 = vld [vmem:[%s465 + $0x18c] sm:%s458]
                  %578 = vst [vmem:[%s466 + $0xdc] sm:%s458] %v577
                  %v579 = vld [vmem:[%s465 + $0x190] sm:%s458]
                  %580 = vst [vmem:[%s466 + $0xe0] sm:%s458] %v579
                  %v581 = vld [vmem:[%s465 + $0x194] sm:%s458]
                  %582 = vst [vmem:[%s466 + $0xe4] sm:%s458] %v581
                  %v583 = vld [vmem:[%s465 + $0x198] sm:%s458]
                  %584 = vst [vmem:[%s466 + $0xe8] sm:%s458] %v583
                  %v585 = vld [vmem:[%s465 + $0x19c] sm:%s458]
                  %586 = vst [vmem:[%s466 + $0xec] sm:%s458] %v585
                  %v587 = vld [vmem:[%s465 + $0x1a0] sm:%s458]
                  %588 = vst [vmem:[%s466 + $0xf0] sm:%s458] %v587
                  %v589 = vld [vmem:[%s465 + $0x1a4] sm:%s458]
                  %590 = vst [vmem:[%s466 + $0xf4] sm:%s458] %v589
                  %v591 = vld [vmem:[%s465 + $0x1a8] sm:%s458]
                  %592 = vst [vmem:[%s466 + $0xf8] sm:%s458] %v591
                  %v593 = vld [vmem:[%s465 + $0x1ac] sm:%s458]
                  %594 = vst [vmem:[%s466 + $0xfc] sm:%s458] %v593
                  %v595 = vld [vmem:[%s465 + $0x1b0] sm:%s458]
                  %596 = vst [vmem:[%s466 + $0x100] sm:%s458] %v595
                  %v597 = vld [vmem:[%s465 + $0x1b4] sm:%s458]
                  %598 = vst [vmem:[%s466 + $0x104] sm:%s458] %v597
                  %v599 = vld [vmem:[%s465 + $0x210] sm:%s458]
                  %600 = vst [vmem:[%s466 + $0x108] sm:%s458] %v599
                  %v601 = vld [vmem:[%s465 + $0x214] sm:%s458]
                  %602 = vst [vmem:[%s466 + $0x10c] sm:%s458] %v601
                  %v603 = vld [vmem:[%s465 + $0x218] sm:%s458]
                  %604 = vst [vmem:[%s466 + $0x110] sm:%s458] %v603
                  %v605 = vld [vmem:[%s465 + $0x21c] sm:%s458]
                  %606 = vst [vmem:[%s466 + $0x114] sm:%s458] %v605
                  %v607 = vld [vmem:[%s465 + $0x220] sm:%s458]
                  %608 = vst [vmem:[%s466 + $0x118] sm:%s458] %v607
                  %v609 = vld [vmem:[%s465 + $0x224] sm:%s458]
                  %610 = vst [vmem:[%s466 + $0x11c] sm:%s458] %v609
                  %v611 = vld [vmem:[%s465 + $0x228] sm:%s458]
                  %612 = vst [vmem:[%s466 + $0x120] sm:%s458] %v611
                  %v613 = vld [vmem:[%s465 + $0x22c] sm:%s458]
                  %614 = vst [vmem:[%s466 + $0x124] sm:%s458] %v613
                  %v615 = vld [vmem:[%s465 + $0x230] sm:%s458]
                  %616 = vst [vmem:[%s466 + $0x128] sm:%s458] %v615
                  %v617 = vld [vmem:[%s465 + $0x234] sm:%s458]
                  %618 = vst [vmem:[%s466 + $0x12c] sm:%s458] %v617
                  %v619 = vld [vmem:[%s465 + $0x238] sm:%s458]
                  %620 = vst [vmem:[%s466 + $0x130] sm:%s458] %v619
                  %v621 = vld [vmem:[%s465 + $0x23c] sm:%s458]
                  %622 = vst [vmem:[%s466 + $0x134] sm:%s458] %v621
                  %v623 = vld [vmem:[%s465 + $0x240] sm:%s458]
                  %624 = vst [vmem:[%s466 + $0x138] sm:%s458] %v623
                  %v625 = vld [vmem:[%s465 + $0x244] sm:%s458]
                  %626 = vst [vmem:[%s466 + $0x13c] sm:%s458] %v625
                  %v627 = vld [vmem:[%s465 + $0x248] sm:%s458]
                  %628 = vst [vmem:[%s466 + $0x140] sm:%s458] %v627
                  %v629 = vld [vmem:[%s465 + $0x24c] sm:%s458]
                  %630 = vst [vmem:[%s466 + $0x144] sm:%s458] %v629
                  %v631 = vld [vmem:[%s465 + $0x250] sm:%s458]
                  %632 = vst [vmem:[%s466 + $0x148] sm:%s458] %v631
                  %v633 = vld [vmem:[%s465 + $0x254] sm:%s458]
                  %634 = vst [vmem:[%s466 + $0x14c] sm:%s458] %v633
                  %v635 = vld [vmem:[%s465 + $0x258] sm:%s458]
                  %636 = vst [vmem:[%s466 + $0x150] sm:%s458] %v635
                  %v637 = vld [vmem:[%s465 + $0x25c] sm:%s458]
                  %638 = vst [vmem:[%s466 + $0x154] sm:%s458] %v637
                  %v639 = vld [vmem:[%s465 + $0x260] sm:%s458]
                  %640 = vst [vmem:[%s466 + $0x158] sm:%s458] %v639
                  %v641 = vld [vmem:[%s465 + $0x264] sm:%s458]
                  %642 = vst [vmem:[%s466 + $0x15c] sm:%s458] %v641
                $region79: #{tpu_custom_call.1} parent=66 // loop_footer
                  %s464 = sadd.s32 1, %s460
                $region80: #{tpu_custom_call.1} parent=66 // loop_footer_branch
                  %459 = sbr.rel target = $region76
                $region81: #{tpu_custom_call.1} parent=66 // loop_exit
                  _
              $region67: #{tpu_custom_call.1} parent=51 // pred_fallthru
                _
            $region52: #{tpu_custom_call.1} parent=47 // pred_fallthru
              _
            // Predicated region
            $region53: #{tpu_custom_call.1} parent=47 // pred_check
              _
            $region54: #{tpu_custom_call.1} parent=47 // pred_check_branch
              %260 = sbr.rel (0) target = $region56
            $region55: #{tpu_custom_call.1} parent=47 // pred_region
              %s262 = ssub.s32 16, 1
              loop: start=0, step=1, limit=1
              $region57: #{tpu_custom_call.1} parent=55 // loop_pre_header
                _
              $region58: #{tpu_custom_call.1} parent=55 // loop_header
                %s264 = sphi 0, %s268
                %p265 = scmp.ge.s32.totalorder %s264, 1
                %s269 = sphi %s254, %s254
                %s270 = sphi %s251, %s251
              $region59: #{tpu_custom_call.1} parent=55 // loop_header_branch
                %267 = sbr.rel (%p265) target = $region63
              $region60: #{tpu_custom_call.1} parent=55 // loop_body
                %v271 = vld [vmem:[%s269] sm:%s262]
                %272 = vst [vmem:[%s270] sm:%s262] %v271
                %v273 = vld [vmem:[%s269 + $0x4] sm:%s262]
                %274 = vst [vmem:[%s270 + $0x4] sm:%s262] %v273
                %v275 = vld [vmem:[%s269 + $0x8] sm:%s262]
                %276 = vst [vmem:[%s270 + $0x8] sm:%s262] %v275
                %v277 = vld [vmem:[%s269 + $0xc] sm:%s262]
                %278 = vst [vmem:[%s270 + $0xc] sm:%s262] %v277
                %v279 = vld [vmem:[%s269 + $0x10] sm:%s262]
                %280 = vst [vmem:[%s270 + $0x10] sm:%s262] %v279
                %v281 = vld [vmem:[%s269 + $0x14] sm:%s262]
                %282 = vst [vmem:[%s270 + $0x14] sm:%s262] %v281
                %v283 = vld [vmem:[%s269 + $0x18] sm:%s262]
                %284 = vst [vmem:[%s270 + $0x18] sm:%s262] %v283
                %v285 = vld [vmem:[%s269 + $0x1c] sm:%s262]
                %286 = vst [vmem:[%s270 + $0x1c] sm:%s262] %v285
                %v287 = vld [vmem:[%s269 + $0x20] sm:%s262]
                %288 = vst [vmem:[%s270 + $0x20] sm:%s262] %v287
                %v289 = vld [vmem:[%s269 + $0x24] sm:%s262]
                %290 = vst [vmem:[%s270 + $0x24] sm:%s262] %v289
                %v291 = vld [vmem:[%s269 + $0x28] sm:%s262]
                %292 = vst [vmem:[%s270 + $0x28] sm:%s262] %v291
                %v293 = vld [vmem:[%s269 + $0x2c] sm:%s262]
                %294 = vst [vmem:[%s270 + $0x2c] sm:%s262] %v293
                %v295 = vld [vmem:[%s269 + $0x30] sm:%s262]
                %296 = vst [vmem:[%s270 + $0x30] sm:%s262] %v295
                %v297 = vld [vmem:[%s269 + $0x34] sm:%s262]
                %298 = vst [vmem:[%s270 + $0x34] sm:%s262] %v297
                %v299 = vld [vmem:[%s269 + $0x38] sm:%s262]
                %300 = vst [vmem:[%s270 + $0x38] sm:%s262] %v299
                %v301 = vld [vmem:[%s269 + $0x3c] sm:%s262]
                %302 = vst [vmem:[%s270 + $0x3c] sm:%s262] %v301
                %v303 = vld [vmem:[%s269 + $0x40] sm:%s262]
                %304 = vst [vmem:[%s270 + $0x40] sm:%s262] %v303
                %v305 = vld [vmem:[%s269 + $0x44] sm:%s262]
                %306 = vst [vmem:[%s270 + $0x44] sm:%s262] %v305
                %v307 = vld [vmem:[%s269 + $0x48] sm:%s262]
                %308 = vst [vmem:[%s270 + $0x48] sm:%s262] %v307
                %v309 = vld [vmem:[%s269 + $0x4c] sm:%s262]
                %310 = vst [vmem:[%s270 + $0x4c] sm:%s262] %v309
                %v311 = vld [vmem:[%s269 + $0x50] sm:%s262]
                %312 = vst [vmem:[%s270 + $0x50] sm:%s262] %v311
                %v313 = vld [vmem:[%s269 + $0x54] sm:%s262]
                %314 = vst [vmem:[%s270 + $0x54] sm:%s262] %v313
                %v315 = vld [vmem:[%s269 + $0xb0] sm:%s262]
                %316 = vst [vmem:[%s270 + $0x58] sm:%s262] %v315
                %v317 = vld [vmem:[%s269 + $0xb4] sm:%s262]
                %318 = vst [vmem:[%s270 + $0x5c] sm:%s262] %v317
                %v319 = vld [vmem:[%s269 + $0xb8] sm:%s262]
                %320 = vst [vmem:[%s270 + $0x60] sm:%s262] %v319
                %v321 = vld [vmem:[%s269 + $0xbc] sm:%s262]
                %322 = vst [vmem:[%s270 + $0x64] sm:%s262] %v321
                %v323 = vld [vmem:[%s269 + $0xc0] sm:%s262]
                %324 = vst [vmem:[%s270 + $0x68] sm:%s262] %v323
                %v325 = vld [vmem:[%s269 + $0xc4] sm:%s262]
                %326 = vst [vmem:[%s270 + $0x6c] sm:%s262] %v325
                %v327 = vld [vmem:[%s269 + $0xc8] sm:%s262]
                %328 = vst [vmem:[%s270 + $0x70] sm:%s262] %v327
                %v329 = vld [vmem:[%s269 + $0xcc] sm:%s262]
                %330 = vst [vmem:[%s270 + $0x74] sm:%s262] %v329
                %v331 = vld [vmem:[%s269 + $0xd0] sm:%s262]
                %332 = vst [vmem:[%s270 + $0x78] sm:%s262] %v331
                %v333 = vld [vmem:[%s269 + $0xd4] sm:%s262]
                %334 = vst [vmem:[%s270 + $0x7c] sm:%s262] %v333
                %v335 = vld [vmem:[%s269 + $0xd8] sm:%s262]
                %336 = vst [vmem:[%s270 + $0x80] sm:%s262] %v335
                %v337 = vld [vmem:[%s269 + $0xdc] sm:%s262]
                %338 = vst [vmem:[%s270 + $0x84] sm:%s262] %v337
                %v339 = vld [vmem:[%s269 + $0xe0] sm:%s262]
                %340 = vst [vmem:[%s270 + $0x88] sm:%s262] %v339
                %v341 = vld [vmem:[%s269 + $0xe4] sm:%s262]
                %342 = vst [vmem:[%s270 + $0x8c] sm:%s262] %v341
                %v343 = vld [vmem:[%s269 + $0xe8] sm:%s262]
                %344 = vst [vmem:[%s270 + $0x90] sm:%s262] %v343
                %v345 = vld [vmem:[%s269 + $0xec] sm:%s262]
                %346 = vst [vmem:[%s270 + $0x94] sm:%s262] %v345
                %v347 = vld [vmem:[%s269 + $0xf0] sm:%s262]
                %348 = vst [vmem:[%s270 + $0x98] sm:%s262] %v347
                %v349 = vld [vmem:[%s269 + $0xf4] sm:%s262]
                %350 = vst [vmem:[%s270 + $0x9c] sm:%s262] %v349
                %v351 = vld [vmem:[%s269 + $0xf8] sm:%s262]
                %352 = vst [vmem:[%s270 + $0xa0] sm:%s262] %v351
                %v353 = vld [vmem:[%s269 + $0xfc] sm:%s262]
                %354 = vst [vmem:[%s270 + $0xa4] sm:%s262] %v353
                %v355 = vld [vmem:[%s269 + $0x100] sm:%s262]
                %356 = vst [vmem:[%s270 + $0xa8] sm:%s262] %v355
                %v357 = vld [vmem:[%s269 + $0x104] sm:%s262]
                %358 = vst [vmem:[%s270 + $0xac] sm:%s262] %v357
                %v359 = vld [vmem:[%s269 + $0x160] sm:%s262]
                %360 = vst [vmem:[%s270 + $0xb0] sm:%s262] %v359
                %v361 = vld [vmem:[%s269 + $0x164] sm:%s262]
                %362 = vst [vmem:[%s270 + $0xb4] sm:%s262] %v361
                %v363 = vld [vmem:[%s269 + $0x168] sm:%s262]
                %364 = vst [vmem:[%s270 + $0xb8] sm:%s262] %v363
                %v365 = vld [vmem:[%s269 + $0x16c] sm:%s262]
                %366 = vst [vmem:[%s270 + $0xbc] sm:%s262] %v365
                %v367 = vld [vmem:[%s269 + $0x170] sm:%s262]
                %368 = vst [vmem:[%s270 + $0xc0] sm:%s262] %v367
                %v369 = vld [vmem:[%s269 + $0x174] sm:%s262]
                %370 = vst [vmem:[%s270 + $0xc4] sm:%s262] %v369
                %v371 = vld [vmem:[%s269 + $0x178] sm:%s262]
                %372 = vst [vmem:[%s270 + $0xc8] sm:%s262] %v371
                %v373 = vld [vmem:[%s269 + $0x17c] sm:%s262]
                %374 = vst [vmem:[%s270 + $0xcc] sm:%s262] %v373
                %v375 = vld [vmem:[%s269 + $0x180] sm:%s262]
                %376 = vst [vmem:[%s270 + $0xd0] sm:%s262] %v375
                %v377 = vld [vmem:[%s269 + $0x184] sm:%s262]
                %378 = vst [vmem:[%s270 + $0xd4] sm:%s262] %v377
                %v379 = vld [vmem:[%s269 + $0x188] sm:%s262]
                %380 = vst [vmem:[%s270 + $0xd8] sm:%s262] %v379
                %v381 = vld [vmem:[%s269 + $0x18c] sm:%s262]
                %382 = vst [vmem:[%s270 + $0xdc] sm:%s262] %v381
                %v383 = vld [vmem:[%s269 + $0x190] sm:%s262]
                %384 = vst [vmem:[%s270 + $0xe0] sm:%s262] %v383
                %v385 = vld [vmem:[%s269 + $0x194] sm:%s262]
                %386 = vst [vmem:[%s270 + $0xe4] sm:%s262] %v385
                %v387 = vld [vmem:[%s269 + $0x198] sm:%s262]
                %388 = vst [vmem:[%s270 + $0xe8] sm:%s262] %v387
                %v389 = vld [vmem:[%s269 + $0x19c] sm:%s262]
                %390 = vst [vmem:[%s270 + $0xec] sm:%s262] %v389
                %v391 = vld [vmem:[%s269 + $0x1a0] sm:%s262]
                %392 = vst [vmem:[%s270 + $0xf0] sm:%s262] %v391
                %v393 = vld [vmem:[%s269 + $0x1a4] sm:%s262]
                %394 = vst [vmem:[%s270 + $0xf4] sm:%s262] %v393
                %v395 = vld [vmem:[%s269 + $0x1a8] sm:%s262]
                %396 = vst [vmem:[%s270 + $0xf8] sm:%s262] %v395
                %v397 = vld [vmem:[%s269 + $0x1ac] sm:%s262]
                %398 = vst [vmem:[%s270 + $0xfc] sm:%s262] %v397
                %v399 = vld [vmem:[%s269 + $0x1b0] sm:%s262]
                %400 = vst [vmem:[%s270 + $0x100] sm:%s262] %v399
                %v401 = vld [vmem:[%s269 + $0x1b4] sm:%s262]
                %402 = vst [vmem:[%s270 + $0x104] sm:%s262] %v401
                %v403 = vld [vmem:[%s269 + $0x210] sm:%s262]
                %404 = vst [vmem:[%s270 + $0x108] sm:%s262] %v403
                %v405 = vld [vmem:[%s269 + $0x214] sm:%s262]
                %406 = vst [vmem:[%s270 + $0x10c] sm:%s262] %v405
                %v407 = vld [vmem:[%s269 + $0x218] sm:%s262]
                %408 = vst [vmem:[%s270 + $0x110] sm:%s262] %v407
                %v409 = vld [vmem:[%s269 + $0x21c] sm:%s262]
                %410 = vst [vmem:[%s270 + $0x114] sm:%s262] %v409
                %v411 = vld [vmem:[%s269 + $0x220] sm:%s262]
                %412 = vst [vmem:[%s270 + $0x118] sm:%s262] %v411
                %v413 = vld [vmem:[%s269 + $0x224] sm:%s262]
                %414 = vst [vmem:[%s270 + $0x11c] sm:%s262] %v413
                %v415 = vld [vmem:[%s269 + $0x228] sm:%s262]
                %416 = vst [vmem:[%s270 + $0x120] sm:%s262] %v415
                %v417 = vld [vmem:[%s269 + $0x22c] sm:%s262]
                %418 = vst [vmem:[%s270 + $0x124] sm:%s262] %v417
                %v419 = vld [vmem:[%s269 + $0x230] sm:%s262]
                %420 = vst [vmem:[%s270 + $0x128] sm:%s262] %v419
                %v421 = vld [vmem:[%s269 + $0x234] sm:%s262]
                %422 = vst [vmem:[%s270 + $0x12c] sm:%s262] %v421
                %v423 = vld [vmem:[%s269 + $0x238] sm:%s262]
                %424 = vst [vmem:[%s270 + $0x130] sm:%s262] %v423
                %v425 = vld [vmem:[%s269 + $0x23c] sm:%s262]
                %426 = vst [vmem:[%s270 + $0x134] sm:%s262] %v425
                %v427 = vld [vmem:[%s269 + $0x240] sm:%s262]
                %428 = vst [vmem:[%s270 + $0x138] sm:%s262] %v427
                %v429 = vld [vmem:[%s269 + $0x244] sm:%s262]
                %430 = vst [vmem:[%s270 + $0x13c] sm:%s262] %v429
                %v431 = vld [vmem:[%s269 + $0x248] sm:%s262]
                %432 = vst [vmem:[%s270 + $0x140] sm:%s262] %v431
                %v433 = vld [vmem:[%s269 + $0x24c] sm:%s262]
                %434 = vst [vmem:[%s270 + $0x144] sm:%s262] %v433
                %v435 = vld [vmem:[%s269 + $0x250] sm:%s262]
                %436 = vst [vmem:[%s270 + $0x148] sm:%s262] %v435
                %v437 = vld [vmem:[%s269 + $0x254] sm:%s262]
                %438 = vst [vmem:[%s270 + $0x14c] sm:%s262] %v437
                %v439 = vld [vmem:[%s269 + $0x258] sm:%s262]
                %440 = vst [vmem:[%s270 + $0x150] sm:%s262] %v439
                %v441 = vld [vmem:[%s269 + $0x25c] sm:%s262]
                %442 = vst [vmem:[%s270 + $0x154] sm:%s262] %v441
                %v443 = vld [vmem:[%s269 + $0x260] sm:%s262]
                %444 = vst [vmem:[%s270 + $0x158] sm:%s262] %v443
                %v445 = vld [vmem:[%s269 + $0x264] sm:%s262]
                %446 = vst [vmem:[%s270 + $0x15c] sm:%s262] %v445
              $region61: #{tpu_custom_call.1} parent=55 // loop_footer
                %s268 = sadd.s32 1, %s264
              $region62: #{tpu_custom_call.1} parent=55 // loop_footer_branch
                %263 = sbr.rel target = $region58
              $region63: #{tpu_custom_call.1} parent=55 // loop_exit
                _
            $region56: #{tpu_custom_call.1} parent=47 // pred_fallthru
              _
          $region48: #{tpu_custom_call.1} parent=43 // pred_fallthru
            _
          %643 = vnop
        $region44: #{tpu_custom_call.1} parent=39 // pred_fallthru
          _
      $region40: #{tpu_custom_call.1} parent=5 // pred_fallthru
        _
      %p644 = scmp.le.s32.totalorder 1, %s16
      %p645 = scmp.lt.s32.totalorder %s16, 5
      %p646 = pnand %p644, %p645
      %p647 = pneg %p646
      // Predicated region
      $region82: #{tpu_custom_call.1} parent=5 // pred_check
        _
      $region83: #{tpu_custom_call.1} parent=5 // pred_check_branch
        %649 = sbr.rel (%p646) target = $region85
      $region84: #{tpu_custom_call.1} parent=5 // pred_region
        %s650 = ssub.s32 %s16, 1
        %s651 = sand.u32 %s41, 1
        %s652 = sand.u32 %s41, 1
        %s653 = smul.addr %s652, 352
        %s654 = scalar_lea.vmem [#allocation3], %s653
        // Predicated region
        $region86: #{tpu_custom_call.1} parent=84 // pred_check
          %p655 = pneg %p54
        $region87: #{tpu_custom_call.1} parent=84 // pred_check_branch
          %657 = sbr.rel (%p655) target = $region89
        $region88: #{tpu_custom_call.1} parent=84 // pred_region
          _
        $region89: #{tpu_custom_call.1} parent=84 // pred_fallthru
          _
        %s658 = sand.u32 %s41, 1
        %s659 = sand.u32 %s41, 1
        %s660 = smul.addr %s659, 352
        %s661 = scalar_lea.vmem [#allocation3], %s660
        %p662 = pneg %p54
        %p663 = pneg %p51
        %p664 = pneg %p75
        %p665 = pneg %p72
        %p666 = pneg %p96
        %p667 = pneg %p93
        %p668 = pneg %p117
        %p669 = pneg %p114
        %p670 = pneg %p138
        %p671 = pneg %p135
        %p672 = pneg %p159
        %p673 = pneg %p156
        %p674 = pneg %p180
        %p675 = pneg %p177
        %p676 = pneg %p208
        %p677 = pneg %p205
        %s678 = sand.u32 %s195, 1
        %s679 = scalar_lea.sflag [#allocation5], %s678
        %s680 = sand.u32 %s195, 1
        %s681 = smul.addr %s680, 32
        %s682 = scalar_lea.vmem [#allocation4], %s681
        %s683 = smul.u32 4, %s26
        %s685 = smul.u32 %s26, 4
        %s686 = smul.u32 %s685, 2
        %s687 = smul.addr %s686, 4
        %s688 = scalar_lea.vmem %s654, %s687 [#allocation3]
        %v689 = vld [vmem:[%s688] sm:$0xf]
        %v690 = vld [vmem:[%s688 + $0x8] sm:$0xf]
        %v691 = vld [vmem:[%s688 + $0x10] sm:$0xf]
        %v692 = vld [vmem:[%s688 + $0x18] sm:$0xf]
        %v693 = vld [vmem:[%s688 + $0x20] sm:$0xf]
        %v694 = vld [vmem:[%s688 + $0x28] sm:$0xf]
        %v695 = vld [vmem:[%s1] sm:$0x3]
        %s696 = sadd.s32 %s686, 22
        %s697 = smul.addr %s696, 4
        %s698 = scalar_lea.vmem %s654, %s697 [#allocation3]
        %v699 = vld [vmem:[%s698] sm:$0xf]
        %v700 = vld [vmem:[%s698 + $0x8] sm:$0xf]
        %v701 = vld [vmem:[%s698 + $0x10] sm:$0xf]
        %v702 = vld [vmem:[%s698 + $0x18] sm:$0xf]
        %v703 = vld [vmem:[%s698 + $0x20] sm:$0xf]
        %v704 = vld [vmem:[%s698 + $0x28] sm:$0xf]
        %s705 = scalar_lea.vmem %s1, 2
        %v706 = vld [vmem:[%s705] sm:$0x3]
        %v713 = vunpack.c.l.b16 %v699
        %v714 = vunpack.c.l.b16 %v700
        %v715 = vunpack.c.l.b16 %v701
        %v716 = vunpack.c.l.b16 %v702
        %v717 = vunpack.c.l.b16 %v703
        %v718 = vunpack.c.l.b16 %v704
        %v719 = vpack.c.b16 %v714, %v713
        %v720 = vpack.c.b16 %v716, %v715
        %v721 = vpack.c.b16 %v718, %v717
        %vm722 = vcmask 31744
        %v724 = vsel %vm722, %v719, 0
        %v727 = vsel %vm722, %v720, 0
        %v730 = vsel %vm722, %v721, 0
        %vm732 = vcmask 1041408
        %v734 = vsel %vm732, %v706, 0
        %736 = vmatprep.subr.bf16.mxu0 0
        %737 = vmatpush1.bf16.msra.mxu0 0
        %738 = vmatprep.subr.bf16.mxu0 0
        %739 = vmatpush1.bf16.msra.mxu0 0
        %740 = vmatprep.subr.bf16.mxu0 0
        %741 = vmatpush1.bf16.msra.mxu0 0
        %742 = vmatprep.subr.bf16.mxu0 0
        %743 = vmatpush1.bf16.msra.mxu0 0
        %744 = vmatprep.subr.bf16.mxu0 0
        %745 = vmatpush1.bf16.msra.mxu0 0
        %746 = vmatprep.subr.bf16.mxu0 0
        %747 = vmatpush1.bf16.msra.mxu0 0
        %748 = vmatprep.subr.bf16.mxu0 0
        %749 = vmatpush1.bf16.msra.mxu0 0
        %750 = vmatprep.subr.bf16.mxu0 0
        %751 = vmatpush1.bf16.msra.mxu0 %v734
        %752 = vmatprep.subr.bf16.mxu0 0
        %753 = vmatpush2.bf16.msra.mxu0 0
        %754 = vmatprep.subr.bf16.mxu0 0
        %755 = vmatpush2.bf16.msra.mxu0 0
        %756 = vmatprep.subr.bf16.mxu0 0
        %757 = vmatpush2.bf16.msra.mxu0 0
        %758 = vmatprep.subr.bf16.mxu0 0
        %759 = vmatpush2.bf16.msra.mxu0 0
        %760 = vmatprep.subr.bf16.mxu0 0
        %761 = vmatpush2.bf16.msra.mxu0 0
        %762 = vmatprep.subr.bf16.mxu0 0
        %763 = vmatpush2.bf16.msra.mxu0 0
        %764 = vmatprep.subr.bf16.mxu0 0
        %765 = vmatpush2.bf16.msra.mxu0 0
        %766 = vmatprep.subr.bf16.mxu0 0
        %767 = vmatpush2.bf16.msra.mxu0 0
        %768 = vmatprep.mubr.bf16.mxu0 0
        %769 = vmatmul.mubr.bf16.gmra.mxu0 %v724
        %v770 = vpop.f32.mrf.mxu0
        %v771 = vadd.f32 0.0, %v770
        %v772 = vpop.f32.mrf.mxu0
        %v773 = vpop.f32.mrf.mxu0
        %v774 = vadd.f32 0.0, %v773
        %v775 = vpop.f32.mrf.mxu0
        %776 = vmatprep.mubr.bf16.mxu0 0
        %777 = vmatmul.mubr.bf16.gmra.mxu0 %v727
        %v778 = vpop.f32.mrf.mxu0
        %v779 = vadd.f32 0.0, %v778
        %v780 = vpop.f32.mrf.mxu0
        %v781 = vpop.f32.mrf.mxu0
        %v782 = vadd.f32 0.0, %v781
        %v783 = vpop.f32.mrf.mxu0
        %784 = vmatprep.mubr.bf16.mxu0 0
        %785 = vmatmul.mubr.bf16.gmra.mxu0 %v730
        %v786 = vpop.f32.mrf.mxu0
        %v787 = vadd.f32 0.0, %v786
        %v788 = vpop.f32.mrf.mxu0
        %v789 = vpop.f32.mrf.mxu0
        %v790 = vadd.f32 0.0, %v789
        %v791 = vpop.f32.mrf.mxu0
        %792 = vdwg.mxu0
        %v799 = vunpack.c.l.b16 %v689
        %v800 = vunpack.c.l.b16 %v690
        %v801 = vunpack.c.l.b16 %v691
        %v802 = vunpack.c.l.b16 %v692
        %v803 = vunpack.c.l.b16 %v693
        %v804 = vunpack.c.l.b16 %v694
        %v805 = vpack.c.b16 %v800, %v799
        %v806 = vpack.c.b16 %v802, %v801
        %v807 = vpack.c.b16 %v804, %v803
        %v809 = vsel %vm722, %v805, 0
        %v812 = vsel %vm722, %v806, 0
        %v815 = vsel %vm722, %v807, 0
        %v818 = vsel %vm732, %v695, 0
        %820 = vmatprep.subr.bf16.mxu0 0
        %821 = vmatpush1.bf16.msra.mxu0 0
        %822 = vmatprep.subr.bf16.mxu0 0
        %823 = vmatpush1.bf16.msra.mxu0 0
        %824 = vmatprep.subr.bf16.mxu0 0
        %825 = vmatpush1.bf16.msra.mxu0 0
        %826 = vmatprep.subr.bf16.mxu0 0
        %827 = vmatpush1.bf16.msra.mxu0 0
        %828 = vmatprep.subr.bf16.mxu0 0
        %829 = vmatpush1.bf16.msra.mxu0 0
        %830 = vmatprep.subr.bf16.mxu0 0
        %831 = vmatpush1.bf16.msra.mxu0 0
        %832 = vmatprep.subr.bf16.mxu0 0
        %833 = vmatpush1.bf16.msra.mxu0 0
        %834 = vmatprep.subr.bf16.mxu0 0
        %835 = vmatpush1.bf16.msra.mxu0 %v818
        %836 = vmatprep.subr.bf16.mxu0 0
        %837 = vmatpush2.bf16.msra.mxu0 0
        %838 = vmatprep.subr.bf16.mxu0 0
        %839 = vmatpush2.bf16.msra.mxu0 0
        %840 = vmatprep.subr.bf16.mxu0 0
        %841 = vmatpush2.bf16.msra.mxu0 0
        %842 = vmatprep.subr.bf16.mxu0 0
        %843 = vmatpush2.bf16.msra.mxu0 0
        %844 = vmatprep.subr.bf16.mxu0 0
        %845 = vmatpush2.bf16.msra.mxu0 0
        %846 = vmatprep.subr.bf16.mxu0 0
        %847 = vmatpush2.bf16.msra.mxu0 0
        %848 = vmatprep.subr.bf16.mxu0 0
        %849 = vmatpush2.bf16.msra.mxu0 0
        %850 = vmatprep.subr.bf16.mxu0 0
        %851 = vmatpush2.bf16.msra.mxu0 0
        %852 = vmatprep.mubr.bf16.mxu0 0
        %853 = vmatmul.mubr.bf16.gmra.mxu0 %v809
        %v854 = vpop.f32.mrf.mxu0
        %v855 = vadd.f32 %v771, %v854
        %v856 = vpop.f32.mrf.mxu0
        %v857 = vpop.f32.mrf.mxu0
        %v858 = vadd.f32 %v774, %v857
        %v859 = vpop.f32.mrf.mxu0
        %860 = vmatprep.mubr.bf16.mxu0 0
        %861 = vmatmul.mubr.bf16.gmra.mxu0 %v812
        %v862 = vpop.f32.mrf.mxu0
        %v863 = vadd.f32 %v779, %v862
        %v864 = vpop.f32.mrf.mxu0
        %v865 = vpop.f32.mrf.mxu0
        %v866 = vadd.f32 %v782, %v865
        %v867 = vpop.f32.mrf.mxu0
        %868 = vmatprep.mubr.bf16.mxu0 0
        %869 = vmatmul.mubr.bf16.gmra.mxu0 %v815
        %v870 = vpop.f32.mrf.mxu0
        %v871 = vadd.f32 %v787, %v870
        %v872 = vpop.f32.mrf.mxu0
        %v873 = vpop.f32.mrf.mxu0
        %v874 = vadd.f32 %v790, %v873
        %v875 = vpop.f32.mrf.mxu0
        %876 = vdwg.mxu0
        %v877 = vld [vmem:[%s688] sm:$0xf]
        %v878 = vld [vmem:[%s688 + $0x4] sm:$0x1]
        %v879 = vld [vmem:[%s688 + $0x8] sm:$0xf]
        %v880 = vld [vmem:[%s688 + $0xc] sm:$0x1]
        %v881 = vld [vmem:[%s688 + $0x10] sm:$0xf]
        %v882 = vld [vmem:[%s688 + $0x14] sm:$0x1]
        %v883 = vld [vmem:[%s688 + $0x18] sm:$0xf]
        %v884 = vld [vmem:[%s688 + $0x1c] sm:$0x1]
        %v885 = vld [vmem:[%s688 + $0x20] sm:$0xf]
        %v886 = vld [vmem:[%s688 + $0x24] sm:$0x1]
        %v887 = vld [vmem:[%s688 + $0x28] sm:$0xf]
        %v888 = vld [vmem:[%s688 + $0x2c] sm:$0x1]
        %vm889 = vsmask.f32 3328
        %vm890 = vsmask.f32 7440
        %vm891 = vmor %vm889, %vm890
        %v893 = vshrl.u32 %v877, 16
        %v895 = vrot.slane %v893, 4
        %v896 = vshll.u32 %v877, 16
        %v898 = vrot.slane %v896, 5
        %v899 = vor.u32 %v895, %v898
        %v900 = vrot.slane %v899, 4
        %v902 = vshll.u32 %v878, 16
        %v904 = vrot.slane %v902, 5
        %v905 = vsel %vm891, %v900, %v904
        %v907 = vshrl.u32 %v879, 16
        %v909 = vrot.slane %v907, 4
        %v910 = vshll.u32 %v879, 16
        %v912 = vrot.slane %v910, 5
        %v913 = vor.u32 %v909, %v912
        %v914 = vrot.slane %v913, 4
        %v916 = vshll.u32 %v880, 16
        %v918 = vrot.slane %v916, 5
        %v919 = vsel %vm891, %v914, %v918
        %v921 = vshrl.u32 %v881, 16
        %v923 = vrot.slane %v921, 4
        %v924 = vshll.u32 %v881, 16
        %v926 = vrot.slane %v924, 5
        %v927 = vor.u32 %v923, %v926
        %v928 = vrot.slane %v927, 4
        %v930 = vshll.u32 %v882, 16
        %v932 = vrot.slane %v930, 5
        %v933 = vsel %vm891, %v928, %v932
        %v935 = vshrl.u32 %v883, 16
        %v937 = vrot.slane %v935, 4
        %v938 = vshll.u32 %v883, 16
        %v940 = vrot.slane %v938, 5
        %v941 = vor.u32 %v937, %v940
        %v942 = vrot.slane %v941, 4
        %v944 = vshll.u32 %v884, 16
        %v946 = vrot.slane %v944, 5
        %v947 = vsel %vm891, %v942, %v946
        %v949 = vshrl.u32 %v885, 16
        %v951 = vrot.slane %v949, 4
        %v952 = vshll.u32 %v885, 16
        %v954 = vrot.slane %v952, 5
        %v955 = vor.u32 %v951, %v954
        %v956 = vrot.slane %v955, 4
        %v958 = vshll.u32 %v886, 16
        %v960 = vrot.slane %v958, 5
        %v961 = vsel %vm891, %v956, %v960
        %v963 = vshrl.u32 %v887, 16
        %v965 = vrot.slane %v963, 4
        %v966 = vshll.u32 %v887, 16
        %v968 = vrot.slane %v966, 5
        %v969 = vor.u32 %v965, %v968
        %v970 = vrot.slane %v969, 4
        %v972 = vshll.u32 %v888, 16
        %v974 = vrot.slane %v972, 5
        %v975 = vsel %vm891, %v970, %v974
        %s976 = scalar_lea.vmem %s1, 4
        %v977 = vld [vmem:[%s976] sm:$0x3]
        %v978 = vunpack.c.l.b16 %v905
        %v979 = vunpack.c.l.b16 %v919
        %v980 = vunpack.c.l.b16 %v933
        %v981 = vunpack.c.l.b16 %v947
        %v982 = vunpack.c.l.b16 %v961
        %v983 = vunpack.c.l.b16 %v975
        %v984 = vpack.c.b16 %v979, %v978
        %v985 = vpack.c.b16 %v981, %v980
        %v986 = vpack.c.b16 %v983, %v982
        %v988 = vsel %vm722, %v984, 0
        %v991 = vsel %vm722, %v985, 0
        %v994 = vsel %vm722, %v986, 0
        %v997 = vsel %vm732, %v977, 0
        %999 = vmatprep.subr.bf16.mxu0 0
        %1000 = vmatpush1.bf16.msra.mxu0 0
        %1001 = vmatprep.subr.bf16.mxu0 0
        %1002 = vmatpush1.bf16.msra.mxu0 0
        %1003 = vmatprep.subr.bf16.mxu0 0
        %1004 = vmatpush1.bf16.msra.mxu0 0
        %1005 = vmatprep.subr.bf16.mxu0 0
        %1006 = vmatpush1.bf16.msra.mxu0 0
        %1007 = vmatprep.subr.bf16.mxu0 0
        %1008 = vmatpush1.bf16.msra.mxu0 0
        %1009 = vmatprep.subr.bf16.mxu0 0
        %1010 = vmatpush1.bf16.msra.mxu0 0
        %1011 = vmatprep.subr.bf16.mxu0 0
        %1012 = vmatpush1.bf16.msra.mxu0 0
        %1013 = vmatprep.subr.bf16.mxu0 0
        %1014 = vmatpush1.bf16.msra.mxu0 %v997
        %1015 = vmatprep.subr.bf16.mxu0 0
        %1016 = vmatpush2.bf16.msra.mxu0 0
        %1017 = vmatprep.subr.bf16.mxu0 0
        %1018 = vmatpush2.bf16.msra.mxu0 0
        %1019 = vmatprep.subr.bf16.mxu0 0
        %1020 = vmatpush2.bf16.msra.mxu0 0
        %1021 = vmatprep.subr.bf16.mxu0 0
        %1022 = vmatpush2.bf16.msra.mxu0 0
        %1023 = vmatprep.subr.bf16.mxu0 0
        %1024 = vmatpush2.bf16.msra.mxu0 0
        %1025 = vmatprep.subr.bf16.mxu0 0
        %1026 = vmatpush2.bf16.msra.mxu0 0
        %1027 = vmatprep.subr.bf16.mxu0 0
        %1028 = vmatpush2.bf16.msra.mxu0 0
        %1029 = vmatprep.subr.bf16.mxu0 0
        %1030 = vmatpush2.bf16.msra.mxu0 0
        %1031 = vmatprep.mubr.bf16.mxu0 0
        %1032 = vmatmul.mubr.bf16.gmra.mxu0 %v988
        %v1033 = vpop.f32.mrf.mxu0
        %v1034 = vadd.f32 0.0, %v1033
        %v1035 = vpop.f32.mrf.mxu0
        %v1036 = vpop.f32.mrf.mxu0
        %v1037 = vadd.f32 0.0, %v1036
        %v1038 = vpop.f32.mrf.mxu0
        %1039 = vmatprep.mubr.bf16.mxu0 0
        %1040 = vmatmul.mubr.bf16.gmra.mxu0 %v991
        %v1041 = vpop.f32.mrf.mxu0
        %v1042 = vadd.f32 0.0, %v1041
        %v1043 = vpop.f32.mrf.mxu0
        %v1044 = vpop.f32.mrf.mxu0
        %v1045 = vadd.f32 0.0, %v1044
        %v1046 = vpop.f32.mrf.mxu0
        %1047 = vmatprep.mubr.bf16.mxu0 0
        %1048 = vmatmul.mubr.bf16.gmra.mxu0 %v994
        %v1049 = vpop.f32.mrf.mxu0
        %v1050 = vadd.f32 0.0, %v1049
        %v1051 = vpop.f32.mrf.mxu0
        %v1052 = vpop.f32.mrf.mxu0
        %v1053 = vadd.f32 0.0, %v1052
        %v1054 = vpop.f32.mrf.mxu0
        %1055 = vdwg.mxu0
        %v1056 = vadd.f32 %v855, %v1034
        %v1057 = vadd.f32 %v858, %v1037
        %v1058 = vadd.f32 %v863, %v1042
        %v1059 = vadd.f32 %v866, %v1045
        %v1060 = vadd.f32 %v871, %v1050
        %v1061 = vadd.f32 %v874, %v1053
        %s1062 = sadd.s32 %s686, 44
        %s1063 = smul.addr %s1062, 4
        %s1064 = scalar_lea.vmem %s654, %s1063 [#allocation3]
        %v1065 = vld [vmem:[%s1064] sm:$0xf]
        %v1066 = vld [vmem:[%s1064 + $0x8] sm:$0xf]
        %v1067 = vld [vmem:[%s1064 + $0x10] sm:$0xf]
        %v1068 = vld [vmem:[%s1064 + $0x18] sm:$0xf]
        %v1069 = vld [vmem:[%s1064 + $0x20] sm:$0xf]
        %v1070 = vld [vmem:[%s1064 + $0x28] sm:$0xf]
        %s1071 = scalar_lea.vmem %s1, 6
        %v1072 = vld [vmem:[%s1071] sm:$0x3]
        %v1079 = vunpack.c.l.b16 %v1065
        %v1080 = vunpack.c.l.b16 %v1066
        %v1081 = vunpack.c.l.b16 %v1067
        %v1082 = vunpack.c.l.b16 %v1068
        %v1083 = vunpack.c.l.b16 %v1069
        %v1084 = vunpack.c.l.b16 %v1070
        %v1085 = vpack.c.b16 %v1080, %v1079
        %v1086 = vpack.c.b16 %v1082, %v1081
        %v1087 = vpack.c.b16 %v1084, %v1083
        %v1089 = vsel %vm722, %v1085, 0
        %v1092 = vsel %vm722, %v1086, 0
        %v1095 = vsel %vm722, %v1087, 0
        %v1098 = vsel %vm732, %v1072, 0
        %1100 = vmatprep.subr.bf16.mxu0 0
        %1101 = vmatpush1.bf16.msra.mxu0 0
        %1102 = vmatprep.subr.bf16.mxu0 0
        %1103 = vmatpush1.bf16.msra.mxu0 0
        %1104 = vmatprep.subr.bf16.mxu0 0
        %1105 = vmatpush1.bf16.msra.mxu0 0
        %1106 = vmatprep.subr.bf16.mxu0 0
        %1107 = vmatpush1.bf16.msra.mxu0 0
        %1108 = vmatprep.subr.bf16.mxu0 0
        %1109 = vmatpush1.bf16.msra.mxu0 0
        %1110 = vmatprep.subr.bf16.mxu0 0
        %1111 = vmatpush1.bf16.msra.mxu0 0
        %1112 = vmatprep.subr.bf16.mxu0 0
        %1113 = vmatpush1.bf16.msra.mxu0 0
        %1114 = vmatprep.subr.bf16.mxu0 0
        %1115 = vmatpush1.bf16.msra.mxu0 %v1098
        %1116 = vmatprep.subr.bf16.mxu0 0
        %1117 = vmatpush2.bf16.msra.mxu0 0
        %1118 = vmatprep.subr.bf16.mxu0 0
        %1119 = vmatpush2.bf16.msra.mxu0 0
        %1120 = vmatprep.subr.bf16.mxu0 0
        %1121 = vmatpush2.bf16.msra.mxu0 0
        %1122 = vmatprep.subr.bf16.mxu0 0
        %1123 = vmatpush2.bf16.msra.mxu0 0
        %1124 = vmatprep.subr.bf16.mxu0 0
        %1125 = vmatpush2.bf16.msra.mxu0 0
        %1126 = vmatprep.subr.bf16.mxu0 0
        %1127 = vmatpush2.bf16.msra.mxu0 0
        %1128 = vmatprep.subr.bf16.mxu0 0
        %1129 = vmatpush2.bf16.msra.mxu0 0
        %1130 = vmatprep.subr.bf16.mxu0 0
        %1131 = vmatpush2.bf16.msra.mxu0 0
        %1132 = vmatprep.mubr.bf16.mxu0 0
        %1133 = vmatmul.mubr.bf16.gmra.mxu0 %v1089
        %v1134 = vpop.f32.mrf.mxu0
        %v1135 = vadd.f32 0.0, %v1134
        %v1136 = vpop.f32.mrf.mxu0
        %v1137 = vpop.f32.mrf.mxu0
        %v1138 = vadd.f32 0.0, %v1137
        %v1139 = vpop.f32.mrf.mxu0
        %1140 = vmatprep.mubr.bf16.mxu0 0
        %1141 = vmatmul.mubr.bf16.gmra.mxu0 %v1092
        %v1142 = vpop.f32.mrf.mxu0
        %v1143 = vadd.f32 0.0, %v1142
        %v1144 = vpop.f32.mrf.mxu0
        %v1145 = vpop.f32.mrf.mxu0
        %v1146 = vadd.f32 0.0, %v1145
        %v1147 = vpop.f32.mrf.mxu0
        %1148 = vmatprep.mubr.bf16.mxu0 0
        %1149 = vmatmul.mubr.bf16.gmra.mxu0 %v1095
        %v1150 = vpop.f32.mrf.mxu0
        %v1151 = vadd.f32 0.0, %v1150
        %v1152 = vpop.f32.mrf.mxu0
        %v1153 = vpop.f32.mrf.mxu0
        %v1154 = vadd.f32 0.0, %v1153
        %v1155 = vpop.f32.mrf.mxu0
        %1156 = vdwg.mxu0
        %v1157 = vadd.f32 %v1056, %v1135
        %v1158 = vadd.f32 %v1057, %v1138
        %v1159 = vadd.f32 %v1058, %v1143
        %v1160 = vadd.f32 %v1059, %v1146
        %v1161 = vadd.f32 %v1060, %v1151
        %v1162 = vadd.f32 %v1061, %v1154
        %s1163 = sadd.s32 %s686, 66
        %s1164 = smul.addr %s1163, 4
        %s1165 = scalar_lea.vmem %s654, %s1164 [#allocation3]
        %v1166 = vld [vmem:[%s1165] sm:$0xf]
        %v1167 = vld [vmem:[%s1165 + $0x8] sm:$0xf]
        %v1168 = vld [vmem:[%s1165 + $0x10] sm:$0xf]
        %v1169 = vld [vmem:[%s1165 + $0x18] sm:$0xf]
        %v1170 = vld [vmem:[%s1165 + $0x20] sm:$0xf]
        %v1171 = vld [vmem:[%s1165 + $0x28] sm:$0xf]
        %s1172 = scalar_lea.vmem %s1, 8
        %v1173 = vld [vmem:[%s1172] sm:$0x3]
        %v1180 = vunpack.c.l.b16 %v1166
        %v1181 = vunpack.c.l.b16 %v1167
        %v1182 = vunpack.c.l.b16 %v1168
        %v1183 = vunpack.c.l.b16 %v1169
        %v1184 = vunpack.c.l.b16 %v1170
        %v1185 = vunpack.c.l.b16 %v1171
        %v1186 = vpack.c.b16 %v1181, %v1180
        %v1187 = vpack.c.b16 %v1183, %v1182
        %v1188 = vpack.c.b16 %v1185, %v1184
        %v1190 = vsel %vm722, %v1186, 0
        %v1193 = vsel %vm722, %v1187, 0
        %v1196 = vsel %vm722, %v1188, 0
        %v1199 = vsel %vm732, %v1173, 0
        %1201 = vmatprep.subr.bf16.mxu0 0
        %1202 = vmatpush1.bf16.msra.mxu0 0
        %1203 = vmatprep.subr.bf16.mxu0 0
        %1204 = vmatpush1.bf16.msra.mxu0 0
        %1205 = vmatprep.subr.bf16.mxu0 0
        %1206 = vmatpush1.bf16.msra.mxu0 0
        %1207 = vmatprep.subr.bf16.mxu0 0
        %1208 = vmatpush1.bf16.msra.mxu0 0
        %1209 = vmatprep.subr.bf16.mxu0 0
        %1210 = vmatpush1.bf16.msra.mxu0 0
        %1211 = vmatprep.subr.bf16.mxu0 0
        %1212 = vmatpush1.bf16.msra.mxu0 0
        %1213 = vmatprep.subr.bf16.mxu0 0
        %1214 = vmatpush1.bf16.msra.mxu0 0
        %1215 = vmatprep.subr.bf16.mxu0 0
        %1216 = vmatpush1.bf16.msra.mxu0 %v1199
        %1217 = vmatprep.subr.bf16.mxu0 0
        %1218 = vmatpush2.bf16.msra.mxu0 0
        %1219 = vmatprep.subr.bf16.mxu0 0
        %1220 = vmatpush2.bf16.msra.mxu0 0
        %1221 = vmatprep.subr.bf16.mxu0 0
        %1222 = vmatpush2.bf16.msra.mxu0 0
        %1223 = vmatprep.subr.bf16.mxu0 0
        %1224 = vmatpush2.bf16.msra.mxu0 0
        %1225 = vmatprep.subr.bf16.mxu0 0
        %1226 = vmatpush2.bf16.msra.mxu0 0
        %1227 = vmatprep.subr.bf16.mxu0 0
        %1228 = vmatpush2.bf16.msra.mxu0 0
        %1229 = vmatprep.subr.bf16.mxu0 0
        %1230 = vmatpush2.bf16.msra.mxu0 0
        %1231 = vmatprep.subr.bf16.mxu0 0
        %1232 = vmatpush2.bf16.msra.mxu0 0
        %1233 = vmatprep.mubr.bf16.mxu0 0
        %1234 = vmatmul.mubr.bf16.gmra.mxu0 %v1190
        %v1235 = vpop.f32.mrf.mxu0
        %v1236 = vadd.f32 0.0, %v1235
        %v1237 = vpop.f32.mrf.mxu0
        %v1238 = vpop.f32.mrf.mxu0
        %v1239 = vadd.f32 0.0, %v1238
        %v1240 = vpop.f32.mrf.mxu0
        %1241 = vmatprep.mubr.bf16.mxu0 0
        %1242 = vmatmul.mubr.bf16.gmra.mxu0 %v1193
        %v1243 = vpop.f32.mrf.mxu0
        %v1244 = vadd.f32 0.0, %v1243
        %v1245 = vpop.f32.mrf.mxu0
        %v1246 = vpop.f32.mrf.mxu0
        %v1247 = vadd.f32 0.0, %v1246
        %v1248 = vpop.f32.mrf.mxu0
        %1249 = vmatprep.mubr.bf16.mxu0 0
        %1250 = vmatmul.mubr.bf16.gmra.mxu0 %v1196
        %v1251 = vpop.f32.mrf.mxu0
        %v1252 = vadd.f32 0.0, %v1251
        %v1253 = vpop.f32.mrf.mxu0
        %v1254 = vpop.f32.mrf.mxu0
        %v1255 = vadd.f32 0.0, %v1254
        %v1256 = vpop.f32.mrf.mxu0
        %1257 = vdwg.mxu0
        %v1258 = vadd.f32 %v1157, %v1236
        %v1259 = vadd.f32 %v1158, %v1239
        %v1260 = vadd.f32 %v1159, %v1244
        %v1261 = vadd.f32 %v1160, %v1247
        %v1262 = vadd.f32 %v1161, %v1252
        %v1263 = vadd.f32 %v1162, %v1255
        %v1264 = vld [vmem:[%s1064] sm:$0xf]
        %v1265 = vld [vmem:[%s1064 + $0x4] sm:$0x1]
        %v1266 = vld [vmem:[%s1064 + $0x8] sm:$0xf]
        %v1267 = vld [vmem:[%s1064 + $0xc] sm:$0x1]
        %v1268 = vld [vmem:[%s1064 + $0x10] sm:$0xf]
        %v1269 = vld [vmem:[%s1064 + $0x14] sm:$0x1]
        %v1270 = vld [vmem:[%s1064 + $0x18] sm:$0xf]
        %v1271 = vld [vmem:[%s1064 + $0x1c] sm:$0x1]
        %v1272 = vld [vmem:[%s1064 + $0x20] sm:$0xf]
        %v1273 = vld [vmem:[%s1064 + $0x24] sm:$0x1]
        %v1274 = vld [vmem:[%s1064 + $0x28] sm:$0xf]
        %v1275 = vld [vmem:[%s1064 + $0x2c] sm:$0x1]
        %v1277 = vshrl.u32 %v1264, 16
        %v1279 = vrot.slane %v1277, 4
        %v1280 = vshll.u32 %v1264, 16
        %v1282 = vrot.slane %v1280, 5
        %v1283 = vor.u32 %v1279, %v1282
        %v1284 = vrot.slane %v1283, 4
        %v1286 = vshll.u32 %v1265, 16
        %v1288 = vrot.slane %v1286, 5
        %v1289 = vsel %vm891, %v1284, %v1288
        %v1291 = vshrl.u32 %v1266, 16
        %v1293 = vrot.slane %v1291, 4
        %v1294 = vshll.u32 %v1266, 16
        %v1296 = vrot.slane %v1294, 5
        %v1297 = vor.u32 %v1293, %v1296
        %v1298 = vrot.slane %v1297, 4
        %v1300 = vshll.u32 %v1267, 16
        %v1302 = vrot.slane %v1300, 5
        %v1303 = vsel %vm891, %v1298, %v1302
        %v1305 = vshrl.u32 %v1268, 16
        %v1307 = vrot.slane %v1305, 4
        %v1308 = vshll.u32 %v1268, 16
        %v1310 = vrot.slane %v1308, 5
        %v1311 = vor.u32 %v1307, %v1310
        %v1312 = vrot.slane %v1311, 4
        %v1314 = vshll.u32 %v1269, 16
        %v1316 = vrot.slane %v1314, 5
        %v1317 = vsel %vm891, %v1312, %v1316
        %v1319 = vshrl.u32 %v1270, 16
        %v1321 = vrot.slane %v1319, 4
        %v1322 = vshll.u32 %v1270, 16
        %v1324 = vrot.slane %v1322, 5
        %v1325 = vor.u32 %v1321, %v1324
        %v1326 = vrot.slane %v1325, 4
        %v1328 = vshll.u32 %v1271, 16
        %v1330 = vrot.slane %v1328, 5
        %v1331 = vsel %vm891, %v1326, %v1330
        %v1333 = vshrl.u32 %v1272, 16
        %v1335 = vrot.slane %v1333, 4
        %v1336 = vshll.u32 %v1272, 16
        %v1338 = vrot.slane %v1336, 5
        %v1339 = vor.u32 %v1335, %v1338
        %v1340 = vrot.slane %v1339, 4
        %v1342 = vshll.u32 %v1273, 16
        %v1344 = vrot.slane %v1342, 5
        %v1345 = vsel %vm891, %v1340, %v1344
        %v1347 = vshrl.u32 %v1274, 16
        %v1349 = vrot.slane %v1347, 4
        %v1350 = vshll.u32 %v1274, 16
        %v1352 = vrot.slane %v1350, 5
        %v1353 = vor.u32 %v1349, %v1352
        %v1354 = vrot.slane %v1353, 4
        %v1356 = vshll.u32 %v1275, 16
        %v1358 = vrot.slane %v1356, 5
        %v1359 = vsel %vm891, %v1354, %v1358
        %s1360 = scalar_lea.vmem %s1, 10
        %v1361 = vld [vmem:[%s1360] sm:$0x3]
        %v1362 = vunpack.c.l.b16 %v1289
        %v1363 = vunpack.c.l.b16 %v1303
        %v1364 = vunpack.c.l.b16 %v1317
        %v1365 = vunpack.c.l.b16 %v1331
        %v1366 = vunpack.c.l.b16 %v1345
        %v1367 = vunpack.c.l.b16 %v1359
        %v1368 = vpack.c.b16 %v1363, %v1362
        %v1369 = vpack.c.b16 %v1365, %v1364
        %v1370 = vpack.c.b16 %v1367, %v1366
        %v1372 = vsel %vm722, %v1368, 0
        %v1375 = vsel %vm722, %v1369, 0
        %v1378 = vsel %vm722, %v1370, 0
        %v1381 = vsel %vm732, %v1361, 0
        %1383 = vmatprep.subr.bf16.mxu0 0
        %1384 = vmatpush1.bf16.msra.mxu0 0
        %1385 = vmatprep.subr.bf16.mxu0 0
        %1386 = vmatpush1.bf16.msra.mxu0 0
        %1387 = vmatprep.subr.bf16.mxu0 0
        %1388 = vmatpush1.bf16.msra.mxu0 0
        %1389 = vmatprep.subr.bf16.mxu0 0
        %1390 = vmatpush1.bf16.msra.mxu0 0
        %1391 = vmatprep.subr.bf16.mxu0 0
        %1392 = vmatpush1.bf16.msra.mxu0 0
        %1393 = vmatprep.subr.bf16.mxu0 0
        %1394 = vmatpush1.bf16.msra.mxu0 0
        %1395 = vmatprep.subr.bf16.mxu0 0
        %1396 = vmatpush1.bf16.msra.mxu0 0
        %1397 = vmatprep.subr.bf16.mxu0 0
        %1398 = vmatpush1.bf16.msra.mxu0 %v1381
        %1399 = vmatprep.subr.bf16.mxu0 0
        %1400 = vmatpush2.bf16.msra.mxu0 0
        %1401 = vmatprep.subr.bf16.mxu0 0
        %1402 = vmatpush2.bf16.msra.mxu0 0
        %1403 = vmatprep.subr.bf16.mxu0 0
        %1404 = vmatpush2.bf16.msra.mxu0 0
        %1405 = vmatprep.subr.bf16.mxu0 0
        %1406 = vmatpush2.bf16.msra.mxu0 0
        %1407 = vmatprep.subr.bf16.mxu0 0
        %1408 = vmatpush2.bf16.msra.mxu0 0
        %1409 = vmatprep.subr.bf16.mxu0 0
        %1410 = vmatpush2.bf16.msra.mxu0 0
        %1411 = vmatprep.subr.bf16.mxu0 0
        %1412 = vmatpush2.bf16.msra.mxu0 0
        %1413 = vmatprep.subr.bf16.mxu0 0
        %1414 = vmatpush2.bf16.msra.mxu0 0
        %1415 = vmatprep.mubr.bf16.mxu0 0
        %1416 = vmatmul.mubr.bf16.gmra.mxu0 %v1372
        %v1417 = vpop.f32.mrf.mxu0
        %v1418 = vadd.f32 0.0, %v1417
        %v1419 = vpop.f32.mrf.mxu0
        %v1420 = vpop.f32.mrf.mxu0
        %v1421 = vadd.f32 0.0, %v1420
        %v1422 = vpop.f32.mrf.mxu0
        %1423 = vmatprep.mubr.bf16.mxu0 0
        %1424 = vmatmul.mubr.bf16.gmra.mxu0 %v1375
        %v1425 = vpop.f32.mrf.mxu0
        %v1426 = vadd.f32 0.0, %v1425
        %v1427 = vpop.f32.mrf.mxu0
        %v1428 = vpop.f32.mrf.mxu0
        %v1429 = vadd.f32 0.0, %v1428
        %v1430 = vpop.f32.mrf.mxu0
        %1431 = vmatprep.mubr.bf16.mxu0 0
        %1432 = vmatmul.mubr.bf16.gmra.mxu0 %v1378
        %v1433 = vpop.f32.mrf.mxu0
        %v1434 = vadd.f32 0.0, %v1433
        %v1435 = vpop.f32.mrf.mxu0
        %v1436 = vpop.f32.mrf.mxu0
        %v1437 = vadd.f32 0.0, %v1436
        %v1438 = vpop.f32.mrf.mxu0
        %1439 = vdwg.mxu0
        %v1440 = vadd.f32 %v1258, %v1418
        %v1441 = vadd.f32 %v1259, %v1421
        %v1442 = vadd.f32 %v1260, %v1426
        %v1443 = vadd.f32 %v1261, %v1429
        %v1444 = vadd.f32 %v1262, %v1434
        %v1445 = vadd.f32 %v1263, %v1437
        %s1446 = sadd.s32 %s685, 1
        %s1447 = smul.u32 %s1446, 2
        %s1448 = smul.addr %s1447, 4
        %s1449 = scalar_lea.vmem %s654, %s1448 [#allocation3]
        %v1450 = vld [vmem:[%s1449] sm:$0xf]
        %v1451 = vld [vmem:[%s1449 + $0x8] sm:$0xf]
        %v1452 = vld [vmem:[%s1449 + $0x10] sm:$0xf]
        %v1453 = vld [vmem:[%s1449 + $0x18] sm:$0xf]
        %v1454 = vld [vmem:[%s1449 + $0x20] sm:$0xf]
        %v1455 = vld [vmem:[%s1449 + $0x28] sm:$0xf]
        %s1456 = scalar_lea.vmem %s1, 12
        %v1457 = vld [vmem:[%s1456] sm:$0x3]
        %v1464 = vunpack.c.l.b16 %v1450
        %v1465 = vunpack.c.l.b16 %v1451
        %v1466 = vunpack.c.l.b16 %v1452
        %v1467 = vunpack.c.l.b16 %v1453
        %v1468 = vunpack.c.l.b16 %v1454
        %v1469 = vunpack.c.l.b16 %v1455
        %v1470 = vpack.c.b16 %v1465, %v1464
        %v1471 = vpack.c.b16 %v1467, %v1466
        %v1472 = vpack.c.b16 %v1469, %v1468
        %v1474 = vsel %vm722, %v1470, 0
        %v1477 = vsel %vm722, %v1471, 0
        %v1480 = vsel %vm722, %v1472, 0
        %v1483 = vsel %vm732, %v1457, 0
        %1485 = vmatprep.subr.bf16.mxu0 0
        %1486 = vmatpush1.bf16.msra.mxu0 0
        %1487 = vmatprep.subr.bf16.mxu0 0
        %1488 = vmatpush1.bf16.msra.mxu0 0
        %1489 = vmatprep.subr.bf16.mxu0 0
        %1490 = vmatpush1.bf16.msra.mxu0 0
        %1491 = vmatprep.subr.bf16.mxu0 0
        %1492 = vmatpush1.bf16.msra.mxu0 0
        %1493 = vmatprep.subr.bf16.mxu0 0
        %1494 = vmatpush1.bf16.msra.mxu0 0
        %1495 = vmatprep.subr.bf16.mxu0 0
        %1496 = vmatpush1.bf16.msra.mxu0 0
        %1497 = vmatprep.subr.bf16.mxu0 0
        %1498 = vmatpush1.bf16.msra.mxu0 0
        %1499 = vmatprep.subr.bf16.mxu0 0
        %1500 = vmatpush1.bf16.msra.mxu0 %v1483
        %1501 = vmatprep.subr.bf16.mxu0 0
        %1502 = vmatpush2.bf16.msra.mxu0 0
        %1503 = vmatprep.subr.bf16.mxu0 0
        %1504 = vmatpush2.bf16.msra.mxu0 0
        %1505 = vmatprep.subr.bf16.mxu0 0
        %1506 = vmatpush2.bf16.msra.mxu0 0
        %1507 = vmatprep.subr.bf16.mxu0 0
        %1508 = vmatpush2.bf16.msra.mxu0 0
        %1509 = vmatprep.subr.bf16.mxu0 0
        %1510 = vmatpush2.bf16.msra.mxu0 0
        %1511 = vmatprep.subr.bf16.mxu0 0
        %1512 = vmatpush2.bf16.msra.mxu0 0
        %1513 = vmatprep.subr.bf16.mxu0 0
        %1514 = vmatpush2.bf16.msra.mxu0 0
        %1515 = vmatprep.subr.bf16.mxu0 0
        %1516 = vmatpush2.bf16.msra.mxu0 0
        %1517 = vmatprep.mubr.bf16.mxu0 0
        %1518 = vmatmul.mubr.bf16.gmra.mxu0 %v1474
        %v1519 = vpop.f32.mrf.mxu0
        %v1520 = vadd.f32 0.0, %v1519
        %v1521 = vpop.f32.mrf.mxu0
        %v1522 = vpop.f32.mrf.mxu0
        %v1523 = vadd.f32 0.0, %v1522
        %v1524 = vpop.f32.mrf.mxu0
        %1525 = vmatprep.mubr.bf16.mxu0 0
        %1526 = vmatmul.mubr.bf16.gmra.mxu0 %v1477
        %v1527 = vpop.f32.mrf.mxu0
        %v1528 = vadd.f32 0.0, %v1527
        %v1529 = vpop.f32.mrf.mxu0
        %v1530 = vpop.f32.mrf.mxu0
        %v1531 = vadd.f32 0.0, %v1530
        %v1532 = vpop.f32.mrf.mxu0
        %1533 = vmatprep.mubr.bf16.mxu0 0
        %1534 = vmatmul.mubr.bf16.gmra.mxu0 %v1480
        %v1535 = vpop.f32.mrf.mxu0
        %v1536 = vadd.f32 0.0, %v1535
        %v1537 = vpop.f32.mrf.mxu0
        %v1538 = vpop.f32.mrf.mxu0
        %v1539 = vadd.f32 0.0, %v1538
        %v1540 = vpop.f32.mrf.mxu0
        %1541 = vdwg.mxu0
        %v1542 = vadd.f32 %v1440, %v1520
        %v1543 = vadd.f32 %v1441, %v1523
        %v1544 = vadd.f32 %v1442, %v1528
        %v1545 = vadd.f32 %v1443, %v1531
        %v1546 = vadd.f32 %v1444, %v1536
        %v1547 = vadd.f32 %v1445, %v1539
        %s1548 = sadd.s32 %s1447, 22
        %s1549 = smul.addr %s1548, 4
        %s1550 = scalar_lea.vmem %s654, %s1549 [#allocation3]
        %v1551 = vld [vmem:[%s1550] sm:$0xf]
        %v1552 = vld [vmem:[%s1550 + $0x8] sm:$0xf]
        %v1553 = vld [vmem:[%s1550 + $0x10] sm:$0xf]
        %v1554 = vld [vmem:[%s1550 + $0x18] sm:$0xf]
        %v1555 = vld [vmem:[%s1550 + $0x20] sm:$0xf]
        %v1556 = vld [vmem:[%s1550 + $0x28] sm:$0xf]
        %s1557 = scalar_lea.vmem %s1, 14
        %v1558 = vld [vmem:[%s1557] sm:$0x3]
        %v1565 = vunpack.c.l.b16 %v1551
        %v1566 = vunpack.c.l.b16 %v1552
        %v1567 = vunpack.c.l.b16 %v1553
        %v1568 = vunpack.c.l.b16 %v1554
        %v1569 = vunpack.c.l.b16 %v1555
        %v1570 = vunpack.c.l.b16 %v1556
        %v1571 = vpack.c.b16 %v1566, %v1565
        %v1572 = vpack.c.b16 %v1568, %v1567
        %v1573 = vpack.c.b16 %v1570, %v1569
        %v1575 = vsel %vm722, %v1571, 0
        %v1578 = vsel %vm722, %v1572, 0
        %v1581 = vsel %vm722, %v1573, 0
        %v1584 = vsel %vm732, %v1558, 0
        %1586 = vmatprep.subr.bf16.mxu0 0
        %1587 = vmatpush1.bf16.msra.mxu0 0
        %1588 = vmatprep.subr.bf16.mxu0 0
        %1589 = vmatpush1.bf16.msra.mxu0 0
        %1590 = vmatprep.subr.bf16.mxu0 0
        %1591 = vmatpush1.bf16.msra.mxu0 0
        %1592 = vmatprep.subr.bf16.mxu0 0
        %1593 = vmatpush1.bf16.msra.mxu0 0
        %1594 = vmatprep.subr.bf16.mxu0 0
        %1595 = vmatpush1.bf16.msra.mxu0 0
        %1596 = vmatprep.subr.bf16.mxu0 0
        %1597 = vmatpush1.bf16.msra.mxu0 0
        %1598 = vmatprep.subr.bf16.mxu0 0
        %1599 = vmatpush1.bf16.msra.mxu0 0
        %1600 = vmatprep.subr.bf16.mxu0 0
        %1601 = vmatpush1.bf16.msra.mxu0 %v1584
        %1602 = vmatprep.subr.bf16.mxu0 0
        %1603 = vmatpush2.bf16.msra.mxu0 0
        %1604 = vmatprep.subr.bf16.mxu0 0
        %1605 = vmatpush2.bf16.msra.mxu0 0
        %1606 = vmatprep.subr.bf16.mxu0 0
        %1607 = vmatpush2.bf16.msra.mxu0 0
        %1608 = vmatprep.subr.bf16.mxu0 0
        %1609 = vmatpush2.bf16.msra.mxu0 0
        %1610 = vmatprep.subr.bf16.mxu0 0
        %1611 = vmatpush2.bf16.msra.mxu0 0
        %1612 = vmatprep.subr.bf16.mxu0 0
        %1613 = vmatpush2.bf16.msra.mxu0 0
        %1614 = vmatprep.subr.bf16.mxu0 0
        %1615 = vmatpush2.bf16.msra.mxu0 0
        %1616 = vmatprep.subr.bf16.mxu0 0
        %1617 = vmatpush2.bf16.msra.mxu0 0
        %1618 = vmatprep.mubr.bf16.mxu0 0
        %1619 = vmatmul.mubr.bf16.gmra.mxu0 %v1575
        %v1620 = vpop.f32.mrf.mxu0
        %v1621 = vadd.f32 0.0, %v1620
        %v1622 = vpop.f32.mrf.mxu0
        %v1623 = vpop.f32.mrf.mxu0
        %v1624 = vadd.f32 0.0, %v1623
        %v1625 = vpop.f32.mrf.mxu0
        %1626 = vmatprep.mubr.bf16.mxu0 0
        %1627 = vmatmul.mubr.bf16.gmra.mxu0 %v1578
        %v1628 = vpop.f32.mrf.mxu0
        %v1629 = vadd.f32 0.0, %v1628
        %v1630 = vpop.f32.mrf.mxu0
        %v1631 = vpop.f32.mrf.mxu0
        %v1632 = vadd.f32 0.0, %v1631
        %v1633 = vpop.f32.mrf.mxu0
        %1634 = vmatprep.mubr.bf16.mxu0 0
        %1635 = vmatmul.mubr.bf16.gmra.mxu0 %v1581
        %v1636 = vpop.f32.mrf.mxu0
        %v1637 = vadd.f32 0.0, %v1636
        %v1638 = vpop.f32.mrf.mxu0
        %v1639 = vpop.f32.mrf.mxu0
        %v1640 = vadd.f32 0.0, %v1639
        %v1641 = vpop.f32.mrf.mxu0
        %1642 = vdwg.mxu0
        %v1643 = vadd.f32 %v1542, %v1621
        %v1644 = vadd.f32 %v1543, %v1624
        %v1645 = vadd.f32 %v1544, %v1629
        %v1646 = vadd.f32 %v1545, %v1632
        %v1647 = vadd.f32 %v1546, %v1637
        %v1648 = vadd.f32 %v1547, %v1640
        %v1649 = vld [vmem:[%s1449] sm:$0xf]
        %v1650 = vld [vmem:[%s1449 + $0x4] sm:$0x1]
        %v1651 = vld [vmem:[%s1449 + $0x8] sm:$0xf]
        %v1652 = vld [vmem:[%s1449 + $0xc] sm:$0x1]
        %v1653 = vld [vmem:[%s1449 + $0x10] sm:$0xf]
        %v1654 = vld [vmem:[%s1449 + $0x14] sm:$0x1]
        %v1655 = vld [vmem:[%s1449 + $0x18] sm:$0xf]
        %v1656 = vld [vmem:[%s1449 + $0x1c] sm:$0x1]
        %v1657 = vld [vmem:[%s1449 + $0x20] sm:$0xf]
        %v1658 = vld [vmem:[%s1449 + $0x24] sm:$0x1]
        %v1659 = vld [vmem:[%s1449 + $0x28] sm:$0xf]
        %v1660 = vld [vmem:[%s1449 + $0x2c] sm:$0x1]
        %v1662 = vshrl.u32 %v1649, 16
        %v1664 = vrot.slane %v1662, 4
        %v1665 = vshll.u32 %v1649, 16
        %v1667 = vrot.slane %v1665, 5
        %v1668 = vor.u32 %v1664, %v1667
        %v1669 = vrot.slane %v1668, 4
        %v1671 = vshll.u32 %v1650, 16
        %v1673 = vrot.slane %v1671, 5
        %v1674 = vsel %vm891, %v1669, %v1673
        %v1676 = vshrl.u32 %v1651, 16
        %v1678 = vrot.slane %v1676, 4
        %v1679 = vshll.u32 %v1651, 16
        %v1681 = vrot.slane %v1679, 5
        %v1682 = vor.u32 %v1678, %v1681
        %v1683 = vrot.slane %v1682, 4
        %v1685 = vshll.u32 %v1652, 16
        %v1687 = vrot.slane %v1685, 5
        %v1688 = vsel %vm891, %v1683, %v1687
        %v1690 = vshrl.u32 %v1653, 16
        %v1692 = vrot.slane %v1690, 4
        %v1693 = vshll.u32 %v1653, 16
        %v1695 = vrot.slane %v1693, 5
        %v1696 = vor.u32 %v1692, %v1695
        %v1697 = vrot.slane %v1696, 4
        %v1699 = vshll.u32 %v1654, 16
        %v1701 = vrot.slane %v1699, 5
        %v1702 = vsel %vm891, %v1697, %v1701
        %v1704 = vshrl.u32 %v1655, 16
        %v1706 = vrot.slane %v1704, 4
        %v1707 = vshll.u32 %v1655, 16
        %v1709 = vrot.slane %v1707, 5
        %v1710 = vor.u32 %v1706, %v1709
        %v1711 = vrot.slane %v1710, 4
        %v1713 = vshll.u32 %v1656, 16
        %v1715 = vrot.slane %v1713, 5
        %v1716 = vsel %vm891, %v1711, %v1715
        %v1718 = vshrl.u32 %v1657, 16
        %v1720 = vrot.slane %v1718, 4
        %v1721 = vshll.u32 %v1657, 16
        %v1723 = vrot.slane %v1721, 5
        %v1724 = vor.u32 %v1720, %v1723
        %v1725 = vrot.slane %v1724, 4
        %v1727 = vshll.u32 %v1658, 16
        %v1729 = vrot.slane %v1727, 5
        %v1730 = vsel %vm891, %v1725, %v1729
        %v1732 = vshrl.u32 %v1659, 16
        %v1734 = vrot.slane %v1732, 4
        %v1735 = vshll.u32 %v1659, 16
        %v1737 = vrot.slane %v1735, 5
        %v1738 = vor.u32 %v1734, %v1737
        %v1739 = vrot.slane %v1738, 4
        %v1741 = vshll.u32 %v1660, 16
        %v1743 = vrot.slane %v1741, 5
        %v1744 = vsel %vm891, %v1739, %v1743
        %s1745 = scalar_lea.vmem %s1, 16
        %v1746 = vld [vmem:[%s1745] sm:$0x3]
        %v1747 = vunpack.c.l.b16 %v1674
        %v1748 = vunpack.c.l.b16 %v1688
        %v1749 = vunpack.c.l.b16 %v1702
        %v1750 = vunpack.c.l.b16 %v1716
        %v1751 = vunpack.c.l.b16 %v1730
        %v1752 = vunpack.c.l.b16 %v1744
        %v1753 = vpack.c.b16 %v1748, %v1747
        %v1754 = vpack.c.b16 %v1750, %v1749
        %v1755 = vpack.c.b16 %v1752, %v1751
        %v1757 = vsel %vm722, %v1753, 0
        %v1760 = vsel %vm722, %v1754, 0
        %v1763 = vsel %vm722, %v1755, 0
        %v1766 = vsel %vm732, %v1746, 0
        %1768 = vmatprep.subr.bf16.mxu0 0
        %1769 = vmatpush1.bf16.msra.mxu0 0
        %1770 = vmatprep.subr.bf16.mxu0 0
        %1771 = vmatpush1.bf16.msra.mxu0 0
        %1772 = vmatprep.subr.bf16.mxu0 0
        %1773 = vmatpush1.bf16.msra.mxu0 0
        %1774 = vmatprep.subr.bf16.mxu0 0
        %1775 = vmatpush1.bf16.msra.mxu0 0
        %1776 = vmatprep.subr.bf16.mxu0 0
        %1777 = vmatpush1.bf16.msra.mxu0 0
        %1778 = vmatprep.subr.bf16.mxu0 0
        %1779 = vmatpush1.bf16.msra.mxu0 0
        %1780 = vmatprep.subr.bf16.mxu0 0
        %1781 = vmatpush1.bf16.msra.mxu0 0
        %1782 = vmatprep.subr.bf16.mxu0 0
        %1783 = vmatpush1.bf16.msra.mxu0 %v1766
        %1784 = vmatprep.subr.bf16.mxu0 0
        %1785 = vmatpush2.bf16.msra.mxu0 0
        %1786 = vmatprep.subr.bf16.mxu0 0
        %1787 = vmatpush2.bf16.msra.mxu0 0
        %1788 = vmatprep.subr.bf16.mxu0 0
        %1789 = vmatpush2.bf16.msra.mxu0 0
        %1790 = vmatprep.subr.bf16.mxu0 0
        %1791 = vmatpush2.bf16.msra.mxu0 0
        %1792 = vmatprep.subr.bf16.mxu0 0
        %1793 = vmatpush2.bf16.msra.mxu0 0
        %1794 = vmatprep.subr.bf16.mxu0 0
        %1795 = vmatpush2.bf16.msra.mxu0 0
        %1796 = vmatprep.subr.bf16.mxu0 0
        %1797 = vmatpush2.bf16.msra.mxu0 0
        %1798 = vmatprep.subr.bf16.mxu0 0
        %1799 = vmatpush2.bf16.msra.mxu0 0
        %1800 = vmatprep.mubr.bf16.mxu0 0
        %1801 = vmatmul.mubr.bf16.gmra.mxu0 %v1757
        %v1802 = vpop.f32.mrf.mxu0
        %v1803 = vadd.f32 0.0, %v1802
        %v1804 = vpop.f32.mrf.mxu0
        %v1805 = vpop.f32.mrf.mxu0
        %v1806 = vadd.f32 0.0, %v1805
        %v1807 = vpop.f32.mrf.mxu0
        %1808 = vmatprep.mubr.bf16.mxu0 0
        %1809 = vmatmul.mubr.bf16.gmra.mxu0 %v1760
        %v1810 = vpop.f32.mrf.mxu0
        %v1811 = vadd.f32 0.0, %v1810
        %v1812 = vpop.f32.mrf.mxu0
        %v1813 = vpop.f32.mrf.mxu0
        %v1814 = vadd.f32 0.0, %v1813
        %v1815 = vpop.f32.mrf.mxu0
        %1816 = vmatprep.mubr.bf16.mxu0 0
        %1817 = vmatmul.mubr.bf16.gmra.mxu0 %v1763
        %v1818 = vpop.f32.mrf.mxu0
        %v1819 = vadd.f32 0.0, %v1818
        %v1820 = vpop.f32.mrf.mxu0
        %v1821 = vpop.f32.mrf.mxu0
        %v1822 = vadd.f32 0.0, %v1821
        %v1823 = vpop.f32.mrf.mxu0
        %1824 = vdwg.mxu0
        %v1825 = vadd.f32 %v1643, %v1803
        %v1826 = vadd.f32 %v1644, %v1806
        %v1827 = vadd.f32 %v1645, %v1811
        %v1828 = vadd.f32 %v1646, %v1814
        %v1829 = vadd.f32 %v1647, %v1819
        %v1830 = vadd.f32 %v1648, %v1822
        %v1831 = vld [vmem:[%s2] sm:$0x1]
        %v1833 = vlaneseq
        %v1834 = vshrl.u32 %v1833, 7
        %v1835 = vsub.s32 0, %v1834
        %v1836 = vrot.slane %v1831, %v1835
        %v1838 = vadd.f32 %v1825, %v1836
        %v1839 = vadd.f32 %v1826, %v1836
        %v1840 = vadd.f32 %v1827, %v1836
        %v1841 = vadd.f32 %v1828, %v1836
        %v1842 = vadd.f32 %v1829, %v1836
        %v1843 = vadd.f32 %v1830, %v1836
        %v1844 = vmax.f32 %v1838, 0.0
        %v1845 = vmax.f32 %v1839, 0.0
        %v1846 = vmax.f32 %v1840, 0.0
        %v1847 = vmax.f32 %v1841, 0.0
        %v1848 = vmax.f32 %v1842, 0.0
        %v1849 = vmax.f32 %v1843, 0.0
        %v1850 = vpack.c.bf16 %v1845, %v1844
        %v1851 = vpack.c.bf16 %v1847, %v1846
        %v1852 = vpack.c.bf16 %v1849, %v1848
        %v1856 = vunpack.c.l.b16 %v1850
        %v1857 = vunpack.c.h.b16 %v1850
        %v1858 = vunpack.c.l.b16 %v1851
        %v1859 = vunpack.c.h.b16 %v1851
        %v1860 = vunpack.c.l.b16 %v1852
        %v1861 = vunpack.c.h.b16 %v1852
        %v1862 = vpack.c.b16 %v1856, %v1856
        %v1863 = vpack.c.b16 %v1857, %v1857
        %v1864 = vpack.c.b16 %v1858, %v1858
        %v1865 = vpack.c.b16 %v1859, %v1859
        %v1866 = vpack.c.b16 %v1860, %v1860
        %v1867 = vpack.c.b16 %v1861, %v1861
        %v1869 = vshrl.u32 %v1862, 16
        %v1871 = vrot.slane %v1869, 7
        %v1872 = vshll.u32 %v1862, 16
        %v1874 = vor.u32 %v1871, %v1872
        %v1875 = vrot.slane %v1871, 4
        %v1877 = vshrl.u32 %v1863, 16
        %v1879 = vrot.slane %v1877, 7
        %v1880 = vshll.u32 %v1863, 16
        %v1882 = vor.u32 %v1879, %v1880
        %v1883 = vrot.slane %v1879, 4
        %v1885 = vshrl.u32 %v1864, 16
        %v1887 = vrot.slane %v1885, 7
        %v1888 = vshll.u32 %v1864, 16
        %v1890 = vor.u32 %v1887, %v1888
        %v1891 = vrot.slane %v1887, 4
        %v1893 = vshrl.u32 %v1865, 16
        %v1895 = vrot.slane %v1893, 7
        %v1896 = vshll.u32 %v1865, 16
        %v1898 = vor.u32 %v1895, %v1896
        %v1899 = vrot.slane %v1895, 4
        %v1901 = vshrl.u32 %v1866, 16
        %v1903 = vrot.slane %v1901, 7
        %v1904 = vshll.u32 %v1866, 16
        %v1906 = vor.u32 %v1903, %v1904
        %v1907 = vrot.slane %v1903, 4
        %v1909 = vshrl.u32 %v1867, 16
        %v1911 = vrot.slane %v1909, 7
        %v1912 = vshll.u32 %v1867, 16
        %v1914 = vor.u32 %v1911, %v1912
        %v1915 = vrot.slane %v1911, 4
        %vm1928 = vcmask 60416
        %vm1929 = vsmask.f32 7938
        %vm1930 = vmand %vm1928, %vm1929
        %v1931 = vld [vmem:[#allocation2] sm:$0xf]
        %v1932 = vsel %vm1930, %v1874, %v1931
        %1933 = vst [vmem:[#allocation2] sm:$0xf] %v1932
        %vm1934 = vcmask 57344
        %vm1935 = vsmask.f32 256
        %vm1936 = vmand %vm1934, %vm1935
        %v1937 = vld [vmem:[#allocation2 + $0x4] sm:$0x1]
        %v1938 = vsel %vm1936, %v1875, %v1937
        %1939 = vst [vmem:[#allocation2 + $0x4] sm:$0x1] %v1938
        %v1940 = vld [vmem:[#allocation2 + $0x8] sm:$0xf]
        %v1941 = vsel %vm1930, %v1882, %v1940
        %1942 = vst [vmem:[#allocation2 + $0x8] sm:$0xf] %v1941
        %v1943 = vld [vmem:[#allocation2 + $0xc] sm:$0x1]
        %v1944 = vsel %vm1936, %v1883, %v1943
        %1945 = vst [vmem:[#allocation2 + $0xc] sm:$0x1] %v1944
        %v1946 = vld [vmem:[#allocation2 + $0x10] sm:$0xf]
        %v1947 = vsel %vm1930, %v1890, %v1946
        %1948 = vst [vmem:[#allocation2 + $0x10] sm:$0xf] %v1947
        %v1949 = vld [vmem:[#allocation2 + $0x14] sm:$0x1]
        %v1950 = vsel %vm1936, %v1891, %v1949
        %1951 = vst [vmem:[#allocation2 + $0x14] sm:$0x1] %v1950
        %v1952 = vld [vmem:[#allocation2 + $0x18] sm:$0xf]
        %v1953 = vsel %vm1930, %v1898, %v1952
        %1954 = vst [vmem:[#allocation2 + $0x18] sm:$0xf] %v1953
        %v1955 = vld [vmem:[#allocation2 + $0x1c] sm:$0x1]
        %v1956 = vsel %vm1936, %v1899, %v1955
        %1957 = vst [vmem:[#allocation2 + $0x1c] sm:$0x1] %v1956
        %v1958 = vld [vmem:[#allocation2 + $0x20] sm:$0xf]
        %v1959 = vsel %vm1930, %v1906, %v1958
        %1960 = vst [vmem:[#allocation2 + $0x20] sm:$0xf] %v1959
        %v1961 = vld [vmem:[#allocation2 + $0x24] sm:$0x1]
        %v1962 = vsel %vm1936, %v1907, %v1961
        %1963 = vst [vmem:[#allocation2 + $0x24] sm:$0x1] %v1962
        %v1964 = vld [vmem:[#allocation2 + $0x28] sm:$0xf]
        %v1965 = vsel %vm1930, %v1914, %v1964
        %1966 = vst [vmem:[#allocation2 + $0x28] sm:$0xf] %v1965
        %v1967 = vld [vmem:[#allocation2 + $0x2c] sm:$0x1]
        %v1968 = vsel %vm1936, %v1915, %v1967
        %1969 = vst [vmem:[#allocation2 + $0x2c] sm:$0x1] %v1968
        %p1970 = scmp.eq.s32.totalorder %s26, 0
        // Predicated region
        $region90: #{tpu_custom_call.1} parent=84 // pred_check
          %p1971 = pneg %p1970
        $region91: #{tpu_custom_call.1} parent=84 // pred_check_branch
          %1973 = sbr.rel (%p1971) target = $region93
        $region92: #{tpu_custom_call.1} parent=84 // pred_region
          %v1974 = vld [vmem:[#allocation2] sm:$0x1]
          %v1975 = vsel %vm1936, 0, %v1974
          %1976 = vst [vmem:[#allocation2] sm:$0x1] %v1975
          %v1977 = vld [vmem:[#allocation2 + $0x8] sm:$0x1]
          %v1978 = vsel %vm1936, 0, %v1977
          %1979 = vst [vmem:[#allocation2 + $0x8] sm:$0x1] %v1978
          %v1980 = vld [vmem:[#allocation2 + $0x10] sm:$0x1]
          %v1981 = vsel %vm1936, 0, %v1980
          %1982 = vst [vmem:[#allocation2 + $0x10] sm:$0x1] %v1981
          %v1983 = vld [vmem:[#allocation2 + $0x18] sm:$0x1]
          %v1984 = vsel %vm1936, 0, %v1983
          %1985 = vst [vmem:[#allocation2 + $0x18] sm:$0x1] %v1984
          %v1986 = vld [vmem:[#allocation2 + $0x20] sm:$0x1]
          %v1987 = vsel %vm1936, 0, %v1986
          %1988 = vst [vmem:[#allocation2 + $0x20] sm:$0x1] %v1987
          %v1989 = vld [vmem:[#allocation2 + $0x28] sm:$0x1]
          %v1990 = vsel %vm1936, 0, %v1989
          %1991 = vst [vmem:[#allocation2 + $0x28] sm:$0x1] %v1990
          %vm1992 = vmand %vm1934, %vm1929
          %v1993 = vld [vmem:[#allocation2 + $0x4] sm:$0x1]
          %v1994 = vsel %vm1992, 0, %v1993
          %1995 = vst [vmem:[#allocation2 + $0x4] sm:$0x1] %v1994
          %v1996 = vld [vmem:[#allocation2 + $0xc] sm:$0x1]
          %v1997 = vsel %vm1992, 0, %v1996
          %1998 = vst [vmem:[#allocation2 + $0xc] sm:$0x1] %v1997
          %v1999 = vld [vmem:[#allocation2 + $0x14] sm:$0x1]
          %v2000 = vsel %vm1992, 0, %v1999
          %2001 = vst [vmem:[#allocation2 + $0x14] sm:$0x1] %v2000
          %v2002 = vld [vmem:[#allocation2 + $0x1c] sm:$0x1]
          %v2003 = vsel %vm1992, 0, %v2002
          %2004 = vst [vmem:[#allocation2 + $0x1c] sm:$0x1] %v2003
          %v2005 = vld [vmem:[#allocation2 + $0x24] sm:$0x1]
          %v2006 = vsel %vm1992, 0, %v2005
          %2007 = vst [vmem:[#allocation2 + $0x24] sm:$0x1] %v2006
          %v2008 = vld [vmem:[#allocation2 + $0x2c] sm:$0x1]
          %v2009 = vsel %vm1992, 0, %v2008
          %2010 = vst [vmem:[#allocation2 + $0x2c] sm:$0x1] %v2009
          %vm2011 = vcmask 60416
          %2012 = vst.msk [vmem:[#allocation2] sm:$0xf] %vm2011, 0
          %vm2013 = vcmask 57344
          %2014 = vst.msk [vmem:[#allocation2 + $0x4] sm:$0x1] %vm2013, 0
        $region93: #{tpu_custom_call.1} parent=84 // pred_fallthru
          _
        %p2015 = scmp.eq.s32.totalorder %s26, 1
        // Predicated region
        $region94: #{tpu_custom_call.1} parent=84 // pred_check
          %p2016 = pneg %p2015
        $region95: #{tpu_custom_call.1} parent=84 // pred_check_branch
          %2018 = sbr.rel (%p2016) target = $region97
        $region96: #{tpu_custom_call.1} parent=84 // pred_region
          %s2019 = scalar_lea.vmem [#allocation2], 40
          %vm2020 = vcmask 60416
          %2021 = vst.msk [vmem:[%s2019] sm:$0xf] %vm2020, 0
          %vm2022 = vcmask 57344
          %2023 = vst.msk [vmem:[%s2019 + $0x4] sm:$0x1] %vm2022, 0
        $region97: #{tpu_custom_call.1} parent=84 // pred_fallthru
          _
        %v2024 = vld [vmem:[#allocation2] sm:$0xf]
        %v2025 = vld [vmem:[#allocation2 + $0x8] sm:$0xf]
        %v2026 = vld [vmem:[#allocation2 + $0x10] sm:$0xf]
        %v2027 = vld [vmem:[#allocation2 + $0x18] sm:$0xf]
        %v2028 = vld [vmem:[%s3] sm:$0xf]
        %v2029 = vld [vmem:[#allocation2 + $0x4] sm:$0x1]
        %v2030 = vld [vmem:[#allocation2 + $0xc] sm:$0x1]
        %v2031 = vld [vmem:[#allocation2 + $0x14] sm:$0x1]
        %v2032 = vld [vmem:[#allocation2 + $0x1c] sm:$0x1]
        %v2034 = vshrl.u32 %v2024, 16
        %v2036 = vrot.slane %v2034, 4
        %v2037 = vshll.u32 %v2024, 16
        %v2039 = vrot.slane %v2037, 5
        %v2040 = vor.u32 %v2036, %v2039
        %v2041 = vrot.slane %v2040, 4
        %v2043 = vshll.u32 %v2029, 16
        %v2045 = vrot.slane %v2043, 5
        %v2046 = vsel %vm891, %v2041, %v2045
        %v2048 = vshrl.u32 %v2025, 16
        %v2050 = vrot.slane %v2048, 4
        %v2051 = vshll.u32 %v2025, 16
        %v2053 = vrot.slane %v2051, 5
        %v2054 = vor.u32 %v2050, %v2053
        %v2055 = vrot.slane %v2054, 4
        %v2057 = vshll.u32 %v2030, 16
        %v2059 = vrot.slane %v2057, 5
        %v2060 = vsel %vm891, %v2055, %v2059
        %v2062 = vshrl.u32 %v2026, 16
        %v2064 = vrot.slane %v2062, 4
        %v2065 = vshll.u32 %v2026, 16
        %v2067 = vrot.slane %v2065, 5
        %v2068 = vor.u32 %v2064, %v2067
        %v2069 = vrot.slane %v2068, 4
        %v2071 = vshll.u32 %v2031, 16
        %v2073 = vrot.slane %v2071, 5
        %v2074 = vsel %vm891, %v2069, %v2073
        %v2076 = vshrl.u32 %v2027, 16
        %v2078 = vrot.slane %v2076, 4
        %v2079 = vshll.u32 %v2027, 16
        %v2081 = vrot.slane %v2079, 5
        %v2082 = vor.u32 %v2078, %v2081
        %v2083 = vrot.slane %v2082, 4
        %v2085 = vshll.u32 %v2032, 16
        %v2087 = vrot.slane %v2085, 5
        %v2088 = vsel %vm891, %v2083, %v2087
        %s2089 = scalar_lea.vmem %s3, 4
        %v2090 = vld [vmem:[%s2089] sm:$0xf]
        %v2091 = vunpack.c.l.b16 %v2046
        %v2092 = vunpack.c.l.b16 %v2060
        %v2093 = vunpack.c.l.b16 %v2074
        %v2094 = vunpack.c.l.b16 %v2088
        %v2095 = vpack.c.b16 %v2092, %v2091
        %v2096 = vpack.c.b16 %v2094, %v2093
        %vm2097 = vcmask 64512
        %v2099 = vsel %vm2097, %v2095, 0
        %v2102 = vsel %vm2097, %v2096, 0
        %vm2104 = vcmask 1043456
        %v2106 = vsel %vm2104, %v2090, 0
        %2108 = vmatprep.subr.bf16.mxu0 0
        %2109 = vmatpush1.bf16.msra.mxu0 0
        %2110 = vmatprep.subr.bf16.mxu0 0
        %2111 = vmatpush1.bf16.msra.mxu0 0
        %2112 = vmatprep.subr.bf16.mxu0 0
        %2113 = vmatpush1.bf16.msra.mxu0 0
        %2114 = vmatprep.subr.bf16.mxu0 0
        %2115 = vmatpush1.bf16.msra.mxu0 0
        %2116 = vmatprep.subr.bf16.mxu0 0
        %2117 = vmatpush1.bf16.msra.mxu0 0
        %2118 = vmatprep.subr.bf16.mxu0 0
        %2119 = vmatpush1.bf16.msra.mxu0 0
        %2120 = vmatprep.subr.bf16.mxu0 0
        %2121 = vmatpush1.bf16.msra.mxu0 0
        %2122 = vmatprep.subr.bf16.mxu0 0
        %2123 = vmatpush1.bf16.msra.mxu0 %v2106
        %2124 = vmatprep.subr.bf16.mxu0 0
        %2125 = vmatpush2.bf16.msra.mxu0 0
        %2126 = vmatprep.subr.bf16.mxu0 0
        %2127 = vmatpush2.bf16.msra.mxu0 0
        %2128 = vmatprep.subr.bf16.mxu0 0
        %2129 = vmatpush2.bf16.msra.mxu0 0
        %2130 = vmatprep.subr.bf16.mxu0 0
        %2131 = vmatpush2.bf16.msra.mxu0 0
        %2132 = vmatprep.subr.bf16.mxu0 0
        %2133 = vmatpush2.bf16.msra.mxu0 0
        %2134 = vmatprep.subr.bf16.mxu0 0
        %2135 = vmatpush2.bf16.msra.mxu0 0
        %2136 = vmatprep.subr.bf16.mxu0 0
        %2137 = vmatpush2.bf16.msra.mxu0 0
        %2138 = vmatprep.subr.bf16.mxu0 0
        %2139 = vmatpush2.bf16.msra.mxu0 0
        %2140 = vmatprep.mubr.bf16.mxu0 0
        %2141 = vmatmul.mubr.bf16.gmra.mxu0 %v2099
        %v2142 = vpop.f32.mrf.mxu0
        %v2143 = vadd.f32 0.0, %v2142
        %v2144 = vpop.f32.mrf.mxu0
        %v2145 = vpop.f32.mrf.mxu0
        %v2146 = vadd.f32 0.0, %v2145
        %v2147 = vpop.f32.mrf.mxu0
        %2148 = vmatprep.mubr.bf16.mxu0 0
        %2149 = vmatmul.mubr.bf16.gmra.mxu0 %v2102
        %v2150 = vpop.f32.mrf.mxu0
        %v2151 = vadd.f32 0.0, %v2150
        %v2152 = vpop.f32.mrf.mxu0
        %v2153 = vpop.f32.mrf.mxu0
        %v2154 = vadd.f32 0.0, %v2153
        %v2155 = vpop.f32.mrf.mxu0
        %2156 = vdwg.mxu0
        %v2161 = vunpack.c.l.b16 %v2024
        %v2162 = vunpack.c.l.b16 %v2025
        %v2163 = vunpack.c.l.b16 %v2026
        %v2164 = vunpack.c.l.b16 %v2027
        %v2165 = vpack.c.b16 %v2162, %v2161
        %v2166 = vpack.c.b16 %v2164, %v2163
        %v2168 = vsel %vm2097, %v2165, 0
        %v2171 = vsel %vm2097, %v2166, 0
        %v2174 = vsel %vm2104, %v2028, 0
        %2176 = vmatprep.subr.bf16.mxu0 0
        %2177 = vmatpush1.bf16.msra.mxu0 0
        %2178 = vmatprep.subr.bf16.mxu0 0
        %2179 = vmatpush1.bf16.msra.mxu0 0
        %2180 = vmatprep.subr.bf16.mxu0 0
        %2181 = vmatpush1.bf16.msra.mxu0 0
        %2182 = vmatprep.subr.bf16.mxu0 0
        %2183 = vmatpush1.bf16.msra.mxu0 0
        %2184 = vmatprep.subr.bf16.mxu0 0
        %2185 = vmatpush1.bf16.msra.mxu0 0
        %2186 = vmatprep.subr.bf16.mxu0 0
        %2187 = vmatpush1.bf16.msra.mxu0 0
        %2188 = vmatprep.subr.bf16.mxu0 0
        %2189 = vmatpush1.bf16.msra.mxu0 0
        %2190 = vmatprep.subr.bf16.mxu0 0
        %2191 = vmatpush1.bf16.msra.mxu0 %v2174
        %2192 = vmatprep.subr.bf16.mxu0 0
        %2193 = vmatpush2.bf16.msra.mxu0 0
        %2194 = vmatprep.subr.bf16.mxu0 0
        %2195 = vmatpush2.bf16.msra.mxu0 0
        %2196 = vmatprep.subr.bf16.mxu0 0
        %2197 = vmatpush2.bf16.msra.mxu0 0
        %2198 = vmatprep.subr.bf16.mxu0 0
        %2199 = vmatpush2.bf16.msra.mxu0 0
        %2200 = vmatprep.subr.bf16.mxu0 0
        %2201 = vmatpush2.bf16.msra.mxu0 0
        %2202 = vmatprep.subr.bf16.mxu0 0
        %2203 = vmatpush2.bf16.msra.mxu0 0
        %2204 = vmatprep.subr.bf16.mxu0 0
        %2205 = vmatpush2.bf16.msra.mxu0 0
        %2206 = vmatprep.subr.bf16.mxu0 0
        %2207 = vmatpush2.bf16.msra.mxu0 0
        %2208 = vmatprep.mubr.bf16.mxu0 0
        %2209 = vmatmul.mubr.bf16.gmra.mxu0 %v2168
        %v2210 = vpop.f32.mrf.mxu0
        %v2211 = vadd.f32 %v2143, %v2210
        %v2212 = vpop.f32.mrf.mxu0
        %v2213 = vpop.f32.mrf.mxu0
        %v2214 = vadd.f32 %v2146, %v2213
        %v2215 = vpop.f32.mrf.mxu0
        %2216 = vmatprep.mubr.bf16.mxu0 0
        %2217 = vmatmul.mubr.bf16.gmra.mxu0 %v2171
        %v2218 = vpop.f32.mrf.mxu0
        %v2219 = vadd.f32 %v2151, %v2218
        %v2220 = vpop.f32.mrf.mxu0
        %v2221 = vpop.f32.mrf.mxu0
        %v2222 = vadd.f32 %v2154, %v2221
        %v2223 = vpop.f32.mrf.mxu0
        %2224 = vdwg.mxu0
        %v2225 = vld [vmem:[#allocation2] sm:$0xe]
        %v2226 = vld [vmem:[#allocation2 + $0x8] sm:$0xe]
        %v2227 = vld [vmem:[#allocation2 + $0x10] sm:$0xe]
        %v2228 = vld [vmem:[#allocation2 + $0x18] sm:$0xe]
        %vm2237 = vcmask 1042432
        %vm2238 = vcmask 1046532
        %vm2239 = vmor %vm2237, %vm2238
        %v2240 = vrot.slane %v2225, 5
        %v2241 = vrot.slane %v2240, 4
        %v2242 = vrot.slane %v2029, 5
        %v2243 = vsel %vm2239, %v2241, %v2242
        %v2244 = vrot.slane %v2226, 5
        %v2245 = vrot.slane %v2244, 4
        %v2246 = vrot.slane %v2030, 5
        %v2247 = vsel %vm2239, %v2245, %v2246
        %v2248 = vrot.slane %v2227, 5
        %v2249 = vrot.slane %v2248, 4
        %v2250 = vrot.slane %v2031, 5
        %v2251 = vsel %vm2239, %v2249, %v2250
        %v2252 = vrot.slane %v2228, 5
        %v2253 = vrot.slane %v2252, 4
        %v2254 = vrot.slane %v2032, 5
        %v2255 = vsel %vm2239, %v2253, %v2254
        %s2256 = scalar_lea.vmem %s3, 8
        %v2257 = vld [vmem:[%s2256] sm:$0xf]
        %v2258 = vunpack.c.l.b16 %v2243
        %v2259 = vunpack.c.l.b16 %v2247
        %v2260 = vunpack.c.l.b16 %v2251
        %v2261 = vunpack.c.l.b16 %v2255
        %v2262 = vpack.c.b16 %v2259, %v2258
        %v2263 = vpack.c.b16 %v2261, %v2260
        %v2265 = vsel %vm2097, %v2262, 0
        %v2268 = vsel %vm2097, %v2263, 0
        %v2271 = vsel %vm2104, %v2257, 0
        %2273 = vmatprep.subr.bf16.mxu0 0
        %2274 = vmatpush1.bf16.msra.mxu0 0
        %2275 = vmatprep.subr.bf16.mxu0 0
        %2276 = vmatpush1.bf16.msra.mxu0 0
        %2277 = vmatprep.subr.bf16.mxu0 0
        %2278 = vmatpush1.bf16.msra.mxu0 0
        %2279 = vmatprep.subr.bf16.mxu0 0
        %2280 = vmatpush1.bf16.msra.mxu0 0
        %2281 = vmatprep.subr.bf16.mxu0 0
        %2282 = vmatpush1.bf16.msra.mxu0 0
        %2283 = vmatprep.subr.bf16.mxu0 0
        %2284 = vmatpush1.bf16.msra.mxu0 0
        %2285 = vmatprep.subr.bf16.mxu0 0
        %2286 = vmatpush1.bf16.msra.mxu0 0
        %2287 = vmatprep.subr.bf16.mxu0 0
        %2288 = vmatpush1.bf16.msra.mxu0 %v2271
        %2289 = vmatprep.subr.bf16.mxu0 0
        %2290 = vmatpush2.bf16.msra.mxu0 0
        %2291 = vmatprep.subr.bf16.mxu0 0
        %2292 = vmatpush2.bf16.msra.mxu0 0
        %2293 = vmatprep.subr.bf16.mxu0 0
        %2294 = vmatpush2.bf16.msra.mxu0 0
        %2295 = vmatprep.subr.bf16.mxu0 0
        %2296 = vmatpush2.bf16.msra.mxu0 0
        %2297 = vmatprep.subr.bf16.mxu0 0
        %2298 = vmatpush2.bf16.msra.mxu0 0
        %2299 = vmatprep.subr.bf16.mxu0 0
        %2300 = vmatpush2.bf16.msra.mxu0 0
        %2301 = vmatprep.subr.bf16.mxu0 0
        %2302 = vmatpush2.bf16.msra.mxu0 0
        %2303 = vmatprep.subr.bf16.mxu0 0
        %2304 = vmatpush2.bf16.msra.mxu0 0
        %2305 = vmatprep.mubr.bf16.mxu0 0
        %2306 = vmatmul.mubr.bf16.gmra.mxu0 %v2265
        %v2307 = vpop.f32.mrf.mxu0
        %v2308 = vadd.f32 0.0, %v2307
        %v2309 = vpop.f32.mrf.mxu0
        %v2310 = vpop.f32.mrf.mxu0
        %v2311 = vadd.f32 0.0, %v2310
        %v2312 = vpop.f32.mrf.mxu0
        %2313 = vmatprep.mubr.bf16.mxu0 0
        %2314 = vmatmul.mubr.bf16.gmra.mxu0 %v2268
        %v2315 = vpop.f32.mrf.mxu0
        %v2316 = vadd.f32 0.0, %v2315
        %v2317 = vpop.f32.mrf.mxu0
        %v2318 = vpop.f32.mrf.mxu0
        %v2319 = vadd.f32 0.0, %v2318
        %v2320 = vpop.f32.mrf.mxu0
        %2321 = vdwg.mxu0
        %v2322 = vadd.f32 %v2211, %v2308
        %v2323 = vadd.f32 %v2214, %v2311
        %v2324 = vadd.f32 %v2219, %v2316
        %v2325 = vadd.f32 %v2222, %v2319
        %s2326 = scalar_lea.vmem [#allocation2], 8
        %v2327 = vld [vmem:[%s2326] sm:$0xf]
        %v2328 = vld [vmem:[%s2326 + $0x8] sm:$0xf]
        %v2329 = vld [vmem:[%s2326 + $0x10] sm:$0xf]
        %v2330 = vld [vmem:[%s2326 + $0x18] sm:$0xf]
        %s2331 = scalar_lea.vmem %s3, 12
        %v2332 = vld [vmem:[%s2331] sm:$0xf]
        %v2337 = vunpack.c.l.b16 %v2327
        %v2338 = vunpack.c.l.b16 %v2328
        %v2339 = vunpack.c.l.b16 %v2329
        %v2340 = vunpack.c.l.b16 %v2330
        %v2341 = vpack.c.b16 %v2338, %v2337
        %v2342 = vpack.c.b16 %v2340, %v2339
        %v2344 = vsel %vm2097, %v2341, 0
        %v2347 = vsel %vm2097, %v2342, 0
        %v2350 = vsel %vm2104, %v2332, 0
        %2352 = vmatprep.subr.bf16.mxu0 0
        %2353 = vmatpush1.bf16.msra.mxu0 0
        %2354 = vmatprep.subr.bf16.mxu0 0
        %2355 = vmatpush1.bf16.msra.mxu0 0
        %2356 = vmatprep.subr.bf16.mxu0 0
        %2357 = vmatpush1.bf16.msra.mxu0 0
        %2358 = vmatprep.subr.bf16.mxu0 0
        %2359 = vmatpush1.bf16.msra.mxu0 0
        %2360 = vmatprep.subr.bf16.mxu0 0
        %2361 = vmatpush1.bf16.msra.mxu0 0
        %2362 = vmatprep.subr.bf16.mxu0 0
        %2363 = vmatpush1.bf16.msra.mxu0 0
        %2364 = vmatprep.subr.bf16.mxu0 0
        %2365 = vmatpush1.bf16.msra.mxu0 0
        %2366 = vmatprep.subr.bf16.mxu0 0
        %2367 = vmatpush1.bf16.msra.mxu0 %v2350
        %2368 = vmatprep.subr.bf16.mxu0 0
        %2369 = vmatpush2.bf16.msra.mxu0 0
        %2370 = vmatprep.subr.bf16.mxu0 0
        %2371 = vmatpush2.bf16.msra.mxu0 0
        %2372 = vmatprep.subr.bf16.mxu0 0
        %2373 = vmatpush2.bf16.msra.mxu0 0
        %2374 = vmatprep.subr.bf16.mxu0 0
        %2375 = vmatpush2.bf16.msra.mxu0 0
        %2376 = vmatprep.subr.bf16.mxu0 0
        %2377 = vmatpush2.bf16.msra.mxu0 0
        %2378 = vmatprep.subr.bf16.mxu0 0
        %2379 = vmatpush2.bf16.msra.mxu0 0
        %2380 = vmatprep.subr.bf16.mxu0 0
        %2381 = vmatpush2.bf16.msra.mxu0 0
        %2382 = vmatprep.subr.bf16.mxu0 0
        %2383 = vmatpush2.bf16.msra.mxu0 0
        %2384 = vmatprep.mubr.bf16.mxu0 0
        %2385 = vmatmul.mubr.bf16.gmra.mxu0 %v2344
        %v2386 = vpop.f32.mrf.mxu0
        %v2387 = vadd.f32 0.0, %v2386
        %v2388 = vpop.f32.mrf.mxu0
        %v2389 = vpop.f32.mrf.mxu0
        %v2390 = vadd.f32 0.0, %v2389
        %v2391 = vpop.f32.mrf.mxu0
        %2392 = vmatprep.mubr.bf16.mxu0 0
        %2393 = vmatmul.mubr.bf16.gmra.mxu0 %v2347
        %v2394 = vpop.f32.mrf.mxu0
        %v2395 = vadd.f32 0.0, %v2394
        %v2396 = vpop.f32.mrf.mxu0
        %v2397 = vpop.f32.mrf.mxu0
        %v2398 = vadd.f32 0.0, %v2397
        %v2399 = vpop.f32.mrf.mxu0
        %2400 = vdwg.mxu0
        %v2401 = vadd.f32 %v2322, %v2387
        %v2402 = vadd.f32 %v2323, %v2390
        %v2403 = vadd.f32 %v2324, %v2395
        %v2404 = vadd.f32 %v2325, %v2398
        %v2405 = vld [vmem:[%s2326] sm:$0xf]
        %v2406 = vld [vmem:[%s2326 + $0x4] sm:$0x1]
        %v2407 = vld [vmem:[%s2326 + $0x8] sm:$0xf]
        %v2408 = vld [vmem:[%s2326 + $0xc] sm:$0x1]
        %v2409 = vld [vmem:[%s2326 + $0x10] sm:$0xf]
        %v2410 = vld [vmem:[%s2326 + $0x14] sm:$0x1]
        %v2411 = vld [vmem:[%s2326 + $0x18] sm:$0xf]
        %v2412 = vld [vmem:[%s2326 + $0x1c] sm:$0x1]
        %v2414 = vshrl.u32 %v2405, 16
        %v2416 = vrot.slane %v2414, 4
        %v2417 = vshll.u32 %v2405, 16
        %v2419 = vrot.slane %v2417, 5
        %v2420 = vor.u32 %v2416, %v2419
        %v2421 = vrot.slane %v2420, 4
        %v2423 = vshll.u32 %v2406, 16
        %v2425 = vrot.slane %v2423, 5
        %v2426 = vsel %vm891, %v2421, %v2425
        %v2428 = vshrl.u32 %v2407, 16
        %v2430 = vrot.slane %v2428, 4
        %v2431 = vshll.u32 %v2407, 16
        %v2433 = vrot.slane %v2431, 5
        %v2434 = vor.u32 %v2430, %v2433
        %v2435 = vrot.slane %v2434, 4
        %v2437 = vshll.u32 %v2408, 16
        %v2439 = vrot.slane %v2437, 5
        %v2440 = vsel %vm891, %v2435, %v2439
        %v2442 = vshrl.u32 %v2409, 16
        %v2444 = vrot.slane %v2442, 4
        %v2445 = vshll.u32 %v2409, 16
        %v2447 = vrot.slane %v2445, 5
        %v2448 = vor.u32 %v2444, %v2447
        %v2449 = vrot.slane %v2448, 4
        %v2451 = vshll.u32 %v2410, 16
        %v2453 = vrot.slane %v2451, 5
        %v2454 = vsel %vm891, %v2449, %v2453
        %v2456 = vshrl.u32 %v2411, 16
        %v2458 = vrot.slane %v2456, 4
        %v2459 = vshll.u32 %v2411, 16
        %v2461 = vrot.slane %v2459, 5
        %v2462 = vor.u32 %v2458, %v2461
        %v2463 = vrot.slane %v2462, 4
        %v2465 = vshll.u32 %v2412, 16
        %v2467 = vrot.slane %v2465, 5
        %v2468 = vsel %vm891, %v2463, %v2467
        %s2469 = scalar_lea.vmem %s3, 16
        %v2470 = vld [vmem:[%s2469] sm:$0xf]
        %v2471 = vunpack.c.l.b16 %v2426
        %v2472 = vunpack.c.l.b16 %v2440
        %v2473 = vunpack.c.l.b16 %v2454
        %v2474 = vunpack.c.l.b16 %v2468
        %v2475 = vpack.c.b16 %v2472, %v2471
        %v2476 = vpack.c.b16 %v2474, %v2473
        %v2478 = vsel %vm2097, %v2475, 0
        %v2481 = vsel %vm2097, %v2476, 0
        %v2484 = vsel %vm2104, %v2470, 0
        %2486 = vmatprep.subr.bf16.mxu0 0
        %2487 = vmatpush1.bf16.msra.mxu0 0
        %2488 = vmatprep.subr.bf16.mxu0 0
        %2489 = vmatpush1.bf16.msra.mxu0 0
        %2490 = vmatprep.subr.bf16.mxu0 0
        %2491 = vmatpush1.bf16.msra.mxu0 0
        %2492 = vmatprep.subr.bf16.mxu0 0
        %2493 = vmatpush1.bf16.msra.mxu0 0
        %2494 = vmatprep.subr.bf16.mxu0 0
        %2495 = vmatpush1.bf16.msra.mxu0 0
        %2496 = vmatprep.subr.bf16.mxu0 0
        %2497 = vmatpush1.bf16.msra.mxu0 0
        %2498 = vmatprep.subr.bf16.mxu0 0
        %2499 = vmatpush1.bf16.msra.mxu0 0
        %2500 = vmatprep.subr.bf16.mxu0 0
        %2501 = vmatpush1.bf16.msra.mxu0 %v2484
        %2502 = vmatprep.subr.bf16.mxu0 0
        %2503 = vmatpush2.bf16.msra.mxu0 0
        %2504 = vmatprep.subr.bf16.mxu0 0
        %2505 = vmatpush2.bf16.msra.mxu0 0
        %2506 = vmatprep.subr.bf16.mxu0 0
        %2507 = vmatpush2.bf16.msra.mxu0 0
        %2508 = vmatprep.subr.bf16.mxu0 0
        %2509 = vmatpush2.bf16.msra.mxu0 0
        %2510 = vmatprep.subr.bf16.mxu0 0
        %2511 = vmatpush2.bf16.msra.mxu0 0
        %2512 = vmatprep.subr.bf16.mxu0 0
        %2513 = vmatpush2.bf16.msra.mxu0 0
        %2514 = vmatprep.subr.bf16.mxu0 0
        %2515 = vmatpush2.bf16.msra.mxu0 0
        %2516 = vmatprep.subr.bf16.mxu0 0
        %2517 = vmatpush2.bf16.msra.mxu0 0
        %2518 = vmatprep.mubr.bf16.mxu0 0
        %2519 = vmatmul.mubr.bf16.gmra.mxu0 %v2478
        %v2520 = vpop.f32.mrf.mxu0
        %v2521 = vadd.f32 0.0, %v2520
        %v2522 = vpop.f32.mrf.mxu0
        %v2523 = vpop.f32.mrf.mxu0
        %v2524 = vadd.f32 0.0, %v2523
        %v2525 = vpop.f32.mrf.mxu0
        %2526 = vmatprep.mubr.bf16.mxu0 0
        %2527 = vmatmul.mubr.bf16.gmra.mxu0 %v2481
        %v2528 = vpop.f32.mrf.mxu0
        %v2529 = vadd.f32 0.0, %v2528
        %v2530 = vpop.f32.mrf.mxu0
        %v2531 = vpop.f32.mrf.mxu0
        %v2532 = vadd.f32 0.0, %v2531
        %v2533 = vpop.f32.mrf.mxu0
        %2534 = vdwg.mxu0
        %v2535 = vadd.f32 %v2401, %v2521
        %v2536 = vadd.f32 %v2402, %v2524
        %v2537 = vadd.f32 %v2403, %v2529
        %v2538 = vadd.f32 %v2404, %v2532
        %v2539 = vld [vmem:[%s2326] sm:$0xe]
        %v2540 = vld [vmem:[%s2326 + $0x8] sm:$0xe]
        %v2541 = vld [vmem:[%s2326 + $0x10] sm:$0xe]
        %v2542 = vld [vmem:[%s2326 + $0x18] sm:$0xe]
        %v2551 = vrot.slane %v2539, 5
        %v2552 = vrot.slane %v2551, 4
        %v2553 = vrot.slane %v2406, 5
        %v2554 = vsel %vm2239, %v2552, %v2553
        %v2555 = vrot.slane %v2540, 5
        %v2556 = vrot.slane %v2555, 4
        %v2557 = vrot.slane %v2408, 5
        %v2558 = vsel %vm2239, %v2556, %v2557
        %v2559 = vrot.slane %v2541, 5
        %v2560 = vrot.slane %v2559, 4
        %v2561 = vrot.slane %v2410, 5
        %v2562 = vsel %vm2239, %v2560, %v2561
        %v2563 = vrot.slane %v2542, 5
        %v2564 = vrot.slane %v2563, 4
        %v2565 = vrot.slane %v2412, 5
        %v2566 = vsel %vm2239, %v2564, %v2565
        %s2567 = scalar_lea.vmem %s3, 20
        %v2568 = vld [vmem:[%s2567] sm:$0xf]
        %v2569 = vunpack.c.l.b16 %v2554
        %v2570 = vunpack.c.l.b16 %v2558
        %v2571 = vunpack.c.l.b16 %v2562
        %v2572 = vunpack.c.l.b16 %v2566
        %v2573 = vpack.c.b16 %v2570, %v2569
        %v2574 = vpack.c.b16 %v2572, %v2571
        %v2576 = vsel %vm2097, %v2573, 0
        %v2579 = vsel %vm2097, %v2574, 0
        %v2582 = vsel %vm2104, %v2568, 0
        %2584 = vmatprep.subr.bf16.mxu0 0
        %2585 = vmatpush1.bf16.msra.mxu0 0
        %2586 = vmatprep.subr.bf16.mxu0 0
        %2587 = vmatpush1.bf16.msra.mxu0 0
        %2588 = vmatprep.subr.bf16.mxu0 0
        %2589 = vmatpush1.bf16.msra.mxu0 0
        %2590 = vmatprep.subr.bf16.mxu0 0
        %2591 = vmatpush1.bf16.msra.mxu0 0
        %2592 = vmatprep.subr.bf16.mxu0 0
        %2593 = vmatpush1.bf16.msra.mxu0 0
        %2594 = vmatprep.subr.bf16.mxu0 0
        %2595 = vmatpush1.bf16.msra.mxu0 0
        %2596 = vmatprep.subr.bf16.mxu0 0
        %2597 = vmatpush1.bf16.msra.mxu0 0
        %2598 = vmatprep.subr.bf16.mxu0 0
        %2599 = vmatpush1.bf16.msra.mxu0 %v2582
        %2600 = vmatprep.subr.bf16.mxu0 0
        %2601 = vmatpush2.bf16.msra.mxu0 0
        %2602 = vmatprep.subr.bf16.mxu0 0
        %2603 = vmatpush2.bf16.msra.mxu0 0
        %2604 = vmatprep.subr.bf16.mxu0 0
        %2605 = vmatpush2.bf16.msra.mxu0 0
        %2606 = vmatprep.subr.bf16.mxu0 0
        %2607 = vmatpush2.bf16.msra.mxu0 0
        %2608 = vmatprep.subr.bf16.mxu0 0
        %2609 = vmatpush2.bf16.msra.mxu0 0
        %2610 = vmatprep.subr.bf16.mxu0 0
        %2611 = vmatpush2.bf16.msra.mxu0 0
        %2612 = vmatprep.subr.bf16.mxu0 0
        %2613 = vmatpush2.bf16.msra.mxu0 0
        %2614 = vmatprep.subr.bf16.mxu0 0
        %2615 = vmatpush2.bf16.msra.mxu0 0
        %2616 = vmatprep.mubr.bf16.mxu0 0
        %2617 = vmatmul.mubr.bf16.gmra.mxu0 %v2576
        %v2618 = vpop.f32.mrf.mxu0
        %v2619 = vadd.f32 0.0, %v2618
        %v2620 = vpop.f32.mrf.mxu0
        %v2621 = vpop.f32.mrf.mxu0
        %v2622 = vadd.f32 0.0, %v2621
        %v2623 = vpop.f32.mrf.mxu0
        %2624 = vmatprep.mubr.bf16.mxu0 0
        %2625 = vmatmul.mubr.bf16.gmra.mxu0 %v2579
        %v2626 = vpop.f32.mrf.mxu0
        %v2627 = vadd.f32 0.0, %v2626
        %v2628 = vpop.f32.mrf.mxu0
        %v2629 = vpop.f32.mrf.mxu0
        %v2630 = vadd.f32 0.0, %v2629
        %v2631 = vpop.f32.mrf.mxu0
        %2632 = vdwg.mxu0
        %v2633 = vadd.f32 %v2535, %v2619
        %v2634 = vadd.f32 %v2536, %v2622
        %v2635 = vadd.f32 %v2537, %v2627
        %v2636 = vadd.f32 %v2538, %v2630
        %s2637 = scalar_lea.vmem [#allocation2], 16
        %v2638 = vld [vmem:[%s2637] sm:$0xf]
        %v2639 = vld [vmem:[%s2637 + $0x8] sm:$0xf]
        %v2640 = vld [vmem:[%s2637 + $0x10] sm:$0xf]
        %v2641 = vld [vmem:[%s2637 + $0x18] sm:$0xf]
        %s2642 = scalar_lea.vmem %s3, 24
        %v2643 = vld [vmem:[%s2642] sm:$0xf]
        %v2648 = vunpack.c.l.b16 %v2638
        %v2649 = vunpack.c.l.b16 %v2639
        %v2650 = vunpack.c.l.b16 %v2640
        %v2651 = vunpack.c.l.b16 %v2641
        %v2652 = vpack.c.b16 %v2649, %v2648
        %v2653 = vpack.c.b16 %v2651, %v2650
        %v2655 = vsel %vm2097, %v2652, 0
        %v2658 = vsel %vm2097, %v2653, 0
        %v2661 = vsel %vm2104, %v2643, 0
        %2663 = vmatprep.subr.bf16.mxu0 0
        %2664 = vmatpush1.bf16.msra.mxu0 0
        %2665 = vmatprep.subr.bf16.mxu0 0
        %2666 = vmatpush1.bf16.msra.mxu0 0
        %2667 = vmatprep.subr.bf16.mxu0 0
        %2668 = vmatpush1.bf16.msra.mxu0 0
        %2669 = vmatprep.subr.bf16.mxu0 0
        %2670 = vmatpush1.bf16.msra.mxu0 0
        %2671 = vmatprep.subr.bf16.mxu0 0
        %2672 = vmatpush1.bf16.msra.mxu0 0
        %2673 = vmatprep.subr.bf16.mxu0 0
        %2674 = vmatpush1.bf16.msra.mxu0 0
        %2675 = vmatprep.subr.bf16.mxu0 0
        %2676 = vmatpush1.bf16.msra.mxu0 0
        %2677 = vmatprep.subr.bf16.mxu0 0
        %2678 = vmatpush1.bf16.msra.mxu0 %v2661
        %2679 = vmatprep.subr.bf16.mxu0 0
        %2680 = vmatpush2.bf16.msra.mxu0 0
        %2681 = vmatprep.subr.bf16.mxu0 0
        %2682 = vmatpush2.bf16.msra.mxu0 0
        %2683 = vmatprep.subr.bf16.mxu0 0
        %2684 = vmatpush2.bf16.msra.mxu0 0
        %2685 = vmatprep.subr.bf16.mxu0 0
        %2686 = vmatpush2.bf16.msra.mxu0 0
        %2687 = vmatprep.subr.bf16.mxu0 0
        %2688 = vmatpush2.bf16.msra.mxu0 0
        %2689 = vmatprep.subr.bf16.mxu0 0
        %2690 = vmatpush2.bf16.msra.mxu0 0
        %2691 = vmatprep.subr.bf16.mxu0 0
        %2692 = vmatpush2.bf16.msra.mxu0 0
        %2693 = vmatprep.subr.bf16.mxu0 0
        %2694 = vmatpush2.bf16.msra.mxu0 0
        %2695 = vmatprep.mubr.bf16.mxu0 0
        %2696 = vmatmul.mubr.bf16.gmra.mxu0 %v2655
        %v2697 = vpop.f32.mrf.mxu0
        %v2698 = vadd.f32 0.0, %v2697
        %v2699 = vpop.f32.mrf.mxu0
        %v2700 = vpop.f32.mrf.mxu0
        %v2701 = vadd.f32 0.0, %v2700
        %v2702 = vpop.f32.mrf.mxu0
        %2703 = vmatprep.mubr.bf16.mxu0 0
        %2704 = vmatmul.mubr.bf16.gmra.mxu0 %v2658
        %v2705 = vpop.f32.mrf.mxu0
        %v2706 = vadd.f32 0.0, %v2705
        %v2707 = vpop.f32.mrf.mxu0
        %v2708 = vpop.f32.mrf.mxu0
        %v2709 = vadd.f32 0.0, %v2708
        %v2710 = vpop.f32.mrf.mxu0
        %2711 = vdwg.mxu0
        %v2712 = vadd.f32 %v2633, %v2698
        %v2713 = vadd.f32 %v2634, %v2701
        %v2714 = vadd.f32 %v2635, %v2706
        %v2715 = vadd.f32 %v2636, %v2709
        %v2716 = vld [vmem:[%s2637] sm:$0xf]
        %v2717 = vld [vmem:[%s2637 + $0x4] sm:$0x1]
        %v2718 = vld [vmem:[%s2637 + $0x8] sm:$0xf]
        %v2719 = vld [vmem:[%s2637 + $0xc] sm:$0x1]
        %v2720 = vld [vmem:[%s2637 + $0x10] sm:$0xf]
        %v2721 = vld [vmem:[%s2637 + $0x14] sm:$0x1]
        %v2722 = vld [vmem:[%s2637 + $0x18] sm:$0xf]
        %v2723 = vld [vmem:[%s2637 + $0x1c] sm:$0x1]
        %v2725 = vshrl.u32 %v2716, 16
        %v2727 = vrot.slane %v2725, 4
        %v2728 = vshll.u32 %v2716, 16
        %v2730 = vrot.slane %v2728, 5
        %v2731 = vor.u32 %v2727, %v2730
        %v2732 = vrot.slane %v2731, 4
        %v2734 = vshll.u32 %v2717, 16
        %v2736 = vrot.slane %v2734, 5
        %v2737 = vsel %vm891, %v2732, %v2736
        %v2739 = vshrl.u32 %v2718, 16
        %v2741 = vrot.slane %v2739, 4
        %v2742 = vshll.u32 %v2718, 16
        %v2744 = vrot.slane %v2742, 5
        %v2745 = vor.u32 %v2741, %v2744
        %v2746 = vrot.slane %v2745, 4
        %v2748 = vshll.u32 %v2719, 16
        %v2750 = vrot.slane %v2748, 5
        %v2751 = vsel %vm891, %v2746, %v2750
        %v2753 = vshrl.u32 %v2720, 16
        %v2755 = vrot.slane %v2753, 4
        %v2756 = vshll.u32 %v2720, 16
        %v2758 = vrot.slane %v2756, 5
        %v2759 = vor.u32 %v2755, %v2758
        %v2760 = vrot.slane %v2759, 4
        %v2762 = vshll.u32 %v2721, 16
        %v2764 = vrot.slane %v2762, 5
        %v2765 = vsel %vm891, %v2760, %v2764
        %v2767 = vshrl.u32 %v2722, 16
        %v2769 = vrot.slane %v2767, 4
        %v2770 = vshll.u32 %v2722, 16
        %v2772 = vrot.slane %v2770, 5
        %v2773 = vor.u32 %v2769, %v2772
        %v2774 = vrot.slane %v2773, 4
        %v2776 = vshll.u32 %v2723, 16
        %v2778 = vrot.slane %v2776, 5
        %v2779 = vsel %vm891, %v2774, %v2778
        %s2780 = scalar_lea.vmem %s3, 28
        %v2781 = vld [vmem:[%s2780] sm:$0xf]
        %v2782 = vunpack.c.l.b16 %v2737
        %v2783 = vunpack.c.l.b16 %v2751
        %v2784 = vunpack.c.l.b16 %v2765
        %v2785 = vunpack.c.l.b16 %v2779
        %v2786 = vpack.c.b16 %v2783, %v2782
        %v2787 = vpack.c.b16 %v2785, %v2784
        %v2789 = vsel %vm2097, %v2786, 0
        %v2792 = vsel %vm2097, %v2787, 0
        %v2795 = vsel %vm2104, %v2781, 0
        %2797 = vmatprep.subr.bf16.mxu0 0
        %2798 = vmatpush1.bf16.msra.mxu0 0
        %2799 = vmatprep.subr.bf16.mxu0 0
        %2800 = vmatpush1.bf16.msra.mxu0 0
        %2801 = vmatprep.subr.bf16.mxu0 0
        %2802 = vmatpush1.bf16.msra.mxu0 0
        %2803 = vmatprep.subr.bf16.mxu0 0
        %2804 = vmatpush1.bf16.msra.mxu0 0
        %2805 = vmatprep.subr.bf16.mxu0 0
        %2806 = vmatpush1.bf16.msra.mxu0 0
        %2807 = vmatprep.subr.bf16.mxu0 0
        %2808 = vmatpush1.bf16.msra.mxu0 0
        %2809 = vmatprep.subr.bf16.mxu0 0
        %2810 = vmatpush1.bf16.msra.mxu0 0
        %2811 = vmatprep.subr.bf16.mxu0 0
        %2812 = vmatpush1.bf16.msra.mxu0 %v2795
        %2813 = vmatprep.subr.bf16.mxu0 0
        %2814 = vmatpush2.bf16.msra.mxu0 0
        %2815 = vmatprep.subr.bf16.mxu0 0
        %2816 = vmatpush2.bf16.msra.mxu0 0
        %2817 = vmatprep.subr.bf16.mxu0 0
        %2818 = vmatpush2.bf16.msra.mxu0 0
        %2819 = vmatprep.subr.bf16.mxu0 0
        %2820 = vmatpush2.bf16.msra.mxu0 0
        %2821 = vmatprep.subr.bf16.mxu0 0
        %2822 = vmatpush2.bf16.msra.mxu0 0
        %2823 = vmatprep.subr.bf16.mxu0 0
        %2824 = vmatpush2.bf16.msra.mxu0 0
        %2825 = vmatprep.subr.bf16.mxu0 0
        %2826 = vmatpush2.bf16.msra.mxu0 0
        %2827 = vmatprep.subr.bf16.mxu0 0
        %2828 = vmatpush2.bf16.msra.mxu0 0
        %2829 = vmatprep.mubr.bf16.mxu0 0
        %2830 = vmatmul.mubr.bf16.gmra.mxu0 %v2789
        %v2831 = vpop.f32.mrf.mxu0
        %v2832 = vadd.f32 0.0, %v2831
        %v2833 = vpop.f32.mrf.mxu0
        %v2834 = vpop.f32.mrf.mxu0
        %v2835 = vadd.f32 0.0, %v2834
        %v2836 = vpop.f32.mrf.mxu0
        %2837 = vmatprep.mubr.bf16.mxu0 0
        %2838 = vmatmul.mubr.bf16.gmra.mxu0 %v2792
        %v2839 = vpop.f32.mrf.mxu0
        %v2840 = vadd.f32 0.0, %v2839
        %v2841 = vpop.f32.mrf.mxu0
        %v2842 = vpop.f32.mrf.mxu0
        %v2843 = vadd.f32 0.0, %v2842
        %v2844 = vpop.f32.mrf.mxu0
        %2845 = vdwg.mxu0
        %v2846 = vadd.f32 %v2712, %v2832
        %v2847 = vadd.f32 %v2713, %v2835
        %v2848 = vadd.f32 %v2714, %v2840
        %v2849 = vadd.f32 %v2715, %v2843
        %v2850 = vld [vmem:[%s2637] sm:$0xe]
        %v2851 = vld [vmem:[%s2637 + $0x8] sm:$0xe]
        %v2852 = vld [vmem:[%s2637 + $0x10] sm:$0xe]
        %v2853 = vld [vmem:[%s2637 + $0x18] sm:$0xe]
        %v2862 = vrot.slane %v2850, 5
        %v2863 = vrot.slane %v2862, 4
        %v2864 = vrot.slane %v2717, 5
        %v2865 = vsel %vm2239, %v2863, %v2864
        %v2866 = vrot.slane %v2851, 5
        %v2867 = vrot.slane %v2866, 4
        %v2868 = vrot.slane %v2719, 5
        %v2869 = vsel %vm2239, %v2867, %v2868
        %v2870 = vrot.slane %v2852, 5
        %v2871 = vrot.slane %v2870, 4
        %v2872 = vrot.slane %v2721, 5
        %v2873 = vsel %vm2239, %v2871, %v2872
        %v2874 = vrot.slane %v2853, 5
        %v2875 = vrot.slane %v2874, 4
        %v2876 = vrot.slane %v2723, 5
        %v2877 = vsel %vm2239, %v2875, %v2876
        %s2878 = scalar_lea.vmem %s3, 32
        %v2879 = vld [vmem:[%s2878] sm:$0xf]
        %v2880 = vunpack.c.l.b16 %v2865
        %v2881 = vunpack.c.l.b16 %v2869
        %v2882 = vunpack.c.l.b16 %v2873
        %v2883 = vunpack.c.l.b16 %v2877
        %v2884 = vpack.c.b16 %v2881, %v2880
        %v2885 = vpack.c.b16 %v2883, %v2882
        %v2887 = vsel %vm2097, %v2884, 0
        %v2890 = vsel %vm2097, %v2885, 0
        %v2893 = vsel %vm2104, %v2879, 0
        %2895 = vmatprep.subr.bf16.mxu0 0
        %2896 = vmatpush1.bf16.msra.mxu0 0
        %2897 = vmatprep.subr.bf16.mxu0 0
        %2898 = vmatpush1.bf16.msra.mxu0 0
        %2899 = vmatprep.subr.bf16.mxu0 0
        %2900 = vmatpush1.bf16.msra.mxu0 0
        %2901 = vmatprep.subr.bf16.mxu0 0
        %2902 = vmatpush1.bf16.msra.mxu0 0
        %2903 = vmatprep.subr.bf16.mxu0 0
        %2904 = vmatpush1.bf16.msra.mxu0 0
        %2905 = vmatprep.subr.bf16.mxu0 0
        %2906 = vmatpush1.bf16.msra.mxu0 0
        %2907 = vmatprep.subr.bf16.mxu0 0
        %2908 = vmatpush1.bf16.msra.mxu0 0
        %2909 = vmatprep.subr.bf16.mxu0 0
        %2910 = vmatpush1.bf16.msra.mxu0 %v2893
        %2911 = vmatprep.subr.bf16.mxu0 0
        %2912 = vmatpush2.bf16.msra.mxu0 0
        %2913 = vmatprep.subr.bf16.mxu0 0
        %2914 = vmatpush2.bf16.msra.mxu0 0
        %2915 = vmatprep.subr.bf16.mxu0 0
        %2916 = vmatpush2.bf16.msra.mxu0 0
        %2917 = vmatprep.subr.bf16.mxu0 0
        %2918 = vmatpush2.bf16.msra.mxu0 0
        %2919 = vmatprep.subr.bf16.mxu0 0
        %2920 = vmatpush2.bf16.msra.mxu0 0
        %2921 = vmatprep.subr.bf16.mxu0 0
        %2922 = vmatpush2.bf16.msra.mxu0 0
        %2923 = vmatprep.subr.bf16.mxu0 0
        %2924 = vmatpush2.bf16.msra.mxu0 0
        %2925 = vmatprep.subr.bf16.mxu0 0
        %2926 = vmatpush2.bf16.msra.mxu0 0
        %2927 = vmatprep.mubr.bf16.mxu0 0
        %2928 = vmatmul.mubr.bf16.gmra.mxu0 %v2887
        %v2929 = vpop.f32.mrf.mxu0
        %v2930 = vadd.f32 0.0, %v2929
        %v2931 = vpop.f32.mrf.mxu0
        %v2932 = vpop.f32.mrf.mxu0
        %v2933 = vadd.f32 0.0, %v2932
        %v2934 = vpop.f32.mrf.mxu0
        %2935 = vmatprep.mubr.bf16.mxu0 0
        %2936 = vmatmul.mubr.bf16.gmra.mxu0 %v2890
        %v2937 = vpop.f32.mrf.mxu0
        %v2938 = vadd.f32 0.0, %v2937
        %v2939 = vpop.f32.mrf.mxu0
        %v2940 = vpop.f32.mrf.mxu0
        %v2941 = vadd.f32 0.0, %v2940
        %v2942 = vpop.f32.mrf.mxu0
        %2943 = vdwg.mxu0
        %v2944 = vadd.f32 %v2846, %v2930
        %v2945 = vadd.f32 %v2847, %v2933
        %v2946 = vadd.f32 %v2848, %v2938
        %v2947 = vadd.f32 %v2849, %v2941
        %v2948 = vld [vmem:[%s4] sm:$0x1]
        %v2950 = vlaneseq
        %v2951 = vshrl.u32 %v2950, 7
        %v2952 = vsub.s32 0, %v2951
        %v2953 = vrot.slane %v2948, %v2952
        %v2955 = vadd.f32 %v2944, %v2953
        %v2956 = vadd.f32 %v2945, %v2953
        %v2957 = vadd.f32 %v2946, %v2953
        %v2958 = vadd.f32 %v2947, %v2953
        %s2959 = sadd.s32 %s1447, 66
        %s2960 = smul.addr %s2959, 4
        %s2961 = scalar_lea.vmem %s654, %s2960 [#allocation3]
        %v2962 = vld [vmem:[%s2961] sm:$0xf]
        %v2963 = vld [vmem:[%s2961 + $0x8] sm:$0xf]
        %v2964 = vld [vmem:[%s2961 + $0x10] sm:$0xf]
        %v2965 = vld [vmem:[%s2961 + $0x18] sm:$0xf]
        %v2966 = vld [vmem:[%s5] sm:$0x3]
        %v2967 = vld [vmem:[%s6] sm:$0x1]
        %v2969 = vlaneseq
        %v2970 = vshrl.u32 %v2969, 7
        %v2971 = vsub.s32 0, %v2970
        %v2972 = vrot.slane %v2967, %v2971
        %v2978 = vunpack.c.l.b16 %v2962
        %v2979 = vunpack.c.l.b16 %v2963
        %v2980 = vunpack.c.l.b16 %v2964
        %v2981 = vunpack.c.l.b16 %v2965
        %v2982 = vpack.c.b16 %v2979, %v2978
        %v2983 = vpack.c.b16 %v2981, %v2980
        %v2985 = vsel %vm722, %v2982, 0
        %v2988 = vsel %vm722, %v2983, 0
        %v2991 = vsel %vm732, %v2966, 0
        %2993 = vmatprep.subr.bf16.mxu0 0
        %2994 = vmatpush1.bf16.msra.mxu0 0
        %2995 = vmatprep.subr.bf16.mxu0 0
        %2996 = vmatpush1.bf16.msra.mxu0 0
        %2997 = vmatprep.subr.bf16.mxu0 0
        %2998 = vmatpush1.bf16.msra.mxu0 0
        %2999 = vmatprep.subr.bf16.mxu0 0
        %3000 = vmatpush1.bf16.msra.mxu0 0
        %3001 = vmatprep.subr.bf16.mxu0 0
        %3002 = vmatpush1.bf16.msra.mxu0 0
        %3003 = vmatprep.subr.bf16.mxu0 0
        %3004 = vmatpush1.bf16.msra.mxu0 0
        %3005 = vmatprep.subr.bf16.mxu0 0
        %3006 = vmatpush1.bf16.msra.mxu0 0
        %3007 = vmatprep.subr.bf16.mxu0 0
        %3008 = vmatpush1.bf16.msra.mxu0 %v2991
        %3009 = vmatprep.subr.bf16.mxu0 0
        %3010 = vmatpush2.bf16.msra.mxu0 0
        %3011 = vmatprep.subr.bf16.mxu0 0
        %3012 = vmatpush2.bf16.msra.mxu0 0
        %3013 = vmatprep.subr.bf16.mxu0 0
        %3014 = vmatpush2.bf16.msra.mxu0 0
        %3015 = vmatprep.subr.bf16.mxu0 0
        %3016 = vmatpush2.bf16.msra.mxu0 0
        %3017 = vmatprep.subr.bf16.mxu0 0
        %3018 = vmatpush2.bf16.msra.mxu0 0
        %3019 = vmatprep.subr.bf16.mxu0 0
        %3020 = vmatpush2.bf16.msra.mxu0 0
        %3021 = vmatprep.subr.bf16.mxu0 0
        %3022 = vmatpush2.bf16.msra.mxu0 0
        %3023 = vmatprep.subr.bf16.mxu0 0
        %3024 = vmatpush2.bf16.msra.mxu0 0
        %3025 = vmatprep.mubr.bf16.mxu0 0
        %3026 = vmatmul.mubr.bf16.gmra.mxu0 %v2985
        %v3027 = vpop.f32.mrf.mxu0
        %v3028 = vadd.f32 %v2972, %v3027
        %v3029 = vpop.f32.mrf.mxu0
        %v3030 = vpop.f32.mrf.mxu0
        %v3031 = vadd.f32 %v2972, %v3030
        %v3032 = vpop.f32.mrf.mxu0
        %3033 = vmatprep.mubr.bf16.mxu0 0
        %3034 = vmatmul.mubr.bf16.gmra.mxu0 %v2988
        %v3035 = vpop.f32.mrf.mxu0
        %v3036 = vadd.f32 %v2972, %v3035
        %v3037 = vpop.f32.mrf.mxu0
        %v3038 = vpop.f32.mrf.mxu0
        %v3039 = vadd.f32 %v2972, %v3038
        %v3040 = vpop.f32.mrf.mxu0
        %3041 = vdwg.mxu0
        %v3042 = vadd.f32 %v2955, %v3028
        %v3043 = vadd.f32 %v2956, %v3031
        %v3044 = vadd.f32 %v2957, %v3036
        %v3045 = vadd.f32 %v2958, %v3039
        %v3046 = vmax.f32 %v3042, 0.0
        %v3047 = vmax.f32 %v3043, 0.0
        %v3048 = vmax.f32 %v3044, 0.0
        %v3049 = vmax.f32 %v3045, 0.0
        %3050 = vst.msk [vmem:[%s682] sm:$0xff] %vm2097, %v3046
        %3051 = vst.msk [vmem:[%s682 + $0x8] sm:$0xff] %vm2097, %v3047
        %3052 = vst.msk [vmem:[%s682 + $0x10] sm:$0xff] %vm2097, %v3048
        %3053 = vst.msk [vmem:[%s682 + $0x18] sm:$0xff] %vm2097, %v3049
        %s3054 = sand.u32 %s195, 1
        %s3055 = scalar_lea.sflag [#allocation5], %s3054
        %s3056 = sand.u32 %s195, 1
        %s3057 = smul.addr %s3056, 32
        %s3058 = scalar_lea.vmem [#allocation4], %s3057
        // Predicated region
        $region98: #{tpu_custom_call.1} parent=84 // pred_check
          %p3059 = pneg %p205
        $region99: #{tpu_custom_call.1} parent=84 // pred_check_branch
          %3061 = sbr.rel (%p3059) target = $region101
        $region100: #{tpu_custom_call.1} parent=84 // pred_region
          %s3062 = smul.u32 4, %s26
          %s3064 = ssub.s32 512, 512
          %3065 = vsyncadd %s3055, %s3064
          %s3066 = smul.addr %s25, 8
          %s3067 = sadd.s32 %s3062, %s3066
          %s3068 = smul.addr %s3067, 128
          %s3069 = scalar_lea.hbm %s7, %s3068
          %s3070 = sshll.u32 %s3058, 4
          %s3071 = int_to_ptr.vmem [resolvable:$true] %s3070
          %3076 = dma.vmem_to_hbm [thread:$0]  %s3071, 512, %s3069, %s3055, 128, 128, 8
        $region101: #{tpu_custom_call.1} parent=84 // pred_fallthru
          _
      $region85: #{tpu_custom_call.1} parent=5 // pred_fallthru
        _
      %p3077 = scmp.le.s32.totalorder 2, %s16
      // Predicated region
      $region102: #{tpu_custom_call.1} parent=5 // pred_check
        %p3078 = pneg %p3077
      $region103: #{tpu_custom_call.1} parent=5 // pred_check_branch
        %3080 = sbr.rel (%p3078) target = $region105
      $region104: #{tpu_custom_call.1} parent=5 // pred_region
        %s3081 = ssub.s32 %s16, 2
        // Predicated region
        $region106: #{tpu_custom_call.1} parent=104 // pred_check
          %p3082 = pneg %p211
        $region107: #{tpu_custom_call.1} parent=104 // pred_check_branch
          %3084 = sbr.rel (%p3082) target = $region109
        $region108: #{tpu_custom_call.1} parent=104 // pred_region
          %s3085 = sand.u32 %s196, 1
          %s3086 = scalar_lea.sflag [#allocation5], %s3085
          %s3087 = sand.u32 %s196, 1
          %s3088 = smul.addr %s3087, 32
          %s3089 = scalar_lea.vmem [#allocation4], %s3088
          %3090 = dma.done %s3086, 512
        $region109: #{tpu_custom_call.1} parent=104 // pred_fallthru
          _
      $region105: #{tpu_custom_call.1} parent=5 // pred_fallthru
        _
    $region6: #{tpu_custom_call.1} parent=1 // loop_footer
      %s20 = sadd.s32 1, %s16
    $region7: #{tpu_custom_call.1} parent=1 // loop_footer_branch
      %15 = sbr.rel target = $region3
    $region8: #{tpu_custom_call.1} parent=1 // loop_exit
      _
    %3091 = vsyncpa [#allocation5], 1
    %s3092 = scalar_lea.sflag [#allocation5], 1
    %3093 = vsyncpa %s3092, 1

</llo_original>
